<compile_context>
chip_gen: v7x
topology: tpu7x:2x2x1
jax: 0.10.0
libtpu: 0.0.40
codegen_flags: <defaults>
</compile_context>

<pallas_src>
import numpy as np
import jax
import jax.numpy as jnp
from jax.experimental import pallas as pl
from jax.experimental.pallas import tpu as pltpu


# ------------------------------- static geometry ------------------------------
# conv1: 26x26 -> 13x13 (s=2, p=1)   rows 169 -> padded 176
# conv2: 13x13 ->  7x7  (s=2, p=1)   rows  49 -> padded  56
# conv3:  7x7  ->  7x7  (s=1, p=1)   rows  49 -> padded  56
# conv4:  7x7  ->  5x5  (s=1, p=0)   kept on the 7x7 row grid (valid at y,x < 5)
_M1, _M2 = 176, 56
_DELTAS3 = tuple((di - 1) * 7 + (dj - 1) for di in range(3) for dj in range(3))  # [-8..8]
_DELTAS4 = tuple(di * 7 + dj for di in range(3) for dj in range(3))              # [0..16]
_FC1_ROWS = tuple(y * 7 + x for y in range(5) for x in range(5))                 # 25 valid rows


# ------------------------------ fused Pallas kernel ----------------------------

def _fused_net_kernel(p1_ref, w1_ref, b1_ref,
                      g2_ref, w2_ref, b2_ref,
                      m3_ref, w3_ref, b3_ref,
                      w4_ref, b4_ref,
                      wf1_ref, bf1_ref,
                      wf2_ref, bf2_ref,
                      o_ref):
    f32, bf16 = jnp.float32, jnp.bfloat16

    def dot(a, b):
        return jnp.dot(a, b, preferred_element_type=f32)

    def relu(v):
        return jnp.maximum(v, 0.0)

    # ---- conv1: im2col matmul (176, Cin*9) @ (Cin*9, 16) --------------------------
    a1 = relu(dot(p1_ref[0], w1_ref[...]) + b1_ref[...])                 # (176, 16) f32

    # ---- conv2 (stride 2): one spatial 0/1 gather matmul for all 9 taps (exact row
    #      selection), then one fused (56, 144) @ (144, 32) conv matmul.
    gall = dot(g2_ref[...], a1.astype(bf16))                             # (504, 16) f32
    patches2 = jnp.concatenate(
        [gall[t * _M2:(t + 1) * _M2, :] for t in range(9)], axis=1)      # (56, 144)
    a2 = relu(dot(patches2.astype(bf16), w2_ref[...]) + b2_ref[...])     # (56, 32) f32

    # ---- conv3 (stride 1, 'same'): tap = constant row shift (window slice into a
    #      zero-row-padded activation) * boundary mask; one (56, 288)@(288, 64) matmul.
    z8 = jnp.zeros((8, a2.shape[1]), f32)
    a2e = jnp.concatenate([z8, a2, z8], axis=0)                          # (72, 32)
    p3 = [m3_ref[t] * a2e[8 + _DELTAS3[t]: 8 + _DELTAS3[t] + _M2, :] for t in range(9)]
    patches3 = jnp.concatenate(p3, axis=1)                               # (56, 288)
    a3 = relu(dot(patches3.astype(bf16), w3_ref[...]) + b3_ref[...])     # (56, 64) f32

    # ---- conv4 (stride 1, pad 0): output kept on the 7x7 row grid.  Valid outputs
    #      (y, x < 5) only ever read valid a3 rows, so no mask is needed; invalid grid
    #      rows are never referenced downstream.
    a3e = jnp.concatenate([a3, jnp.zeros((16, a3.shape[1]), f32)], axis=0)   # (72, 64)
    p4 = [a3e[d: d + _M2, :] for d in _DELTAS4]
    patches4 = jnp.concatenate(p4, axis=1)                               # (56, 576)
    a4 = relu(dot(patches4.astype(bf16), w4_ref[...]) + b4_ref[...])     # (56, 64) f32

    # ---- fc1: lane-concatenate the 25 valid conv4 rows into a flat (1, 1600) row and
    #      contract in a single matmul (weight pre-permuted for PyTorch's flatten order).
    flat = jnp.concatenate([a4[r:r + 1, :] for r in _FC1_ROWS], axis=1)  # (1, 1600)
    f = relu(dot(flat.astype(bf16), wf1_ref[...]) + bf1_ref[...])        # (1, 128)

    # ---- fc2 ----------------------------------------------------------------------
    o_ref[0] = dot(f.astype(bf16), wf2_ref[...]) + bf2_ref[...]


# ------------------------ host-side constant / weight packing ------------------

def _build_conv2_gather():
    """(9*56, 176) 0/1 matrix: row t*56 + (oy*7+ox) selects conv2's tap-t source row
    (spatial only; stride 2, pad 1, 13x13 -> 7x7).  All-zero rows encode zero padding;
    columns >= 169 (the sublane-padded a1 rows) are never referenced."""
    g = np.zeros((9 * _M2, _M1), np.float32)
    for di in range(3):
        for dj in range(3):
            t = di * 3 + dj
            for oy in range(7):
                iy = 2 * oy + di - 1
                if not 0 <= iy < 13:
                    continue
                for ox in range(7):
                    ix = 2 * ox + dj - 1
                    if not 0 <= ix < 13:
                        continue
                    g[t * _M2 + oy * 7 + ox, iy * 13 + ix] = 1.0
    return g


def _build_conv3_masks():
    """(9, 56, 1) 0/1 masks: zero where conv3's tap-t source falls in the zero padding
    (or in the sublane-padded rows >= 49)."""
    m = np.zeros((9, _M2, 1), np.float32)
    for di in range(3):
        for dj in range(3):
            t = di * 3 + dj
            for oy in range(7):
                for ox in range(7):
                    if 0 <= oy + di - 1 < 7 and 0 <= ox + dj - 1 < 7:
                        m[t, oy * 7 + ox, 0] = 1.0
    return m


def pack_constants(params):
    """One-time repack of PyTorch-layout weights into kernel-ready (bf16) form."""
    bf, f32 = jnp.bfloat16, jnp.float32

    def cat_w(w):                               # (Cout, Cin, 3, 3) -> (9*Cin, Cout)
        cout, cin = w.shape[0], w.shape[1]
        return w.transpose(2, 3, 1, 0).reshape(9 * cin, cout).astype(bf)

    c = {}
    c["w1"] = params["c1_w"].reshape(params["c1_w"].shape[0], -1).T.astype(bf)  # (Cin*9, 16)
    c["b1"] = params["c1_b"][None, :].astype(f32)
    c["w2"] = cat_w(params["c2_w"]); c["b2"] = params["c2_b"][None, :].astype(f32)
    c["w3"] = cat_w(params["c3_w"]); c["b3"] = params["c3_b"][None, :].astype(f32)
    c["w4"] = cat_w(params["c4_w"]); c["b4"] = params["c4_b"][None, :].astype(f32)
    c["g2"] = jnp.asarray(_build_conv2_gather(), bf)     # 0/1 -> exact in bf16
    c["m3"] = jnp.asarray(_build_conv3_masks(), f32)
    # PyTorch flatten index is c*25 + (y*5+x); kernel flat-row index is (y*5+x)*64 + c.
    nf = params["fc1_w"].shape[0]
    c["wf1"] = (params["fc1_w"].reshape(nf, 64, 25)
                .transpose(2, 1, 0).reshape(25 * 64, nf).astype(bf))
    c["bf1"] = params["fc1_b"][None, :].astype(f32)
    c["wf2"] = params["fc2_w"].T.astype(bf)
    c["bf2"] = params["fc2_b"][None, :].astype(f32)
    return c


def _conv1_patches(x):
    """x: (N, C, 26, 26) NCHW -> (N, 176, C*9) bf16 im2col rows (h*13+w), cols (c*9+tap)."""
    n, cch, _, _ = x.shape
    xp = jnp.pad(x, ((0, 0), (0, 0), (1, 1), (1, 1)))
    ho = wo = 13
    taps = []
    for di in range(3):
        for dj in range(3):
            taps.append(xp[:, :, di:di + 2 * ho:2, dj:dj + 2 * wo:2])    # (N, C, 13, 13)
    pat = jnp.stack(taps, axis=2)                  # (N, C, 9, 13, 13)
    pat = pat.transpose(0, 3, 4, 1, 2)             # (N, 13, 13, C, 9)
    pat = pat.reshape(n, ho * wo, cch * 9)
    pat = jnp.pad(pat, ((0, 0), (0, _M1 - ho * wo), (0, 0)))
    return pat.astype(jnp.bfloat16)


# ----------------------------------- forward -----------------------------------

def _const_spec(arr):
    nd = arr.ndim
    if nd == 2:
        index_map = lambda i: (0, 0)
    elif nd == 3:
        index_map = lambda i: (0, 0, 0)
    else:
        raise ValueError(f"unsupported rank {nd}")
    return pl.BlockSpec(arr.shape, index_map)


def fused_forward(consts, x):
    batch = x.shape[0]
    p1 = _conv1_patches(x)                         # (batch, 176, Cin*9) bf16
    out_dim = consts["wf2"].shape[1]

    args = (p1,
            consts["w1"], consts["b1"],
            consts["g2"], consts["w2"], consts["b2"],
            consts["m3"], consts["w3"], consts["b3"],
            consts["w4"], consts["b4"],
            consts["wf1"], consts["bf1"],
            consts["wf2"], consts["bf2"])

    in_specs = [pl.BlockSpec((1,) + p1.shape[1:], lambda i: (i, 0, 0))]
    in_specs += [_const_spec(a) for a in args[1:]]

    out = pl.pallas_call(
        _fused_net_kernel,
        out_shape=jax.ShapeDtypeStruct((batch, 1, out_dim), jnp.float32),
        grid=(batch,),
        in_specs=in_specs,
        out_specs=pl.BlockSpec((1, 1, out_dim), lambda i: (i, 0, 0)),
        compiler_params=pltpu.CompilerParams(dimension_semantics=("parallel",)),
    )(*args)
    return out.reshape(batch, out_dim)


# ------------------------------ parameter creation ------------------------------

def xavier_uniform(key, shape, fan_in, fan_out):
    a = jnp.sqrt(6.0 / (fan_in + fan_out))
    return jax.random.uniform(key, shape, jnp.float32, -a, a)


def bias_uniform(key, shape, fan_in):
    bound = 1.0 / jnp.sqrt(float(fan_in))
    return jax.random.uniform(key, shape, jnp.float32, -bound, bound)


def init_params(key, in_channels, out_dim):
    ks = jax.random.split(key, 12)
    p = {}
    p["c1_w"] = xavier_uniform(ks[0], (16, in_channels, 3, 3), in_channels * 9, 16 * 9)
    p["c1_b"] = bias_uniform(ks[1], (16,), in_channels * 9)
    p["c2_w"] = xavier_uniform(ks[2], (32, 16, 3, 3), 16 * 9, 32 * 9)
    p["c2_b"] = bias_uniform(ks[3], (32,), 16 * 9)
    p["c3_w"] = xavier_uniform(ks[4], (64, 32, 3, 3), 32 * 9, 64 * 9)
    p["c3_b"] = bias_uniform(ks[5], (64,), 32 * 9)
    p["c4_w"] = xavier_uniform(ks[6], (64, 64, 3, 3), 64 * 9, 64 * 9)
    p["c4_b"] = bias_uniform(ks[7], (64,), 64 * 9)
    p["fc1_w"] = xavier_uniform(ks[8], (128, 5 * 5 * 64), 5 * 5 * 64, 128)
    p["fc1_b"] = bias_uniform(ks[9], (128,), 5 * 5 * 64)
    p["fc2_w"] = xavier_uniform(ks[10], (out_dim, 128), 128, out_dim)
    p["fc2_b"] = bias_uniform(ks[11], (out_dim,), 128)
    # Round to bf16-representable values so the kernel's bf16 weight cast is exact and
    # the f32 reference differs from the kernel only by in-kernel activation rounding.
    return jax.tree_util.tree_map(
        lambda a: a.astype(jnp.bfloat16).astype(jnp.float32), p)


# --------------------------- pure-JAX reference (check) -------------------------

def _reference_forward(params, x):
    def conv(x, w, b, stride, pad):
        cout, cin, kh, kw = w.shape
        xp = jnp.pad(x, ((0, 0), (0, 0), (pad, pad), (pad, pad))) if pad else x
        n, c, h, wd = xp.shape
        ho = (h - kh) // stride + 1
        wo = (wd - kw) // stride + 1
        cols = []
        for di in range(kh):
            for dj in range(kw):
                cols.append(xp[:, :, di:di + stride * ho:stride, dj:dj + stride * wo:stride])
        pat = jnp.stack(cols, 2).transpose(0, 3, 4, 1, 2).reshape(n * ho * wo, c * kh * kw)
        out = pat @ w.reshape(cout, -1).T + b
        return jnp.maximum(out, 0.0).reshape(n, ho, wo, cout).transpose(0, 3, 1, 2)

    h = conv(x, params["c1_w"], params["c1_b"], 2, 1)
    h = conv(h, params["c2_w"], params["c2_b"], 2, 1)
    h = conv(h, params["c3_w"], params["c3_b"], 1, 1)
    h = conv(h, params["c4_w"], params["c4_b"], 1, 0)
    f = h.reshape(h.shape[0], -1)
    f = jnp.maximum(f @ params["fc1_w"].T + params["fc1_b"], 0.0)
    return f @ params["fc2_w"].T + params["fc2_b"]


# -------------------------------------- main -------------------------------------

if __name__ == "__main__":
    key = jax.random.PRNGKey(0)
    k_params, k_x = jax.random.split(key)

    # input_shape = (4, 26, 26) -> after the conv stack spatial = 5x5, matching
    # Linear(5*5*64, 128).  output_shape = (10,).
    in_channels, H, W = 4, 26, 26
    out_dim = 10
    batch = 2

    params = init_params(k_params, in_channels, out_dim)
    consts = pack_constants(params)
    x = jax.random.normal(k_x, (batch, in_channels, H, W), jnp.float32)
    x = x.astype(jnp.bfloat16).astype(jnp.float32)   # kernel's bf16 input cast is then exact

    fwd = jax.jit(fused_forward)
    y = jax.block_until_ready(fwd(consts, x))
    assert y.shape == (batch, out_dim), y.shape
    assert y.dtype == jnp.float32

    y_ref = jax.block_until_ready(jax.jit(_reference_forward)(params, x))
    # Kernel matmuls are bf16 x bf16 with f32 accumulation (weights are already
    # bf16-exact); remaining deviation vs the f32 reference is activation rounding only.
    err = float(jnp.max(jnp.abs(y - y_ref)))
    assert bool(jnp.allclose(y, y_ref, atol=2e-2, rtol=2e-2)), err

    print("KERNEL_OK")
</pallas_src>

<mosaic_0001>
module attributes {stable_mosaic.version = 11 : i64} {
  func.func @_fused_net_kernel(%arg0: i32, %arg1: memref<1x176x36xbf16, #tpu.memory_space<vmem>>, %arg2: memref<36x16xbf16, #tpu.memory_space<vmem>>, %arg3: memref<1x16xf32, #tpu.memory_space<vmem>>, %arg4: memref<504x176xbf16, #tpu.memory_space<vmem>>, %arg5: memref<144x32xbf16, #tpu.memory_space<vmem>>, %arg6: memref<1x32xf32, #tpu.memory_space<vmem>>, %arg7: memref<9x56x1xf32, #tpu.memory_space<vmem>>, %arg8: memref<288x64xbf16, #tpu.memory_space<vmem>>, %arg9: memref<1x64xf32, #tpu.memory_space<vmem>>, %arg10: memref<576x64xbf16, #tpu.memory_space<vmem>>, %arg11: memref<1x64xf32, #tpu.memory_space<vmem>>, %arg12: memref<1600x128xbf16, #tpu.memory_space<vmem>>, %arg13: memref<1x128xf32, #tpu.memory_space<vmem>>, %arg14: memref<128x10xbf16, #tpu.memory_space<vmem>>, %arg15: memref<1x10xf32, #tpu.memory_space<vmem>>, %arg16: memref<1x1x10xf32, #tpu.memory_space<vmem>>) attributes {dimension_semantics = [#tpu.dimension_semantics<parallel>], iteration_bounds = array<i64: 2>, scalar_prefetch = 0 : i64, scratch_operands = 0 : i64, tpu.core_type = #tpu.core_type<tc>, window_params = [{transform_indices = @transform_0, window_bounds = array<i64: 1, 176, 36>}, {pipeline_mode = #tpu.pipeline_mode<synchronous>, transform_indices = @transform_1, window_bounds = array<i64: 36, 16>}, {pipeline_mode = #tpu.pipeline_mode<synchronous>, transform_indices = @transform_2, window_bounds = array<i64: 1, 16>}, {pipeline_mode = #tpu.pipeline_mode<synchronous>, transform_indices = @transform_3, window_bounds = array<i64: 504, 176>}, {pipeline_mode = #tpu.pipeline_mode<synchronous>, transform_indices = @transform_4, window_bounds = array<i64: 144, 32>}, {pipeline_mode = #tpu.pipeline_mode<synchronous>, transform_indices = @transform_5, window_bounds = array<i64: 1, 32>}, {pipeline_mode = #tpu.pipeline_mode<synchronous>, transform_indices = @transform_6, window_bounds = array<i64: 9, 56, 1>}, {pipeline_mode = #tpu.pipeline_mode<synchronous>, transform_indices = @transform_7, window_bounds = array<i64: 288, 64>}, {pipeline_mode = #tpu.pipeline_mode<synchronous>, transform_indices = @transform_8, window_bounds = array<i64: 1, 64>}, {pipeline_mode = #tpu.pipeline_mode<synchronous>, transform_indices = @transform_9, window_bounds = array<i64: 576, 64>}, {pipeline_mode = #tpu.pipeline_mode<synchronous>, transform_indices = @transform_10, window_bounds = array<i64: 1, 64>}, {pipeline_mode = #tpu.pipeline_mode<synchronous>, transform_indices = @transform_11, window_bounds = array<i64: 1600, 128>}, {pipeline_mode = #tpu.pipeline_mode<synchronous>, transform_indices = @transform_12, window_bounds = array<i64: 1, 128>}, {pipeline_mode = #tpu.pipeline_mode<synchronous>, transform_indices = @transform_13, window_bounds = array<i64: 128, 10>}, {pipeline_mode = #tpu.pipeline_mode<synchronous>, transform_indices = @transform_14, window_bounds = array<i64: 1, 10>}, {transform_indices = @transform_15, window_bounds = array<i64: 1, 1, 10>}]} {
    %c0 = arith.constant 0 : index
    %c0_0 = arith.constant 0 : index
    %c0_1 = arith.constant 0 : index
    %0 = vector.load %arg1[%c0, %c0_0, %c0_1] : memref<1x176x36xbf16, #tpu.memory_space<vmem>>, vector<1x176x36xbf16>
    %1 = vector.shape_cast %0 : vector<1x176x36xbf16> to vector<176x36xbf16>
    %c0_2 = arith.constant 0 : index
    %c0_3 = arith.constant 0 : index
    %2 = vector.load %arg2[%c0_2, %c0_3] : memref<36x16xbf16, #tpu.memory_space<vmem>>, vector<36x16xbf16>
    %cst = arith.constant dense<0.000000e+00> : vector<176x16xf32>
    %3 = tpu.matmul %1, %2, %cst {dimension_numbers = #tpu.dot_dimension_numbers<[1], [0], [0], [1], [0, 0, 1, 1], [], []>} : vector<176x36xbf16>, vector<36x16xbf16>, vector<176x16xf32> -> vector<176x16xf32>
    %c0_4 = arith.constant 0 : index
    %c0_5 = arith.constant 0 : index
    %4 = vector.load %arg3[%c0_4, %c0_5] : memref<1x16xf32, #tpu.memory_space<vmem>>, vector<1x16xf32>
    %5 = vector.broadcast %4 : vector<1x16xf32> to vector<176x16xf32>
    %6 = arith.addf %3, %5 : vector<176x16xf32>
    %cst_6 = arith.constant 0.000000e+00 : f32
    %7 = vector.broadcast %cst_6 : f32 to vector<176x16xf32>
    %8 = arith.maximumf %6, %7 : vector<176x16xf32>
    %c0_7 = arith.constant 0 : index
    %c0_8 = arith.constant 0 : index
    %9 = vector.load %arg4[%c0_7, %c0_8] : memref<504x176xbf16, #tpu.memory_space<vmem>>, vector<504x176xbf16>
    %10 = arith.truncf %8 : vector<176x16xf32> to vector<176x16xbf16>
    %cst_9 = arith.constant dense<0.000000e+00> : vector<504x16xf32>
    %11 = tpu.matmul %9, %10, %cst_9 {dimension_numbers = #tpu.dot_dimension_numbers<[1], [0], [0], [1], [0, 0, 1, 1], [], []>} : vector<504x176xbf16>, vector<176x16xbf16>, vector<504x16xf32> -> vector<504x16xf32>
    %12 = vector.extract_strided_slice %11 {offsets = [0, 0], sizes = [56, 16], strides = [1, 1]} : vector<504x16xf32> to vector<56x16xf32>
    %13 = vector.extract_strided_slice %11 {offsets = [56, 0], sizes = [56, 16], strides = [1, 1]} : vector<504x16xf32> to vector<56x16xf32>
    %14 = vector.extract_strided_slice %11 {offsets = [112, 0], sizes = [56, 16], strides = [1, 1]} : vector<504x16xf32> to vector<56x16xf32>
    %15 = vector.extract_strided_slice %11 {offsets = [168, 0], sizes = [56, 16], strides = [1, 1]} : vector<504x16xf32> to vector<56x16xf32>
    %16 = vector.extract_strided_slice %11 {offsets = [224, 0], sizes = [56, 16], strides = [1, 1]} : vector<504x16xf32> to vector<56x16xf32>
    %17 = vector.extract_strided_slice %11 {offsets = [280, 0], sizes = [56, 16], strides = [1, 1]} : vector<504x16xf32> to vector<56x16xf32>
    %18 = vector.extract_strided_slice %11 {offsets = [336, 0], sizes = [56, 16], strides = [1, 1]} : vector<504x16xf32> to vector<56x16xf32>
    %19 = vector.extract_strided_slice %11 {offsets = [392, 0], sizes = [56, 16], strides = [1, 1]} : vector<504x16xf32> to vector<56x16xf32>
    %20 = vector.extract_strided_slice %11 {offsets = [448, 0], sizes = [56, 16], strides = [1, 1]} : vector<504x16xf32> to vector<56x16xf32>
    %21 = tpu.concatenate %12, %13, %14, %15, %16, %17, %18, %19, %20 in 1 : vector<56x16xf32>, vector<56x16xf32>, vector<56x16xf32>, vector<56x16xf32>, vector<56x16xf32>, vector<56x16xf32>, vector<56x16xf32>, vector<56x16xf32>, vector<56x16xf32> -> vector<56x144xf32>
    %22 = arith.truncf %21 : vector<56x144xf32> to vector<56x144xbf16>
    %c0_10 = arith.constant 0 : index
    %c0_11 = arith.constant 0 : index
    %23 = vector.load %arg5[%c0_10, %c0_11] : memref<144x32xbf16, #tpu.memory_space<vmem>>, vector<144x32xbf16>
    %cst_12 = arith.constant dense<0.000000e+00> : vector<56x32xf32>
    %24 = tpu.matmul %22, %23, %cst_12 {dimension_numbers = #tpu.dot_dimension_numbers<[1], [0], [0], [1], [0, 0, 1, 1], [], []>} : vector<56x144xbf16>, vector<144x32xbf16>, vector<56x32xf32> -> vector<56x32xf32>
    %c0_13 = arith.constant 0 : index
    %c0_14 = arith.constant 0 : index
    %25 = vector.load %arg6[%c0_13, %c0_14] : memref<1x32xf32, #tpu.memory_space<vmem>>, vector<1x32xf32>
    %26 = vector.broadcast %25 : vector<1x32xf32> to vector<56x32xf32>
    %27 = arith.addf %24, %26 : vector<56x32xf32>
    %cst_15 = arith.constant 0.000000e+00 : f32
    %28 = vector.broadcast %cst_15 : f32 to vector<56x32xf32>
    %29 = arith.maximumf %27, %28 : vector<56x32xf32>
    %cst_16 = arith.constant 0.000000e+00 : f32
    %30 = vector.broadcast %cst_16 : f32 to vector<8x32xf32>
    %31 = tpu.concatenate %30, %29, %30 in 0 : vector<8x32xf32>, vector<56x32xf32>, vector<8x32xf32> -> vector<72x32xf32>
    %c0_17 = arith.constant 0 : index
    %c0_18 = arith.constant 0 : index
    %c0_19 = arith.constant 0 : index
    %32 = vector.load %arg7[%c0_17, %c0_18, %c0_19] : memref<9x56x1xf32, #tpu.memory_space<vmem>>, vector<1x56x1xf32>
    %33 = vector.shape_cast %32 : vector<1x56x1xf32> to vector<56x1xf32>
    %34 = vector.extract_strided_slice %31 {offsets = [0, 0], sizes = [56, 32], strides = [1, 1]} : vector<72x32xf32> to vector<56x32xf32>
    %35 = vector.broadcast %33 : vector<56x1xf32> to vector<56x32xf32>
    %36 = arith.mulf %35, %34 : vector<56x32xf32>
    %c1 = arith.constant 1 : index
    %c0_20 = arith.constant 0 : index
    %c0_21 = arith.constant 0 : index
    %37 = vector.load %arg7[%c1, %c0_20, %c0_21] : memref<9x56x1xf32, #tpu.memory_space<vmem>>, vector<1x56x1xf32>
    %38 = vector.shape_cast %37 : vector<1x56x1xf32> to vector<56x1xf32>
    %39 = vector.extract_strided_slice %31 {offsets = [1, 0], sizes = [56, 32], strides = [1, 1]} : vector<72x32xf32> to vector<56x32xf32>
    %40 = vector.broadcast %38 : vector<56x1xf32> to vector<56x32xf32>
    %41 = arith.mulf %40, %39 : vector<56x32xf32>
    %c2 = arith.constant 2 : index
    %c0_22 = arith.constant 0 : index
    %c0_23 = arith.constant 0 : index
    %42 = vector.load %arg7[%c2, %c0_22, %c0_23] : memref<9x56x1xf32, #tpu.memory_space<vmem>>, vector<1x56x1xf32>
    %43 = vector.shape_cast %42 : vector<1x56x1xf32> to vector<56x1xf32>
    %44 = vector.extract_strided_slice %31 {offsets = [2, 0], sizes = [56, 32], strides = [1, 1]} : vector<72x32xf32> to vector<56x32xf32>
    %45 = vector.broadcast %43 : vector<56x1xf32> to vector<56x32xf32>
    %46 = arith.mulf %45, %44 : vector<56x32xf32>
    %c3 = arith.constant 3 : index
    %c0_24 = arith.constant 0 : index
    %c0_25 = arith.constant 0 : index
    %47 = vector.load %arg7[%c3, %c0_24, %c0_25] : memref<9x56x1xf32, #tpu.memory_space<vmem>>, vector<1x56x1xf32>
    %48 = vector.shape_cast %47 : vector<1x56x1xf32> to vector<56x1xf32>
    %49 = vector.extract_strided_slice %31 {offsets = [7, 0], sizes = [56, 32], strides = [1, 1]} : vector<72x32xf32> to vector<56x32xf32>
    %50 = vector.broadcast %48 : vector<56x1xf32> to vector<56x32xf32>
    %51 = arith.mulf %50, %49 : vector<56x32xf32>
    %c4 = arith.constant 4 : index
    %c0_26 = arith.constant 0 : index
    %c0_27 = arith.constant 0 : index
    %52 = vector.load %arg7[%c4, %c0_26, %c0_27] : memref<9x56x1xf32, #tpu.memory_space<vmem>>, vector<1x56x1xf32>
    %53 = vector.shape_cast %52 : vector<1x56x1xf32> to vector<56x1xf32>
    %54 = vector.extract_strided_slice %31 {offsets = [8, 0], sizes = [56, 32], strides = [1, 1]} : vector<72x32xf32> to vector<56x32xf32>
    %55 = vector.broadcast %53 : vector<56x1xf32> to vector<56x32xf32>
    %56 = arith.mulf %55, %54 : vector<56x32xf32>
    %c5 = arith.constant 5 : index
    %c0_28 = arith.constant 0 : index
    %c0_29 = arith.constant 0 : index
    %57 = vector.load %arg7[%c5, %c0_28, %c0_29] : memref<9x56x1xf32, #tpu.memory_space<vmem>>, vector<1x56x1xf32>
    %58 = vector.shape_cast %57 : vector<1x56x1xf32> to vector<56x1xf32>
    %59 = vector.extract_strided_slice %31 {offsets = [9, 0], sizes = [56, 32], strides = [1, 1]} : vector<72x32xf32> to vector<56x32xf32>
    %60 = vector.broadcast %58 : vector<56x1xf32> to vector<56x32xf32>
    %61 = arith.mulf %60, %59 : vector<56x32xf32>
    %c6 = arith.constant 6 : index
    %c0_30 = arith.constant 0 : index
    %c0_31 = arith.constant 0 : index
    %62 = vector.load %arg7[%c6, %c0_30, %c0_31] : memref<9x56x1xf32, #tpu.memory_space<vmem>>, vector<1x56x1xf32>
    %63 = vector.shape_cast %62 : vector<1x56x1xf32> to vector<56x1xf32>
    %64 = vector.extract_strided_slice %31 {offsets = [14, 0], sizes = [56, 32], strides = [1, 1]} : vector<72x32xf32> to vector<56x32xf32>
    %65 = vector.broadcast %63 : vector<56x1xf32> to vector<56x32xf32>
    %66 = arith.mulf %65, %64 : vector<56x32xf32>
    %c7 = arith.constant 7 : index
    %c0_32 = arith.constant 0 : index
    %c0_33 = arith.constant 0 : index
    %67 = vector.load %arg7[%c7, %c0_32, %c0_33] : memref<9x56x1xf32, #tpu.memory_space<vmem>>, vector<1x56x1xf32>
    %68 = vector.shape_cast %67 : vector<1x56x1xf32> to vector<56x1xf32>
    %69 = vector.extract_strided_slice %31 {offsets = [15, 0], sizes = [56, 32], strides = [1, 1]} : vector<72x32xf32> to vector<56x32xf32>
    %70 = vector.broadcast %68 : vector<56x1xf32> to vector<56x32xf32>
    %71 = arith.mulf %70, %69 : vector<56x32xf32>
    %c8 = arith.constant 8 : index
    %c0_34 = arith.constant 0 : index
    %c0_35 = arith.constant 0 : index
    %72 = vector.load %arg7[%c8, %c0_34, %c0_35] : memref<9x56x1xf32, #tpu.memory_space<vmem>>, vector<1x56x1xf32>
    %73 = vector.shape_cast %72 : vector<1x56x1xf32> to vector<56x1xf32>
    %74 = vector.extract_strided_slice %31 {offsets = [16, 0], sizes = [56, 32], strides = [1, 1]} : vector<72x32xf32> to vector<56x32xf32>
    %75 = vector.broadcast %73 : vector<56x1xf32> to vector<56x32xf32>
    %76 = arith.mulf %75, %74 : vector<56x32xf32>
    %77 = tpu.concatenate %36, %41, %46, %51, %56, %61, %66, %71, %76 in 1 : vector<56x32xf32>, vector<56x32xf32>, vector<56x32xf32>, vector<56x32xf32>, vector<56x32xf32>, vector<56x32xf32>, vector<56x32xf32>, vector<56x32xf32>, vector<56x32xf32> -> vector<56x288xf32>
    %78 = arith.truncf %77 : vector<56x288xf32> to vector<56x288xbf16>
    %c0_36 = arith.constant 0 : index
    %c0_37 = arith.constant 0 : index
    %79 = vector.load %arg8[%c0_36, %c0_37] : memref<288x64xbf16, #tpu.memory_space<vmem>>, vector<288x64xbf16>
    %cst_38 = arith.constant dense<0.000000e+00> : vector<56x64xf32>
    %80 = tpu.matmul %78, %79, %cst_38 {dimension_numbers = #tpu.dot_dimension_numbers<[1], [0], [0], [1], [0, 0, 1, 1], [], []>} : vector<56x288xbf16>, vector<288x64xbf16>, vector<56x64xf32> -> vector<56x64xf32>
    %c0_39 = arith.constant 0 : index
    %c0_40 = arith.constant 0 : index
    %81 = vector.load %arg9[%c0_39, %c0_40] : memref<1x64xf32, #tpu.memory_space<vmem>>, vector<1x64xf32>
    %82 = vector.broadcast %81 : vector<1x64xf32> to vector<56x64xf32>
    %83 = arith.addf %80, %82 : vector<56x64xf32>
    %cst_41 = arith.constant 0.000000e+00 : f32
    %84 = vector.broadcast %cst_41 : f32 to vector<56x64xf32>
    %85 = arith.maximumf %83, %84 : vector<56x64xf32>
    %cst_42 = arith.constant 0.000000e+00 : f32
    %86 = vector.broadcast %cst_42 : f32 to vector<16x64xf32>
    %87 = tpu.concatenate %85, %86 in 0 : vector<56x64xf32>, vector<16x64xf32> -> vector<72x64xf32>
    %88 = vector.extract_strided_slice %87 {offsets = [0, 0], sizes = [56, 64], strides = [1, 1]} : vector<72x64xf32> to vector<56x64xf32>
    %89 = vector.extract_strided_slice %87 {offsets = [1, 0], sizes = [56, 64], strides = [1, 1]} : vector<72x64xf32> to vector<56x64xf32>
    %90 = vector.extract_strided_slice %87 {offsets = [2, 0], sizes = [56, 64], strides = [1, 1]} : vector<72x64xf32> to vector<56x64xf32>
    %91 = vector.extract_strided_slice %87 {offsets = [7, 0], sizes = [56, 64], strides = [1, 1]} : vector<72x64xf32> to vector<56x64xf32>
    %92 = vector.extract_strided_slice %87 {offsets = [8, 0], sizes = [56, 64], strides = [1, 1]} : vector<72x64xf32> to vector<56x64xf32>
    %93 = vector.extract_strided_slice %87 {offsets = [9, 0], sizes = [56, 64], strides = [1, 1]} : vector<72x64xf32> to vector<56x64xf32>
    %94 = vector.extract_strided_slice %87 {offsets = [14, 0], sizes = [56, 64], strides = [1, 1]} : vector<72x64xf32> to vector<56x64xf32>
    %95 = vector.extract_strided_slice %87 {offsets = [15, 0], sizes = [56, 64], strides = [1, 1]} : vector<72x64xf32> to vector<56x64xf32>
    %96 = vector.extract_strided_slice %87 {offsets = [16, 0], sizes = [56, 64], strides = [1, 1]} : vector<72x64xf32> to vector<56x64xf32>
    %97 = tpu.concatenate %88, %89, %90, %91, %92, %93, %94, %95, %96 in 1 : vector<56x64xf32>, vector<56x64xf32>, vector<56x64xf32>, vector<56x64xf32>, vector<56x64xf32>, vector<56x64xf32>, vector<56x64xf32>, vector<56x64xf32>, vector<56x64xf32> -> vector<56x576xf32>
    %98 = arith.truncf %97 : vector<56x576xf32> to vector<56x576xbf16>
    %c0_43 = arith.constant 0 : index
    %c0_44 = arith.constant 0 : index
    %99 = vector.load %arg10[%c0_43, %c0_44] : memref<576x64xbf16, #tpu.memory_space<vmem>>, vector<576x64xbf16>
    %cst_45 = arith.constant dense<0.000000e+00> : vector<56x64xf32>
    %100 = tpu.matmul %98, %99, %cst_45 {dimension_numbers = #tpu.dot_dimension_numbers<[1], [0], [0], [1], [0, 0, 1, 1], [], []>} : vector<56x576xbf16>, vector<576x64xbf16>, vector<56x64xf32> -> vector<56x64xf32>
    %c0_46 = arith.constant 0 : index
    %c0_47 = arith.constant 0 : index
    %101 = vector.load %arg11[%c0_46, %c0_47] : memref<1x64xf32, #tpu.memory_space<vmem>>, vector<1x64xf32>
    %102 = vector.broadcast %101 : vector<1x64xf32> to vector<56x64xf32>
    %103 = arith.addf %100, %102 : vector<56x64xf32>
    %cst_48 = arith.constant 0.000000e+00 : f32
    %104 = vector.broadcast %cst_48 : f32 to vector<56x64xf32>
    %105 = arith.maximumf %103, %104 : vector<56x64xf32>
    %106 = vector.extract_strided_slice %105 {offsets = [0, 0], sizes = [1, 64], strides = [1, 1]} : vector<56x64xf32> to vector<1x64xf32>
    %107 = vector.extract_strided_slice %105 {offsets = [1, 0], sizes = [1, 64], strides = [1, 1]} : vector<56x64xf32> to vector<1x64xf32>
    %108 = vector.extract_strided_slice %105 {offsets = [2, 0], sizes = [1, 64], strides = [1, 1]} : vector<56x64xf32> to vector<1x64xf32>
    %109 = vector.extract_strided_slice %105 {offsets = [3, 0], sizes = [1, 64], strides = [1, 1]} : vector<56x64xf32> to vector<1x64xf32>
    %110 = vector.extract_strided_slice %105 {offsets = [4, 0], sizes = [1, 64], strides = [1, 1]} : vector<56x64xf32> to vector<1x64xf32>
    %111 = vector.extract_strided_slice %105 {offsets = [7, 0], sizes = [1, 64], strides = [1, 1]} : vector<56x64xf32> to vector<1x64xf32>
    %112 = vector.extract_strided_slice %105 {offsets = [8, 0], sizes = [1, 64], strides = [1, 1]} : vector<56x64xf32> to vector<1x64xf32>
    %113 = vector.extract_strided_slice %105 {offsets = [9, 0], sizes = [1, 64], strides = [1, 1]} : vector<56x64xf32> to vector<1x64xf32>
    %114 = vector.extract_strided_slice %105 {offsets = [10, 0], sizes = [1, 64], strides = [1, 1]} : vector<56x64xf32> to vector<1x64xf32>
    %115 = vector.extract_strided_slice %105 {offsets = [11, 0], sizes = [1, 64], strides = [1, 1]} : vector<56x64xf32> to vector<1x64xf32>
    %116 = vector.extract_strided_slice %105 {offsets = [14, 0], sizes = [1, 64], strides = [1, 1]} : vector<56x64xf32> to vector<1x64xf32>
    %117 = vector.extract_strided_slice %105 {offsets = [15, 0], sizes = [1, 64], strides = [1, 1]} : vector<56x64xf32> to vector<1x64xf32>
    %118 = vector.extract_strided_slice %105 {offsets = [16, 0], sizes = [1, 64], strides = [1, 1]} : vector<56x64xf32> to vector<1x64xf32>
    %119 = vector.extract_strided_slice %105 {offsets = [17, 0], sizes = [1, 64], strides = [1, 1]} : vector<56x64xf32> to vector<1x64xf32>
    %120 = vector.extract_strided_slice %105 {offsets = [18, 0], sizes = [1, 64], strides = [1, 1]} : vector<56x64xf32> to vector<1x64xf32>
    %121 = vector.extract_strided_slice %105 {offsets = [21, 0], sizes = [1, 64], strides = [1, 1]} : vector<56x64xf32> to vector<1x64xf32>
    %122 = vector.extract_strided_slice %105 {offsets = [22, 0], sizes = [1, 64], strides = [1, 1]} : vector<56x64xf32> to vector<1x64xf32>
    %123 = vector.extract_strided_slice %105 {offsets = [23, 0], sizes = [1, 64], strides = [1, 1]} : vector<56x64xf32> to vector<1x64xf32>
    %124 = vector.extract_strided_slice %105 {offsets = [24, 0], sizes = [1, 64], strides = [1, 1]} : vector<56x64xf32> to vector<1x64xf32>
    %125 = vector.extract_strided_slice %105 {offsets = [25, 0], sizes = [1, 64], strides = [1, 1]} : vector<56x64xf32> to vector<1x64xf32>
    %126 = vector.extract_strided_slice %105 {offsets = [28, 0], sizes = [1, 64], strides = [1, 1]} : vector<56x64xf32> to vector<1x64xf32>
    %127 = vector.extract_strided_slice %105 {offsets = [29, 0], sizes = [1, 64], strides = [1, 1]} : vector<56x64xf32> to vector<1x64xf32>
    %128 = vector.extract_strided_slice %105 {offsets = [30, 0], sizes = [1, 64], strides = [1, 1]} : vector<56x64xf32> to vector<1x64xf32>
    %129 = vector.extract_strided_slice %105 {offsets = [31, 0], sizes = [1, 64], strides = [1, 1]} : vector<56x64xf32> to vector<1x64xf32>
    %130 = vector.extract_strided_slice %105 {offsets = [32, 0], sizes = [1, 64], strides = [1, 1]} : vector<56x64xf32> to vector<1x64xf32>
    %131 = tpu.concatenate %106, %107, %108, %109, %110, %111, %112, %113, %114, %115, %116, %117, %118, %119, %120, %121 in 1 : vector<1x64xf32>, vector<1x64xf32>, vector<1x64xf32>, vector<1x64xf32>, vector<1x64xf32>, vector<1x64xf32>, vector<1x64xf32>, vector<1x64xf32>, vector<1x64xf32>, vector<1x64xf32>, vector<1x64xf32>, vector<1x64xf32>, vector<1x64xf32>, vector<1x64xf32>, vector<1x64xf32>, vector<1x64xf32> -> vector<1x1024xf32>
    %132 = tpu.concatenate %122, %123, %124, %125, %126, %127, %128, %129, %130 in 1 : vector<1x64xf32>, vector<1x64xf32>, vector<1x64xf32>, vector<1x64xf32>, vector<1x64xf32>, vector<1x64xf32>, vector<1x64xf32>, vector<1x64xf32>, vector<1x64xf32> -> vector<1x576xf32>
    %133 = tpu.concatenate %131, %132 in 1 : vector<1x1024xf32>, vector<1x576xf32> -> vector<1x1600xf32>
    %134 = arith.truncf %133 : vector<1x1600xf32> to vector<1x1600xbf16>
    %c0_49 = arith.constant 0 : index
    %c0_50 = arith.constant 0 : index
    %135 = vector.load %arg12[%c0_49, %c0_50] : memref<1600x128xbf16, #tpu.memory_space<vmem>>, vector<1600x128xbf16>
    %cst_51 = arith.constant dense<0.000000e+00> : vector<1x128xf32>
    %136 = tpu.matmul %134, %135, %cst_51 {dimension_numbers = #tpu.dot_dimension_numbers<[1], [0], [0], [1], [0, 0, 1, 1], [], []>} : vector<1x1600xbf16>, vector<1600x128xbf16>, vector<1x128xf32> -> vector<1x128xf32>
    %c0_52 = arith.constant 0 : index
    %c0_53 = arith.constant 0 : index
    %137 = vector.load %arg13[%c0_52, %c0_53] : memref<1x128xf32, #tpu.memory_space<vmem>>, vector<1x128xf32>
    %138 = arith.addf %136, %137 : vector<1x128xf32>
    %cst_54 = arith.constant 0.000000e+00 : f32
    %139 = vector.broadcast %cst_54 : f32 to vector<1x128xf32>
    %140 = arith.maximumf %138, %139 : vector<1x128xf32>
    %141 = arith.truncf %140 : vector<1x128xf32> to vector<1x128xbf16>
    %c0_55 = arith.constant 0 : index
    %c0_56 = arith.constant 0 : index
    %142 = vector.load %arg14[%c0_55, %c0_56] : memref<128x10xbf16, #tpu.memory_space<vmem>>, vector<128x10xbf16>
    %cst_57 = arith.constant dense<0.000000e+00> : vector<1x10xf32>
    %143 = tpu.matmul %141, %142, %cst_57 {dimension_numbers = #tpu.dot_dimension_numbers<[1], [0], [0], [1], [0, 0, 1, 1], [], []>} : vector<1x128xbf16>, vector<128x10xbf16>, vector<1x10xf32> -> vector<1x10xf32>
    %c0_58 = arith.constant 0 : index
    %c0_59 = arith.constant 0 : index
    %144 = vector.load %arg15[%c0_58, %c0_59] : memref<1x10xf32, #tpu.memory_space<vmem>>, vector<1x10xf32>
    %145 = arith.addf %143, %144 : vector<1x10xf32>
    %c0_60 = arith.constant 0 : index
    %c0_61 = arith.constant 0 : index
    %c0_62 = arith.constant 0 : index
    %146 = vector.load %arg16[%c0_60, %c0_61, %c0_62] : memref<1x1x10xf32, #tpu.memory_space<vmem>>, vector<1x1x10xf32>
    %147 = vector.shape_cast %146 : vector<1x1x10xf32> to vector<1x10xf32>
    %148 = vector.shape_cast %145 : vector<1x10xf32> to vector<1x1x10xf32>
    tpu.vector_store %arg16[%c0_60, %c0_61, %c0_62], %148 {strides = array<i32>} : memref<1x1x10xf32, #tpu.memory_space<vmem>>, vector<1x1x10xf32>,
    return
  }
  func.func @transform_0(%arg0: i32) -> (i32, i32, i32) {
    %c0_i32 = arith.constant 0 : i32
    %c0_i32_0 = arith.constant 0 : i32
    %c0_i32_1 = arith.constant 0 : i32
    return %arg0, %c0_i32, %c0_i32_0 : i32, i32, i32
  }
  func.func @transform_1(%arg0: i32) -> (i32, i32) {
    %c0_i32 = arith.constant 0 : i32
    %c0_i32_0 = arith.constant 0 : i32
    %c0_i32_1 = arith.constant 0 : i32
    return %c0_i32, %c0_i32_0 : i32, i32
  }
  func.func @transform_2(%arg0: i32) -> (i32, i32) {
    %c0_i32 = arith.constant 0 : i32
    %c0_i32_0 = arith.constant 0 : i32
    %c0_i32_1 = arith.constant 0 : i32
    return %c0_i32, %c0_i32_0 : i32, i32
  }
  func.func @transform_3(%arg0: i32) -> (i32, i32) {
    %c0_i32 = arith.constant 0 : i32
    %c0_i32_0 = arith.constant 0 : i32
    %c0_i32_1 = arith.constant 0 : i32
    return %c0_i32, %c0_i32_0 : i32, i32
  }
  func.func @transform_4(%arg0: i32) -> (i32, i32) {
    %c0_i32 = arith.constant 0 : i32
    %c0_i32_0 = arith.constant 0 : i32
    %c0_i32_1 = arith.constant 0 : i32
    return %c0_i32, %c0_i32_0 : i32, i32
  }
  func.func @transform_5(%arg0: i32) -> (i32, i32) {
    %c0_i32 = arith.constant 0 : i32
    %c0_i32_0 = arith.constant 0 : i32
    %c0_i32_1 = arith.constant 0 : i32
    return %c0_i32, %c0_i32_0 : i32, i32
  }
  func.func @transform_6(%arg0: i32) -> (i32, i32, i32) {
    %c0_i32 = arith.constant 0 : i32
    %c0_i32_0 = arith.constant 0 : i32
    %c0_i32_1 = arith.constant 0 : i32
    %c0_i32_2 = arith.constant 0 : i32
    return %c0_i32, %c0_i32_0, %c0_i32_1 : i32, i32, i32
  }
  func.func @transform_7(%arg0: i32) -> (i32, i32) {
    %c0_i32 = arith.constant 0 : i32
    %c0_i32_0 = arith.constant 0 : i32
    %c0_i32_1 = arith.constant 0 : i32
    return %c0_i32, %c0_i32_0 : i32, i32
  }
  func.func @transform_8(%arg0: i32) -> (i32, i32) {
    %c0_i32 = arith.constant 0 : i32
    %c0_i32_0 = arith.constant 0 : i32
    %c0_i32_1 = arith.constant 0 : i32
    return %c0_i32, %c0_i32_0 : i32, i32
  }
  func.func @transform_9(%arg0: i32) -> (i32, i32) {
    %c0_i32 = arith.constant 0 : i32
    %c0_i32_0 = arith.constant 0 : i32
    %c0_i32_1 = arith.constant 0 : i32
    return %c0_i32, %c0_i32_0 : i32, i32
  }
  func.func @transform_10(%arg0: i32) -> (i32, i32) {
    %c0_i32 = arith.constant 0 : i32
    %c0_i32_0 = arith.constant 0 : i32
    %c0_i32_1 = arith.constant 0 : i32
    return %c0_i32, %c0_i32_0 : i32, i32
  }
  func.func @transform_11(%arg0: i32) -> (i32, i32) {
    %c0_i32 = arith.constant 0 : i32
    %c0_i32_0 = arith.constant 0 : i32
    %c0_i32_1 = arith.constant 0 : i32
    return %c0_i32, %c0_i32_0 : i32, i32
  }
  func.func @transform_12(%arg0: i32) -> (i32, i32) {
    %c0_i32 = arith.constant 0 : i32
    %c0_i32_0 = arith.constant 0 : i32
    %c0_i32_1 = arith.constant 0 : i32
    return %c0_i32, %c0_i32_0 : i32, i32
  }
  func.func @transform_13(%arg0: i32) -> (i32, i32) {
    %c0_i32 = arith.constant 0 : i32
    %c0_i32_0 = arith.constant 0 : i32
    %c0_i32_1 = arith.constant 0 : i32
    return %c0_i32, %c0_i32_0 : i32, i32
  }
  func.func @transform_14(%arg0: i32) -> (i32, i32) {
    %c0_i32 = arith.constant 0 : i32
    %c0_i32_0 = arith.constant 0 : i32
    %c0_i32_1 = arith.constant 0 : i32
    return %c0_i32, %c0_i32_0 : i32, i32
  }
  func.func @transform_15(%arg0: i32) -> (i32, i32, i32) {
    %c0_i32 = arith.constant 0 : i32
    %c0_i32_0 = arith.constant 0 : i32
    %c0_i32_1 = arith.constant 0 : i32
    return %arg0, %c0_i32, %c0_i32_0 : i32, i32, i32
  }
}

</mosaic_0001>

<llo_original>
// kernel: fused_forward.1
$region0: #{fused_forward.1}
  #allocation0 [shape = 'u32[]', space=smem, size = 0x4, offset = 0x4, fixed_abs, tag = 'smem constant byte address 0x4 - core index']
  #allocation1 [shape = 'u32[144,128]{1,0:T(1,128)}', space=vmem, size = 0x12000, scoped, tag = 'internal scratch']
  %s0 = inlined_call_operand.vmem [shape: bf16[2,176,36], index: 0, kind: input, shape index: {}]
  %s1 = inlined_call_operand.vmem [shape: bf16[36,16], index: 1, kind: input, shape index: {}]
  %s2 = inlined_call_operand.vmem [shape: f32[1,16], index: 2, kind: input, shape index: {}]
  %s3 = inlined_call_operand.vmem [shape: bf16[504,176], index: 3, kind: input, shape index: {}]
  %s4 = inlined_call_operand.vmem [shape: bf16[144,32], index: 4, kind: input, shape index: {}]
  %s5 = inlined_call_operand.vmem [shape: f32[1,32], index: 5, kind: input, shape index: {}]
  %s6 = inlined_call_operand.vmem [shape: f32[9,56,1], index: 6, kind: input, shape index: {}]
  %s7 = inlined_call_operand.vmem [shape: bf16[288,64], index: 7, kind: input, shape index: {}]
  %s8 = inlined_call_operand.vmem [shape: f32[1,64], index: 8, kind: input, shape index: {}]
  %s9 = inlined_call_operand.vmem [shape: bf16[576,64], index: 9, kind: input, shape index: {}]
  %s10 = inlined_call_operand.vmem [shape: f32[1,64], index: 10, kind: input, shape index: {}]
  %s11 = inlined_call_operand.vmem [shape: bf16[1600,128], index: 11, kind: input, shape index: {}]
  %s12 = inlined_call_operand.vmem [shape: f32[1,128], index: 12, kind: input, shape index: {}]
  %s13 = inlined_call_operand.vmem [shape: bf16[128,10], index: 13, kind: input, shape index: {}]
  %s14 = inlined_call_operand.vmem [shape: f32[1,10], index: 14, kind: input, shape index: {}]
  %s15 = inlined_call_operand.hbm [shape: f32[2,1,10], index: 15, kind: output, shape index: {}]
  %s16 = sld [smem:[#allocation0]]
  $region93: #{fused_forward.1} parent=0
    _
  %s18 = ssub.s32 1, %s16
  %s19 = scalar_select 0, %s18, %s16
  $region1: #{fused_forward.1} parent=0
    #allocation2 [shape = 'u8[1024]{0}', space=vmem, size = 0x400, scoped, tag = 'output window, operand 0']
    #allocation3 [shape = 's32[2]{0}', space=sflag, size = 0x8, scoped, tag = 'scoped memory for fused_forward.1']
    %20 = vsyncpa [#allocation3], 0
    %s21 = scalar_lea.sflag [#allocation3], 1
    %22 = vsyncpa %s21, 0
    loop: start=0, step=1, limit=4
    $region2: #{fused_forward.1} parent=1 // loop_pre_header
      _
    $region3: #{fused_forward.1} parent=1 // loop_header
      %s24 = sphi 0, %s28
      %p25 = scmp.ge.s32.totalorder %s24, 4
      %s34 = sphi 0, %s36
      %s37 = sphi 0, %s34
      %s38 = sphi 0, %s37
      %s54 = sphi 0, %s38
      %s58 = sphi 0, %s58
      %s60 = sphi 0, %s58
      %s61 = sphi 0, %s60
      %s75 = sphi 0, %s61
      %s79 = sphi 0, %s79
      %s81 = sphi 0, %s79
      %s82 = sphi 0, %s81
      %s96 = sphi 0, %s82
      %s100 = sphi 0, %s100
      %s102 = sphi 0, %s100
      %s103 = sphi 0, %s102
      %s117 = sphi 0, %s103
      %s121 = sphi 0, %s121
      %s123 = sphi 0, %s121
      %s124 = sphi 0, %s123
      %s138 = sphi 0, %s124
      %s142 = sphi 0, %s142
      %s144 = sphi 0, %s142
      %s145 = sphi 0, %s144
      %s159 = sphi 0, %s145
      %s163 = sphi 0, %s163
      %s165 = sphi 0, %s163
      %s166 = sphi 0, %s165
      %s180 = sphi 0, %s166
      %s184 = sphi 0, %s184
      %s186 = sphi 0, %s184
      %s187 = sphi 0, %s186
      %s201 = sphi 0, %s187
      %s205 = sphi 0, %s205
      %s207 = sphi 0, %s205
      %s208 = sphi 0, %s207
      %s222 = sphi 0, %s208
      %s226 = sphi 0, %s226
      %s228 = sphi 0, %s226
      %s229 = sphi 0, %s228
      %s243 = sphi 0, %s229
      %s247 = sphi 0, %s247
      %s249 = sphi 0, %s247
      %s250 = sphi 0, %s249
      %s264 = sphi 0, %s250
      %s268 = sphi 0, %s268
      %s270 = sphi 0, %s268
      %s271 = sphi 0, %s270
      %s285 = sphi 0, %s271
      %s289 = sphi 0, %s289
      %s291 = sphi 0, %s289
      %s292 = sphi 0, %s291
      %s306 = sphi 0, %s292
      %s310 = sphi 0, %s310
      %s312 = sphi 0, %s310
      %s313 = sphi 0, %s312
      %s327 = sphi 0, %s313
      %s331 = sphi 0, %s331
      %s333 = sphi 0, %s331
      %s334 = sphi 0, %s333
      %s348 = sphi 0, %s334
      %s354 = sphi 0, %s356
      %s357 = sphi 0, %s354
      %s358 = sphi 0, %s357
      %s374 = sphi 0, %s358
    $region4: #{fused_forward.1} parent=1 // loop_header_branch
      %27 = sbr.rel (%p25) target = $region8
    $region5: #{fused_forward.1} parent=1 // loop_body
      %s29 = ssub.s32 %s24, 1
      %s30 = ssub.s32 %s24, 2
      %s31 = sadd.s32 %s24, 1
      %s32 = ssub.s32 %s24, %s31
      %p33 = scmp.eq.s32.totalorder %s32, 0
      %s35 = sadd.s32 %s34, 1
      %s36 = scalar_select %p33, %s34, %s35
      %p39 = pneg %p33
      %p40 = scmp.eq.s32.totalorder %s24, 1
      %p41 = por %p39, %p40
      %p42 = scmp.ne.s32.totalorder %s34, %s37
      %p43 = scmp.eq.s32.totalorder %s24, 0
      %p44 = por %p42, %p43
      %p45 = scmp.ne.s32.totalorder %s34, %s37
      %p46 = scmp.eq.s32.totalorder %s29, 1
      %p47 = por %p45, %p46
      %p48 = scmp.ne.s32.totalorder %s37, %s38
      %p49 = scmp.eq.s32.totalorder %s29, 0
      %p50 = por %p48, %p49
      %p51 = scmp.ne.s32.totalorder %s37, %s38
      %p52 = scmp.eq.s32.totalorder %s30, 1
      %p53 = por %p51, %p52
      %p55 = scmp.ne.s32.totalorder %s38, %s54
      %p56 = scmp.eq.s32.totalorder %s30, 0
      %p57 = por %p55, %p56
      %s59 = sadd.s32 %s58, 1
      %p62 = scmp.eq.s32.totalorder %s24, 1
      %p63 = scmp.ne.s32.totalorder %s58, %s60
      %p64 = scmp.eq.s32.totalorder %s24, 0
      %p65 = por %p63, %p64
      %p66 = scmp.ne.s32.totalorder %s58, %s60
      %p67 = scmp.eq.s32.totalorder %s29, 1
      %p68 = por %p66, %p67
      %p69 = scmp.ne.s32.totalorder %s60, %s61
      %p70 = scmp.eq.s32.totalorder %s29, 0
      %p71 = por %p69, %p70
      %p72 = scmp.ne.s32.totalorder %s60, %s61
      %p73 = scmp.eq.s32.totalorder %s30, 1
      %p74 = por %p72, %p73
      %p76 = scmp.ne.s32.totalorder %s61, %s75
      %p77 = scmp.eq.s32.totalorder %s30, 0
      %p78 = por %p76, %p77
      %s80 = sadd.s32 %s79, 1
      %p83 = scmp.eq.s32.totalorder %s24, 1
      %p84 = scmp.ne.s32.totalorder %s79, %s81
      %p85 = scmp.eq.s32.totalorder %s24, 0
      %p86 = por %p84, %p85
      %p87 = scmp.ne.s32.totalorder %s79, %s81
      %p88 = scmp.eq.s32.totalorder %s29, 1
      %p89 = por %p87, %p88
      %p90 = scmp.ne.s32.totalorder %s81, %s82
      %p91 = scmp.eq.s32.totalorder %s29, 0
      %p92 = por %p90, %p91
      %p93 = scmp.ne.s32.totalorder %s81, %s82
      %p94 = scmp.eq.s32.totalorder %s30, 1
      %p95 = por %p93, %p94
      %p97 = scmp.ne.s32.totalorder %s82, %s96
      %p98 = scmp.eq.s32.totalorder %s30, 0
      %p99 = por %p97, %p98
      %s101 = sadd.s32 %s100, 1
      %p104 = scmp.eq.s32.totalorder %s24, 1
      %p105 = scmp.ne.s32.totalorder %s100, %s102
      %p106 = scmp.eq.s32.totalorder %s24, 0
      %p107 = por %p105, %p106
      %p108 = scmp.ne.s32.totalorder %s100, %s102
      %p109 = scmp.eq.s32.totalorder %s29, 1
      %p110 = por %p108, %p109
      %p111 = scmp.ne.s32.totalorder %s102, %s103
      %p112 = scmp.eq.s32.totalorder %s29, 0
      %p113 = por %p111, %p112
      %p114 = scmp.ne.s32.totalorder %s102, %s103
      %p115 = scmp.eq.s32.totalorder %s30, 1
      %p116 = por %p114, %p115
      %p118 = scmp.ne.s32.totalorder %s103, %s117
      %p119 = scmp.eq.s32.totalorder %s30, 0
      %p120 = por %p118, %p119
      %s122 = sadd.s32 %s121, 1
      %p125 = scmp.eq.s32.totalorder %s24, 1
      %p126 = scmp.ne.s32.totalorder %s121, %s123
      %p127 = scmp.eq.s32.totalorder %s24, 0
      %p128 = por %p126, %p127
      %p129 = scmp.ne.s32.totalorder %s121, %s123
      %p130 = scmp.eq.s32.totalorder %s29, 1
      %p131 = por %p129, %p130
      %p132 = scmp.ne.s32.totalorder %s123, %s124
      %p133 = scmp.eq.s32.totalorder %s29, 0
      %p134 = por %p132, %p133
      %p135 = scmp.ne.s32.totalorder %s123, %s124
      %p136 = scmp.eq.s32.totalorder %s30, 1
      %p137 = por %p135, %p136
      %p139 = scmp.ne.s32.totalorder %s124, %s138
      %p140 = scmp.eq.s32.totalorder %s30, 0
      %p141 = por %p139, %p140
      %s143 = sadd.s32 %s142, 1
      %p146 = scmp.eq.s32.totalorder %s24, 1
      %p147 = scmp.ne.s32.totalorder %s142, %s144
      %p148 = scmp.eq.s32.totalorder %s24, 0
      %p149 = por %p147, %p148
      %p150 = scmp.ne.s32.totalorder %s142, %s144
      %p151 = scmp.eq.s32.totalorder %s29, 1
      %p152 = por %p150, %p151
      %p153 = scmp.ne.s32.totalorder %s144, %s145
      %p154 = scmp.eq.s32.totalorder %s29, 0
      %p155 = por %p153, %p154
      %p156 = scmp.ne.s32.totalorder %s144, %s145
      %p157 = scmp.eq.s32.totalorder %s30, 1
      %p158 = por %p156, %p157
      %p160 = scmp.ne.s32.totalorder %s145, %s159
      %p161 = scmp.eq.s32.totalorder %s30, 0
      %p162 = por %p160, %p161
      %s164 = sadd.s32 %s163, 1
      %p167 = scmp.eq.s32.totalorder %s24, 1
      %p168 = scmp.ne.s32.totalorder %s163, %s165
      %p169 = scmp.eq.s32.totalorder %s24, 0
      %p170 = por %p168, %p169
      %p171 = scmp.ne.s32.totalorder %s163, %s165
      %p172 = scmp.eq.s32.totalorder %s29, 1
      %p173 = por %p171, %p172
      %p174 = scmp.ne.s32.totalorder %s165, %s166
      %p175 = scmp.eq.s32.totalorder %s29, 0
      %p176 = por %p174, %p175
      %p177 = scmp.ne.s32.totalorder %s165, %s166
      %p178 = scmp.eq.s32.totalorder %s30, 1
      %p179 = por %p177, %p178
      %p181 = scmp.ne.s32.totalorder %s166, %s180
      %p182 = scmp.eq.s32.totalorder %s30, 0
      %p183 = por %p181, %p182
      %s185 = sadd.s32 %s184, 1
      %p188 = scmp.eq.s32.totalorder %s24, 1
      %p189 = scmp.ne.s32.totalorder %s184, %s186
      %p190 = scmp.eq.s32.totalorder %s24, 0
      %p191 = por %p189, %p190
      %p192 = scmp.ne.s32.totalorder %s184, %s186
      %p193 = scmp.eq.s32.totalorder %s29, 1
      %p194 = por %p192, %p193
      %p195 = scmp.ne.s32.totalorder %s186, %s187
      %p196 = scmp.eq.s32.totalorder %s29, 0
      %p197 = por %p195, %p196
      %p198 = scmp.ne.s32.totalorder %s186, %s187
      %p199 = scmp.eq.s32.totalorder %s30, 1
      %p200 = por %p198, %p199
      %p202 = scmp.ne.s32.totalorder %s187, %s201
      %p203 = scmp.eq.s32.totalorder %s30, 0
      %p204 = por %p202, %p203
      %s206 = sadd.s32 %s205, 1
      %p209 = scmp.eq.s32.totalorder %s24, 1
      %p210 = scmp.ne.s32.totalorder %s205, %s207
      %p211 = scmp.eq.s32.totalorder %s24, 0
      %p212 = por %p210, %p211
      %p213 = scmp.ne.s32.totalorder %s205, %s207
      %p214 = scmp.eq.s32.totalorder %s29, 1
      %p215 = por %p213, %p214
      %p216 = scmp.ne.s32.totalorder %s207, %s208
      %p217 = scmp.eq.s32.totalorder %s29, 0
      %p218 = por %p216, %p217
      %p219 = scmp.ne.s32.totalorder %s207, %s208
      %p220 = scmp.eq.s32.totalorder %s30, 1
      %p221 = por %p219, %p220
      %p223 = scmp.ne.s32.totalorder %s208, %s222
      %p224 = scmp.eq.s32.totalorder %s30, 0
      %p225 = por %p223, %p224
      %s227 = sadd.s32 %s226, 1
      %p230 = scmp.eq.s32.totalorder %s24, 1
      %p231 = scmp.ne.s32.totalorder %s226, %s228
      %p232 = scmp.eq.s32.totalorder %s24, 0
      %p233 = por %p231, %p232
      %p234 = scmp.ne.s32.totalorder %s226, %s228
      %p235 = scmp.eq.s32.totalorder %s29, 1
      %p236 = por %p234, %p235
      %p237 = scmp.ne.s32.totalorder %s228, %s229
      %p238 = scmp.eq.s32.totalorder %s29, 0
      %p239 = por %p237, %p238
      %p240 = scmp.ne.s32.totalorder %s228, %s229
      %p241 = scmp.eq.s32.totalorder %s30, 1
      %p242 = por %p240, %p241
      %p244 = scmp.ne.s32.totalorder %s229, %s243
      %p245 = scmp.eq.s32.totalorder %s30, 0
      %p246 = por %p244, %p245
      %s248 = sadd.s32 %s247, 1
      %p251 = scmp.eq.s32.totalorder %s24, 1
      %p252 = scmp.ne.s32.totalorder %s247, %s249
      %p253 = scmp.eq.s32.totalorder %s24, 0
      %p254 = por %p252, %p253
      %p255 = scmp.ne.s32.totalorder %s247, %s249
      %p256 = scmp.eq.s32.totalorder %s29, 1
      %p257 = por %p255, %p256
      %p258 = scmp.ne.s32.totalorder %s249, %s250
      %p259 = scmp.eq.s32.totalorder %s29, 0
      %p260 = por %p258, %p259
      %p261 = scmp.ne.s32.totalorder %s249, %s250
      %p262 = scmp.eq.s32.totalorder %s30, 1
      %p263 = por %p261, %p262
      %p265 = scmp.ne.s32.totalorder %s250, %s264
      %p266 = scmp.eq.s32.totalorder %s30, 0
      %p267 = por %p265, %p266
      %s269 = sadd.s32 %s268, 1
      %p272 = scmp.eq.s32.totalorder %s24, 1
      %p273 = scmp.ne.s32.totalorder %s268, %s270
      %p274 = scmp.eq.s32.totalorder %s24, 0
      %p275 = por %p273, %p274
      %p276 = scmp.ne.s32.totalorder %s268, %s270
      %p277 = scmp.eq.s32.totalorder %s29, 1
      %p278 = por %p276, %p277
      %p279 = scmp.ne.s32.totalorder %s270, %s271
      %p280 = scmp.eq.s32.totalorder %s29, 0
      %p281 = por %p279, %p280
      %p282 = scmp.ne.s32.totalorder %s270, %s271
      %p283 = scmp.eq.s32.totalorder %s30, 1
      %p284 = por %p282, %p283
      %p286 = scmp.ne.s32.totalorder %s271, %s285
      %p287 = scmp.eq.s32.totalorder %s30, 0
      %p288 = por %p286, %p287
      %s290 = sadd.s32 %s289, 1
      %p293 = scmp.eq.s32.totalorder %s24, 1
      %p294 = scmp.ne.s32.totalorder %s289, %s291
      %p295 = scmp.eq.s32.totalorder %s24, 0
      %p296 = por %p294, %p295
      %p297 = scmp.ne.s32.totalorder %s289, %s291
      %p298 = scmp.eq.s32.totalorder %s29, 1
      %p299 = por %p297, %p298
      %p300 = scmp.ne.s32.totalorder %s291, %s292
      %p301 = scmp.eq.s32.totalorder %s29, 0
      %p302 = por %p300, %p301
      %p303 = scmp.ne.s32.totalorder %s291, %s292
      %p304 = scmp.eq.s32.totalorder %s30, 1
      %p305 = por %p303, %p304
      %p307 = scmp.ne.s32.totalorder %s292, %s306
      %p308 = scmp.eq.s32.totalorder %s30, 0
      %p309 = por %p307, %p308
      %s311 = sadd.s32 %s310, 1
      %p314 = scmp.eq.s32.totalorder %s24, 1
      %p315 = scmp.ne.s32.totalorder %s310, %s312
      %p316 = scmp.eq.s32.totalorder %s24, 0
      %p317 = por %p315, %p316
      %p318 = scmp.ne.s32.totalorder %s310, %s312
      %p319 = scmp.eq.s32.totalorder %s29, 1
      %p320 = por %p318, %p319
      %p321 = scmp.ne.s32.totalorder %s312, %s313
      %p322 = scmp.eq.s32.totalorder %s29, 0
      %p323 = por %p321, %p322
      %p324 = scmp.ne.s32.totalorder %s312, %s313
      %p325 = scmp.eq.s32.totalorder %s30, 1
      %p326 = por %p324, %p325
      %p328 = scmp.ne.s32.totalorder %s313, %s327
      %p329 = scmp.eq.s32.totalorder %s30, 0
      %p330 = por %p328, %p329
      %s332 = sadd.s32 %s331, 1
      %p335 = scmp.eq.s32.totalorder %s24, 1
      %p336 = scmp.ne.s32.totalorder %s331, %s333
      %p337 = scmp.eq.s32.totalorder %s24, 0
      %p338 = por %p336, %p337
      %p339 = scmp.ne.s32.totalorder %s331, %s333
      %p340 = scmp.eq.s32.totalorder %s29, 1
      %p341 = por %p339, %p340
      %p342 = scmp.ne.s32.totalorder %s333, %s334
      %p343 = scmp.eq.s32.totalorder %s29, 0
      %p344 = por %p342, %p343
      %p345 = scmp.ne.s32.totalorder %s333, %s334
      %p346 = scmp.eq.s32.totalorder %s30, 1
      %p347 = por %p345, %p346
      %p349 = scmp.ne.s32.totalorder %s334, %s348
      %p350 = scmp.eq.s32.totalorder %s30, 0
      %p351 = por %p349, %p350
      %s352 = ssub.s32 %s24, %s31
      %p353 = scmp.eq.s32.totalorder %s352, 0
      %s355 = sadd.s32 %s354, 1
      %s356 = scalar_select %p353, %s354, %s355
      %p359 = pneg %p353
      %p360 = scmp.eq.s32.totalorder %s24, 1
      %p361 = por %p359, %p360
      %p362 = scmp.ne.s32.totalorder %s354, %s357
      %p363 = scmp.eq.s32.totalorder %s24, 0
      %p364 = por %p362, %p363
      %p365 = scmp.ne.s32.totalorder %s354, %s357
      %p366 = scmp.eq.s32.totalorder %s29, 1
      %p367 = por %p365, %p366
      %p368 = scmp.ne.s32.totalorder %s357, %s358
      %p369 = scmp.eq.s32.totalorder %s29, 0
      %p370 = por %p368, %p369
      %p371 = scmp.ne.s32.totalorder %s357, %s358
      %p372 = scmp.eq.s32.totalorder %s30, 1
      %p373 = por %p371, %p372
      %p375 = scmp.ne.s32.totalorder %s358, %s374
      %p376 = scmp.eq.s32.totalorder %s30, 0
      %p377 = por %p375, %p376
      %p378 = scmp.le.s32.totalorder 1, %s24
      %p379 = scmp.lt.s32.totalorder %s24, 3
      %p380 = pnand %p378, %p379
      %p381 = pneg %p380
      // Predicated region
      $region9: #{fused_forward.1} parent=5 // pred_check
        _
      $region10: #{fused_forward.1} parent=5 // pred_check_branch
        %383 = sbr.rel (%p380) target = $region12
      $region11: #{fused_forward.1} parent=5 // pred_region
        %s384 = ssub.s32 %s24, 1
        // Predicated region
        $region13: #{fused_forward.1} parent=11 // pred_check
          %p385 = pneg %p71
        $region14: #{fused_forward.1} parent=11 // pred_check_branch
          %387 = sbr.rel (%p385) target = $region16
        $region15: #{fused_forward.1} parent=11 // pred_region
          _
        $region16: #{fused_forward.1} parent=11 // pred_fallthru
          _
        // Predicated region
        $region17: #{fused_forward.1} parent=11 // pred_check
          %p388 = pneg %p92
        $region18: #{fused_forward.1} parent=11 // pred_check_branch
          %390 = sbr.rel (%p388) target = $region20
        $region19: #{fused_forward.1} parent=11 // pred_region
          _
        $region20: #{fused_forward.1} parent=11 // pred_fallthru
          _
        // Predicated region
        $region21: #{fused_forward.1} parent=11 // pred_check
          %p391 = pneg %p113
        $region22: #{fused_forward.1} parent=11 // pred_check_branch
          %393 = sbr.rel (%p391) target = $region24
        $region23: #{fused_forward.1} parent=11 // pred_region
          _
        $region24: #{fused_forward.1} parent=11 // pred_fallthru
          _
        // Predicated region
        $region25: #{fused_forward.1} parent=11 // pred_check
          %p394 = pneg %p134
        $region26: #{fused_forward.1} parent=11 // pred_check_branch
          %396 = sbr.rel (%p394) target = $region28
        $region27: #{fused_forward.1} parent=11 // pred_region
          _
        $region28: #{fused_forward.1} parent=11 // pred_fallthru
          _
        // Predicated region
        $region29: #{fused_forward.1} parent=11 // pred_check
          %p397 = pneg %p155
        $region30: #{fused_forward.1} parent=11 // pred_check_branch
          %399 = sbr.rel (%p397) target = $region32
        $region31: #{fused_forward.1} parent=11 // pred_region
          _
        $region32: #{fused_forward.1} parent=11 // pred_fallthru
          _
        // Predicated region
        $region33: #{fused_forward.1} parent=11 // pred_check
          %p400 = pneg %p176
        $region34: #{fused_forward.1} parent=11 // pred_check_branch
          %402 = sbr.rel (%p400) target = $region36
        $region35: #{fused_forward.1} parent=11 // pred_region
          _
        $region36: #{fused_forward.1} parent=11 // pred_fallthru
          _
        // Predicated region
        $region37: #{fused_forward.1} parent=11 // pred_check
          %p403 = pneg %p197
        $region38: #{fused_forward.1} parent=11 // pred_check_branch
          %405 = sbr.rel (%p403) target = $region40
        $region39: #{fused_forward.1} parent=11 // pred_region
          _
        $region40: #{fused_forward.1} parent=11 // pred_fallthru
          _
        // Predicated region
        $region41: #{fused_forward.1} parent=11 // pred_check
          %p406 = pneg %p218
        $region42: #{fused_forward.1} parent=11 // pred_check_branch
          %408 = sbr.rel (%p406) target = $region44
        $region43: #{fused_forward.1} parent=11 // pred_region
          _
        $region44: #{fused_forward.1} parent=11 // pred_fallthru
          _
        // Predicated region
        $region45: #{fused_forward.1} parent=11 // pred_check
          %p409 = pneg %p239
        $region46: #{fused_forward.1} parent=11 // pred_check_branch
          %411 = sbr.rel (%p409) target = $region48
        $region47: #{fused_forward.1} parent=11 // pred_region
          _
        $region48: #{fused_forward.1} parent=11 // pred_fallthru
          _
        // Predicated region
        $region49: #{fused_forward.1} parent=11 // pred_check
          %p412 = pneg %p260
        $region50: #{fused_forward.1} parent=11 // pred_check_branch
          %414 = sbr.rel (%p412) target = $region52
        $region51: #{fused_forward.1} parent=11 // pred_region
          _
        $region52: #{fused_forward.1} parent=11 // pred_fallthru
          _
        // Predicated region
        $region53: #{fused_forward.1} parent=11 // pred_check
          %p415 = pneg %p281
        $region54: #{fused_forward.1} parent=11 // pred_check_branch
          %417 = sbr.rel (%p415) target = $region56
        $region55: #{fused_forward.1} parent=11 // pred_region
          _
        $region56: #{fused_forward.1} parent=11 // pred_fallthru
          _
        // Predicated region
        $region57: #{fused_forward.1} parent=11 // pred_check
          %p418 = pneg %p302
        $region58: #{fused_forward.1} parent=11 // pred_check_branch
          %420 = sbr.rel (%p418) target = $region60
        $region59: #{fused_forward.1} parent=11 // pred_region
          _
        $region60: #{fused_forward.1} parent=11 // pred_fallthru
          _
        // Predicated region
        $region61: #{fused_forward.1} parent=11 // pred_check
          %p421 = pneg %p323
        $region62: #{fused_forward.1} parent=11 // pred_check_branch
          %423 = sbr.rel (%p421) target = $region64
        $region63: #{fused_forward.1} parent=11 // pred_region
          _
        $region64: #{fused_forward.1} parent=11 // pred_fallthru
          _
        // Predicated region
        $region65: #{fused_forward.1} parent=11 // pred_check
          %p424 = pneg %p344
        $region66: #{fused_forward.1} parent=11 // pred_check_branch
          %426 = sbr.rel (%p424) target = $region68
        $region67: #{fused_forward.1} parent=11 // pred_region
          _
        $region68: #{fused_forward.1} parent=11 // pred_fallthru
          _
      $region12: #{fused_forward.1} parent=5 // pred_fallthru
        _
      %p427 = scmp.lt.s32.totalorder %s24, 2
      // Predicated region
      $region69: #{fused_forward.1} parent=5 // pred_check
        %p428 = pneg %p427
      $region70: #{fused_forward.1} parent=5 // pred_check_branch
        %430 = sbr.rel (%p428) target = $region72
      $region71: #{fused_forward.1} parent=5 // pred_region
        // Predicated region
        $region73: #{fused_forward.1} parent=71 // pred_check
          %p431 = pneg %p44
        $region74: #{fused_forward.1} parent=71 // pred_check_branch
          %433 = sbr.rel (%p431) target = $region76
        $region75: #{fused_forward.1} parent=71 // pred_region
          %p434 = scmp.lt.s32.totalorder %s24, 1
          %s435 = scalar_select %p434, %s24, 1
          %s436 = smul.addr %s435, 22
          %s437 = smul.addr %s436, 4
          %s438 = scalar_lea.vmem %s0, %s437
        $region76: #{fused_forward.1} parent=71 // pred_fallthru
          _
      $region72: #{fused_forward.1} parent=5 // pred_fallthru
        _
      %p439 = scmp.le.s32.totalorder 1, %s24
      %p440 = scmp.lt.s32.totalorder %s24, 3
      %p441 = pnand %p439, %p440
      %p442 = pneg %p441
      // Predicated region
      $region77: #{fused_forward.1} parent=5 // pred_check
        _
      $region78: #{fused_forward.1} parent=5 // pred_check_branch
        %444 = sbr.rel (%p441) target = $region80
      $region79: #{fused_forward.1} parent=5 // pred_region
        %s445 = ssub.s32 %s24, 1
        %p446 = scmp.lt.s32.totalorder %s29, 1
        %s447 = scalar_select %p446, %s29, 1
        %s448 = smul.addr %s447, 22
        %s449 = smul.addr %s448, 4
        %s450 = scalar_lea.vmem %s0, %s449
        %p451 = pneg %p50
        %p452 = pneg %p47
        %p453 = pneg %p71
        %p454 = pneg %p68
        %p455 = pneg %p92
        %p456 = pneg %p89
        %p457 = pneg %p113
        %p458 = pneg %p110
        %p459 = pneg %p134
        %p460 = pneg %p131
        %p461 = pneg %p155
        %p462 = pneg %p152
        %p463 = pneg %p176
        %p464 = pneg %p173
        %p465 = pneg %p197
        %p466 = pneg %p194
        %p467 = pneg %p218
        %p468 = pneg %p215
        %p469 = pneg %p239
        %p470 = pneg %p236
        %p471 = pneg %p260
        %p472 = pneg %p257
        %p473 = pneg %p281
        %p474 = pneg %p278
        %p475 = pneg %p302
        %p476 = pneg %p299
        %p477 = pneg %p323
        %p478 = pneg %p320
        %p479 = pneg %p344
        %p480 = pneg %p341
        %p481 = pneg %p370
        %p482 = pneg %p367
        %s483 = sand.u32 %s357, 1
        %s484 = scalar_lea.sflag [#allocation3], %s483
        %s485 = sand.u32 %s357, 1
        %s486 = scalar_lea.vmem [#allocation2], %s485
        %p487 = scmp.lt.s32.totalorder %s29, 1
        %s488 = scalar_select %p487, %s29, 1
        %s489 = smul.addr %s488, 22
        %s490 = smul.addr %s489, 4
        %s491 = scalar_lea.vmem %s0, %s490
        %v493 = vld [vmem:[%s491] sm:$0xf]
        %v494 = vld [vmem:[%s491 + $0x4] sm:$0xf]
        %v495 = vld [vmem:[%s491 + $0x8] sm:$0xf]
        %v496 = vld [vmem:[%s491 + $0xc] sm:$0xf]
        %v497 = vld [vmem:[%s491 + $0x10] sm:$0xf]
        %v498 = vld [vmem:[%s491 + $0x14] sm:$0xf]
        %v499 = vld [vmem:[%s491 + $0x18] sm:$0xf]
        %v500 = vld [vmem:[%s491 + $0x1c] sm:$0xf]
        %v501 = vld [vmem:[%s491 + $0x20] sm:$0xf]
        %v502 = vld [vmem:[%s491 + $0x24] sm:$0xf]
        %v503 = vld [vmem:[%s491 + $0x28] sm:$0xf]
        %v504 = vld [vmem:[%s491 + $0x2c] sm:$0xf]
        %v505 = vld [vmem:[%s491 + $0x30] sm:$0xf]
        %v506 = vld [vmem:[%s491 + $0x34] sm:$0xf]
        %v507 = vld [vmem:[%s491 + $0x38] sm:$0xf]
        %v508 = vld [vmem:[%s491 + $0x3c] sm:$0xf]
        %v509 = vld [vmem:[%s491 + $0x40] sm:$0xf]
        %v510 = vld [vmem:[%s491 + $0x44] sm:$0xf]
        %v511 = vld [vmem:[%s491 + $0x48] sm:$0xf]
        %v512 = vld [vmem:[%s491 + $0x4c] sm:$0xf]
        %v513 = vld [vmem:[%s491 + $0x50] sm:$0xf]
        %v514 = vld [vmem:[%s491 + $0x54] sm:$0xf]
        %v515 = vld [vmem:[%s1] sm:$0xf]
        %v516 = vld [vmem:[%s1 + $0x4] sm:$0xf]
        %v517 = vld [vmem:[%s1 + $0x8] sm:$0xf]
        %v518 = vld [vmem:[%s1 + $0xc] sm:$0xf]
        %v519 = vld [vmem:[%s1 + $0x10] sm:$0x3]
        %v520 = vld [vmem:[%s2] sm:$0x1]
        %v522 = vlaneseq
        %v523 = vshrl.u32 %v522, 7
        %v524 = vsub.s32 0, %v523
        %v525 = vrot.slane %v520, %v524
        %v549 = vunpack.c.l.b16 %v493
        %v550 = vunpack.c.l.b16 %v494
        %v551 = vunpack.c.l.b16 %v495
        %v552 = vunpack.c.l.b16 %v496
        %v553 = vunpack.c.l.b16 %v497
        %v554 = vunpack.c.l.b16 %v498
        %v555 = vunpack.c.l.b16 %v499
        %v556 = vunpack.c.l.b16 %v500
        %v557 = vunpack.c.l.b16 %v501
        %v558 = vunpack.c.l.b16 %v502
        %v559 = vunpack.c.l.b16 %v503
        %v560 = vunpack.c.l.b16 %v504
        %v561 = vunpack.c.l.b16 %v505
        %v562 = vunpack.c.l.b16 %v506
        %v563 = vunpack.c.l.b16 %v507
        %v564 = vunpack.c.l.b16 %v508
        %v565 = vunpack.c.l.b16 %v509
        %v566 = vunpack.c.l.b16 %v510
        %v567 = vunpack.c.l.b16 %v511
        %v568 = vunpack.c.l.b16 %v512
        %v569 = vunpack.c.l.b16 %v513
        %v570 = vunpack.c.l.b16 %v514
        %v571 = vpack.c.b16 %v550, %v549
        %v572 = vpack.c.b16 %v552, %v551
        %v573 = vpack.c.b16 %v554, %v553
        %v574 = vpack.c.b16 %v556, %v555
        %v575 = vpack.c.b16 %v558, %v557
        %v576 = vpack.c.b16 %v560, %v559
        %v577 = vpack.c.b16 %v562, %v561
        %v578 = vpack.c.b16 %v564, %v563
        %v579 = vpack.c.b16 %v566, %v565
        %v580 = vpack.c.b16 %v568, %v567
        %v581 = vpack.c.b16 %v570, %v569
        %v587 = vunpack.c.l.b16 %v515
        %v588 = vunpack.c.l.b16 %v516
        %v589 = vunpack.c.l.b16 %v517
        %v590 = vunpack.c.l.b16 %v518
        %v591 = vunpack.c.l.b16 %v519
        %v592 = vpack.c.b16 %v588, %v587
        %v593 = vpack.c.b16 %v590, %v589
        %v594 = vpack.c.b16 %v591, %v591
        %vm597 = vcmask 293888
        %v599 = vsel %vm597, %v571, 0
        %v602 = vsel %vm597, %v572, 0
        %v605 = vsel %vm597, %v573, 0
        %v608 = vsel %vm597, %v574, 0
        %v611 = vsel %vm597, %v575, 0
        %v614 = vsel %vm597, %v576, 0
        %v617 = vsel %vm597, %v577, 0
        %v620 = vsel %vm597, %v578, 0
        %v623 = vsel %vm597, %v579, 0
        %v626 = vsel %vm597, %v580, 0
        %v629 = vsel %vm597, %v581, 0
        %vm631 = vcmask 1041408
        %v633 = vsel %vm631, %v594, 0
        %635 = vmatprep.subr.bf16.mxu0 0
        %636 = vmatpush1.bf16.msra.mxu0 %v592
        %637 = vmatprep.subr.bf16.mxu0 0
        %638 = vmatpush1.bf16.msra.mxu0 %v593
        %639 = vmatprep.subr.bf16.mxu0 0
        %640 = vmatpush1.bf16.msra.mxu0 %v633
        %641 = vmatprep.subr.bf16.mxu0 0
        %642 = vmatpush1.bf16.msra.mxu0 0
        %643 = vmatprep.subr.bf16.mxu0 0
        %644 = vmatpush1.bf16.msra.mxu0 0
        %645 = vmatprep.subr.bf16.mxu0 0
        %646 = vmatpush1.bf16.msra.mxu0 0
        %647 = vmatprep.subr.bf16.mxu0 0
        %648 = vmatpush1.bf16.msra.mxu0 0
        %649 = vmatprep.subr.bf16.mxu0 0
        %650 = vmatpush1.bf16.msra.mxu0 0
        %651 = vmatprep.subr.bf16.mxu0 0
        %652 = vmatpush1.bf16.msra.mxu0 0
        %653 = vmatprep.subr.bf16.mxu0 0
        %654 = vmatpush1.bf16.msra.mxu0 0
        %655 = vmatprep.subr.bf16.mxu0 0
        %656 = vmatpush1.bf16.msra.mxu0 0
        %657 = vmatprep.subr.bf16.mxu0 0
        %658 = vmatpush1.bf16.msra.mxu0 0
        %659 = vmatprep.subr.bf16.mxu0 0
        %660 = vmatpush1.bf16.msra.mxu0 0
        %661 = vmatprep.subr.bf16.mxu0 0
        %662 = vmatpush1.bf16.msra.mxu0 0
        %663 = vmatprep.subr.bf16.mxu0 0
        %664 = vmatpush1.bf16.msra.mxu0 0
        %665 = vmatprep.subr.bf16.mxu0 0
        %666 = vmatpush1.bf16.msra.mxu0 0
        %667 = vmatprep.mubr.bf16.mxu0 0
        %668 = vmatmul.mubr.bf16.gmra.mrb[0].mxu0 %v599
        %v669 = vpop.f32.mrb[0].mxu0
        %v670 = vadd.f32 %v525, %v669
        %v671 = vpop.f32.mrb[0].mxu0
        %v672 = vpop.f32.mrb[0].mxu0
        %v673 = vadd.f32 %v525, %v672
        %v674 = vpop.f32.mrb[0].mxu0
        %675 = vmatprep.mubr.bf16.mxu0 0
        %676 = vmatmul.mubr.bf16.gmra.mrb[0].mxu0 %v602
        %v677 = vpop.f32.mrb[0].mxu0
        %v678 = vadd.f32 %v525, %v677
        %v679 = vpop.f32.mrb[0].mxu0
        %v680 = vpop.f32.mrb[0].mxu0
        %v681 = vadd.f32 %v525, %v680
        %v682 = vpop.f32.mrb[0].mxu0
        %683 = vmatprep.mubr.bf16.mxu0 0
        %684 = vmatmul.mubr.bf16.gmra.mrb[0].mxu0 %v605
        %v685 = vpop.f32.mrb[0].mxu0
        %v686 = vadd.f32 %v525, %v685
        %v687 = vpop.f32.mrb[0].mxu0
        %v688 = vpop.f32.mrb[0].mxu0
        %v689 = vadd.f32 %v525, %v688
        %v690 = vpop.f32.mrb[0].mxu0
        %691 = vmatprep.mubr.bf16.mxu0 0
        %692 = vmatmul.mubr.bf16.gmra.mrb[0].mxu0 %v608
        %v693 = vpop.f32.mrb[0].mxu0
        %v694 = vadd.f32 %v525, %v693
        %v695 = vpop.f32.mrb[0].mxu0
        %v696 = vpop.f32.mrb[0].mxu0
        %v697 = vadd.f32 %v525, %v696
        %v698 = vpop.f32.mrb[0].mxu0
        %699 = vmatprep.mubr.bf16.mxu0 0
        %700 = vmatmul.mubr.bf16.gmra.mrb[0].mxu0 %v611
        %v701 = vpop.f32.mrb[0].mxu0
        %v702 = vadd.f32 %v525, %v701
        %v703 = vpop.f32.mrb[0].mxu0
        %v704 = vpop.f32.mrb[0].mxu0
        %v705 = vadd.f32 %v525, %v704
        %v706 = vpop.f32.mrb[0].mxu0
        %707 = vmatprep.mubr.bf16.mxu0 0
        %708 = vmatmul.mubr.bf16.gmra.mrb[0].mxu0 %v614
        %v709 = vpop.f32.mrb[0].mxu0
        %v710 = vadd.f32 %v525, %v709
        %v711 = vpop.f32.mrb[0].mxu0
        %v712 = vpop.f32.mrb[0].mxu0
        %v713 = vadd.f32 %v525, %v712
        %v714 = vpop.f32.mrb[0].mxu0
        %715 = vmatprep.mubr.bf16.mxu0 0
        %716 = vmatmul.mubr.bf16.gmra.mrb[0].mxu0 %v617
        %v717 = vpop.f32.mrb[0].mxu0
        %v718 = vadd.f32 %v525, %v717
        %v719 = vpop.f32.mrb[0].mxu0
        %v720 = vpop.f32.mrb[0].mxu0
        %v721 = vadd.f32 %v525, %v720
        %v722 = vpop.f32.mrb[0].mxu0
        %723 = vmatprep.mubr.bf16.mxu0 0
        %724 = vmatmul.mubr.bf16.gmra.mrb[0].mxu0 %v620
        %v725 = vpop.f32.mrb[0].mxu0
        %v726 = vadd.f32 %v525, %v725
        %v727 = vpop.f32.mrb[0].mxu0
        %v728 = vpop.f32.mrb[0].mxu0
        %v729 = vadd.f32 %v525, %v728
        %v730 = vpop.f32.mrb[0].mxu0
        %731 = vmatprep.mubr.bf16.mxu0 0
        %732 = vmatmul.mubr.bf16.gmra.mrb[0].mxu0 %v623
        %v733 = vpop.f32.mrb[0].mxu0
        %v734 = vadd.f32 %v525, %v733
        %v735 = vpop.f32.mrb[0].mxu0
        %v736 = vpop.f32.mrb[0].mxu0
        %v737 = vadd.f32 %v525, %v736
        %v738 = vpop.f32.mrb[0].mxu0
        %739 = vmatprep.mubr.bf16.mxu0 0
        %740 = vmatmul.mubr.bf16.gmra.mrb[0].mxu0 %v626
        %v741 = vpop.f32.mrb[0].mxu0
        %v742 = vadd.f32 %v525, %v741
        %v743 = vpop.f32.mrb[0].mxu0
        %v744 = vpop.f32.mrb[0].mxu0
        %v745 = vadd.f32 %v525, %v744
        %v746 = vpop.f32.mrb[0].mxu0
        %747 = vmatprep.mubr.bf16.mxu0 0
        %748 = vmatmul.mubr.bf16.gmra.mrb[0].mxu0 %v629
        %v749 = vpop.f32.mrb[0].mxu0
        %v750 = vadd.f32 %v525, %v749
        %v751 = vpop.f32.mrb[0].mxu0
        %v752 = vpop.f32.mrb[0].mxu0
        %v753 = vadd.f32 %v525, %v752
        %v754 = vpop.f32.mrb[0].mxu0
        %755 = vdwg.mxu0
        %v756 = vmax.f32 %v670, 0.0
        %v757 = vmax.f32 %v673, 0.0
        %v758 = vmax.f32 %v678, 0.0
        %v759 = vmax.f32 %v681, 0.0
        %v760 = vmax.f32 %v686, 0.0
        %v761 = vmax.f32 %v689, 0.0
        %v762 = vmax.f32 %v694, 0.0
        %v763 = vmax.f32 %v697, 0.0
        %v764 = vmax.f32 %v702, 0.0
        %v765 = vmax.f32 %v705, 0.0
        %v766 = vmax.f32 %v710, 0.0
        %v767 = vmax.f32 %v713, 0.0
        %v768 = vmax.f32 %v718, 0.0
        %v769 = vmax.f32 %v721, 0.0
        %v770 = vmax.f32 %v726, 0.0
        %v771 = vmax.f32 %v729, 0.0
        %v772 = vmax.f32 %v734, 0.0
        %v773 = vmax.f32 %v737, 0.0
        %v774 = vmax.f32 %v742, 0.0
        %v775 = vmax.f32 %v745, 0.0
        %v776 = vmax.f32 %v750, 0.0
        %v777 = vmax.f32 %v753, 0.0
        %v778 = vld [vmem:[%s3] sm:$0xff]
        %v779 = vld [vmem:[%s3 + $0x8] sm:$0xff]
        %v780 = vld [vmem:[%s3 + $0x10] sm:$0xff]
        %v781 = vld [vmem:[%s3 + $0x18] sm:$0xff]
        %v782 = vld [vmem:[%s3 + $0x20] sm:$0xff]
        %v783 = vld [vmem:[%s3 + $0x28] sm:$0xff]
        %v784 = vld [vmem:[%s3 + $0x30] sm:$0xff]
        %v785 = vld [vmem:[%s3 + $0x38] sm:$0xff]
        %v786 = vld [vmem:[%s3 + $0x40] sm:$0xff]
        %v787 = vld [vmem:[%s3 + $0x48] sm:$0xff]
        %v788 = vld [vmem:[%s3 + $0x50] sm:$0xff]
        %v789 = vld [vmem:[%s3 + $0x58] sm:$0xff]
        %v790 = vld [vmem:[%s3 + $0x60] sm:$0xff]
        %v791 = vld [vmem:[%s3 + $0x68] sm:$0xff]
        %v792 = vld [vmem:[%s3 + $0x70] sm:$0xff]
        %v793 = vld [vmem:[%s3 + $0x78] sm:$0xff]
        %v794 = vld [vmem:[%s3 + $0x80] sm:$0xff]
        %v795 = vld [vmem:[%s3 + $0x88] sm:$0xff]
        %v796 = vld [vmem:[%s3 + $0x90] sm:$0xff]
        %v797 = vld [vmem:[%s3 + $0x98] sm:$0xff]
        %v798 = vld [vmem:[%s3 + $0xa0] sm:$0xff]
        %v799 = vld [vmem:[%s3 + $0xa8] sm:$0xff]
        %v800 = vld [vmem:[%s3 + $0xb0] sm:$0xff]
        %v801 = vld [vmem:[%s3 + $0xb8] sm:$0xff]
        %v802 = vld [vmem:[%s3 + $0xc0] sm:$0xff]
        %v803 = vld [vmem:[%s3 + $0xc8] sm:$0xff]
        %v804 = vld [vmem:[%s3 + $0xd0] sm:$0xff]
        %v805 = vld [vmem:[%s3 + $0xd8] sm:$0xff]
        %v806 = vld [vmem:[%s3 + $0xe0] sm:$0xff]
        %v807 = vld [vmem:[%s3 + $0xe8] sm:$0xff]
        %v808 = vld [vmem:[%s3 + $0xf0] sm:$0xff]
        %v809 = vld [vmem:[%s3 + $0xf8] sm:$0xff]
        %v810 = vld [vmem:[%s3 + $0x100] sm:$0xff]
        %v811 = vld [vmem:[%s3 + $0x108] sm:$0xff]
        %v812 = vld [vmem:[%s3 + $0x110] sm:$0xff]
        %v813 = vld [vmem:[%s3 + $0x118] sm:$0xff]
        %v814 = vld [vmem:[%s3 + $0x120] sm:$0xff]
        %v815 = vld [vmem:[%s3 + $0x128] sm:$0xff]
        %v816 = vld [vmem:[%s3 + $0x130] sm:$0xff]
        %v817 = vld [vmem:[%s3 + $0x138] sm:$0xff]
        %v818 = vld [vmem:[%s3 + $0x140] sm:$0xff]
        %v819 = vld [vmem:[%s3 + $0x148] sm:$0xff]
        %v820 = vld [vmem:[%s3 + $0x150] sm:$0xff]
        %v821 = vld [vmem:[%s3 + $0x158] sm:$0xff]
        %v822 = vld [vmem:[%s3 + $0x160] sm:$0xff]
        %v823 = vld [vmem:[%s3 + $0x168] sm:$0xff]
        %v824 = vld [vmem:[%s3 + $0x170] sm:$0xff]
        %v825 = vld [vmem:[%s3 + $0x178] sm:$0xff]
        %v826 = vld [vmem:[%s3 + $0x180] sm:$0xff]
        %v827 = vld [vmem:[%s3 + $0x188] sm:$0xff]
        %v828 = vld [vmem:[%s3 + $0x190] sm:$0xff]
        %v829 = vld [vmem:[%s3 + $0x198] sm:$0xff]
        %v830 = vld [vmem:[%s3 + $0x1a0] sm:$0xff]
        %v831 = vld [vmem:[%s3 + $0x1a8] sm:$0xff]
        %v832 = vld [vmem:[%s3 + $0x1b0] sm:$0xff]
        %v833 = vld [vmem:[%s3 + $0x1b8] sm:$0xff]
        %v834 = vld [vmem:[%s3 + $0x1c0] sm:$0xff]
        %v835 = vld [vmem:[%s3 + $0x1c8] sm:$0xff]
        %v836 = vld [vmem:[%s3 + $0x1d0] sm:$0xff]
        %v837 = vld [vmem:[%s3 + $0x1d8] sm:$0xff]
        %v838 = vld [vmem:[%s3 + $0x1e0] sm:$0xff]
        %v839 = vld [vmem:[%s3 + $0x1e8] sm:$0xff]
        %v840 = vld [vmem:[%s3 + $0x1f0] sm:$0xff]
        %v841 = vpack.c.bf16 %v757, %v756
        %v842 = vpack.c.bf16 %v759, %v758
        %v843 = vpack.c.bf16 %v761, %v760
        %v844 = vpack.c.bf16 %v763, %v762
        %v845 = vpack.c.bf16 %v765, %v764
        %v846 = vpack.c.bf16 %v767, %v766
        %v847 = vpack.c.bf16 %v769, %v768
        %v848 = vpack.c.bf16 %v771, %v770
        %v849 = vpack.c.bf16 %v773, %v772
        %v850 = vpack.c.bf16 %v775, %v774
        %v851 = vpack.c.bf16 %v777, %v776
        %v915 = vunpack.c.l.b16 %v778
        %v916 = vunpack.c.h.b16 %v778
        %v917 = vunpack.c.l.b16 %v779
        %v918 = vunpack.c.h.b16 %v779
        %v919 = vunpack.c.l.b16 %v780
        %v920 = vunpack.c.h.b16 %v780
        %v921 = vunpack.c.l.b16 %v781
        %v922 = vunpack.c.h.b16 %v781
        %v923 = vunpack.c.l.b16 %v782
        %v924 = vunpack.c.h.b16 %v782
        %v925 = vunpack.c.l.b16 %v783
        %v926 = vunpack.c.h.b16 %v783
        %v927 = vunpack.c.l.b16 %v784
        %v928 = vunpack.c.h.b16 %v784
        %v929 = vunpack.c.l.b16 %v785
        %v930 = vunpack.c.h.b16 %v785
        %v931 = vunpack.c.l.b16 %v786
        %v932 = vunpack.c.h.b16 %v786
        %v933 = vunpack.c.l.b16 %v787
        %v934 = vunpack.c.h.b16 %v787
        %v935 = vunpack.c.l.b16 %v788
        %v936 = vunpack.c.h.b16 %v788
        %v937 = vunpack.c.l.b16 %v789
        %v938 = vunpack.c.h.b16 %v789
        %v939 = vunpack.c.l.b16 %v790
        %v940 = vunpack.c.h.b16 %v790
        %v941 = vunpack.c.l.b16 %v791
        %v942 = vunpack.c.h.b16 %v791
        %v943 = vunpack.c.l.b16 %v792
        %v944 = vunpack.c.h.b16 %v792
        %v945 = vunpack.c.l.b16 %v793
        %v946 = vunpack.c.h.b16 %v793
        %v947 = vunpack.c.l.b16 %v794
        %v948 = vunpack.c.h.b16 %v794
        %v949 = vunpack.c.l.b16 %v795
        %v950 = vunpack.c.h.b16 %v795
        %v951 = vunpack.c.l.b16 %v796
        %v952 = vunpack.c.h.b16 %v796
        %v953 = vunpack.c.l.b16 %v797
        %v954 = vunpack.c.h.b16 %v797
        %v955 = vunpack.c.l.b16 %v798
        %v956 = vunpack.c.h.b16 %v798
        %v957 = vunpack.c.l.b16 %v799
        %v958 = vunpack.c.h.b16 %v799
        %v959 = vunpack.c.l.b16 %v800
        %v960 = vunpack.c.h.b16 %v800
        %v961 = vunpack.c.l.b16 %v801
        %v962 = vunpack.c.h.b16 %v801
        %v963 = vunpack.c.l.b16 %v802
        %v964 = vunpack.c.h.b16 %v802
        %v965 = vunpack.c.l.b16 %v803
        %v966 = vunpack.c.h.b16 %v803
        %v967 = vunpack.c.l.b16 %v804
        %v968 = vunpack.c.h.b16 %v804
        %v969 = vunpack.c.l.b16 %v805
        %v970 = vunpack.c.h.b16 %v805
        %v971 = vunpack.c.l.b16 %v806
        %v972 = vunpack.c.h.b16 %v806
        %v973 = vunpack.c.l.b16 %v807
        %v974 = vunpack.c.h.b16 %v807
        %v975 = vunpack.c.l.b16 %v808
        %v976 = vunpack.c.h.b16 %v808
        %v977 = vunpack.c.l.b16 %v809
        %v978 = vunpack.c.h.b16 %v809
        %v979 = vunpack.c.l.b16 %v810
        %v980 = vunpack.c.h.b16 %v810
        %v981 = vunpack.c.l.b16 %v811
        %v982 = vunpack.c.h.b16 %v811
        %v983 = vunpack.c.l.b16 %v812
        %v984 = vunpack.c.h.b16 %v812
        %v985 = vunpack.c.l.b16 %v813
        %v986 = vunpack.c.h.b16 %v813
        %v987 = vunpack.c.l.b16 %v814
        %v988 = vunpack.c.h.b16 %v814
        %v989 = vunpack.c.l.b16 %v815
        %v990 = vunpack.c.h.b16 %v815
        %v991 = vunpack.c.l.b16 %v816
        %v992 = vunpack.c.h.b16 %v816
        %v993 = vunpack.c.l.b16 %v817
        %v994 = vunpack.c.h.b16 %v817
        %v995 = vunpack.c.l.b16 %v818
        %v996 = vunpack.c.h.b16 %v818
        %v997 = vunpack.c.l.b16 %v819
        %v998 = vunpack.c.h.b16 %v819
        %v999 = vunpack.c.l.b16 %v820
        %v1000 = vunpack.c.h.b16 %v820
        %v1001 = vunpack.c.l.b16 %v821
        %v1002 = vunpack.c.h.b16 %v821
        %v1003 = vunpack.c.l.b16 %v822
        %v1004 = vunpack.c.h.b16 %v822
        %v1005 = vunpack.c.l.b16 %v823
        %v1006 = vunpack.c.h.b16 %v823
        %v1007 = vunpack.c.l.b16 %v824
        %v1008 = vunpack.c.h.b16 %v824
        %v1009 = vunpack.c.l.b16 %v825
        %v1010 = vunpack.c.h.b16 %v825
        %v1011 = vunpack.c.l.b16 %v826
        %v1012 = vunpack.c.h.b16 %v826
        %v1013 = vunpack.c.l.b16 %v827
        %v1014 = vunpack.c.h.b16 %v827
        %v1015 = vunpack.c.l.b16 %v828
        %v1016 = vunpack.c.h.b16 %v828
        %v1017 = vunpack.c.l.b16 %v829
        %v1018 = vunpack.c.h.b16 %v829
        %v1019 = vunpack.c.l.b16 %v830
        %v1020 = vunpack.c.h.b16 %v830
        %v1021 = vunpack.c.l.b16 %v831
        %v1022 = vunpack.c.h.b16 %v831
        %v1023 = vunpack.c.l.b16 %v832
        %v1024 = vunpack.c.h.b16 %v832
        %v1025 = vunpack.c.l.b16 %v833
        %v1026 = vunpack.c.h.b16 %v833
        %v1027 = vunpack.c.l.b16 %v834
        %v1028 = vunpack.c.h.b16 %v834
        %v1029 = vunpack.c.l.b16 %v835
        %v1030 = vunpack.c.h.b16 %v835
        %v1031 = vunpack.c.l.b16 %v836
        %v1032 = vunpack.c.h.b16 %v836
        %v1033 = vunpack.c.l.b16 %v837
        %v1034 = vunpack.c.h.b16 %v837
        %v1035 = vunpack.c.l.b16 %v838
        %v1036 = vunpack.c.h.b16 %v838
        %v1037 = vunpack.c.l.b16 %v839
        %v1038 = vunpack.c.h.b16 %v839
        %v1039 = vunpack.c.l.b16 %v840
        %v1040 = vunpack.c.h.b16 %v840
        %v1041 = vpack.c.b16 %v917, %v915
        %v1042 = vpack.c.b16 %v918, %v916
        %v1043 = vpack.c.b16 %v921, %v919
        %v1044 = vpack.c.b16 %v922, %v920
        %v1045 = vpack.c.b16 %v925, %v923
        %v1046 = vpack.c.b16 %v926, %v924
        %v1047 = vpack.c.b16 %v929, %v927
        %v1048 = vpack.c.b16 %v930, %v928
        %v1049 = vpack.c.b16 %v933, %v931
        %v1050 = vpack.c.b16 %v934, %v932
        %v1051 = vpack.c.b16 %v937, %v935
        %v1052 = vpack.c.b16 %v938, %v936
        %v1053 = vpack.c.b16 %v941, %v939
        %v1054 = vpack.c.b16 %v942, %v940
        %v1055 = vpack.c.b16 %v945, %v943
        %v1056 = vpack.c.b16 %v946, %v944
        %v1057 = vpack.c.b16 %v949, %v947
        %v1058 = vpack.c.b16 %v950, %v948
        %v1059 = vpack.c.b16 %v953, %v951
        %v1060 = vpack.c.b16 %v954, %v952
        %v1061 = vpack.c.b16 %v957, %v955
        %v1062 = vpack.c.b16 %v958, %v956
        %v1063 = vpack.c.b16 %v961, %v959
        %v1064 = vpack.c.b16 %v962, %v960
        %v1065 = vpack.c.b16 %v965, %v963
        %v1066 = vpack.c.b16 %v966, %v964
        %v1067 = vpack.c.b16 %v969, %v967
        %v1068 = vpack.c.b16 %v970, %v968
        %v1069 = vpack.c.b16 %v973, %v971
        %v1070 = vpack.c.b16 %v974, %v972
        %v1071 = vpack.c.b16 %v977, %v975
        %v1072 = vpack.c.b16 %v978, %v976
        %v1073 = vpack.c.b16 %v981, %v979
        %v1074 = vpack.c.b16 %v982, %v980
        %v1075 = vpack.c.b16 %v985, %v983
        %v1076 = vpack.c.b16 %v986, %v984
        %v1077 = vpack.c.b16 %v989, %v987
        %v1078 = vpack.c.b16 %v990, %v988
        %v1079 = vpack.c.b16 %v993, %v991
        %v1080 = vpack.c.b16 %v994, %v992
        %v1081 = vpack.c.b16 %v997, %v995
        %v1082 = vpack.c.b16 %v998, %v996
        %v1083 = vpack.c.b16 %v1001, %v999
        %v1084 = vpack.c.b16 %v1002, %v1000
        %v1085 = vpack.c.b16 %v1005, %v1003
        %v1086 = vpack.c.b16 %v1006, %v1004
        %v1087 = vpack.c.b16 %v1009, %v1007
        %v1088 = vpack.c.b16 %v1010, %v1008
        %v1089 = vpack.c.b16 %v1013, %v1011
        %v1090 = vpack.c.b16 %v1014, %v1012
        %v1091 = vpack.c.b16 %v1017, %v1015
        %v1092 = vpack.c.b16 %v1018, %v1016
        %v1093 = vpack.c.b16 %v1021, %v1019
        %v1094 = vpack.c.b16 %v1022, %v1020
        %v1095 = vpack.c.b16 %v1025, %v1023
        %v1096 = vpack.c.b16 %v1026, %v1024
        %v1097 = vpack.c.b16 %v1029, %v1027
        %v1098 = vpack.c.b16 %v1030, %v1028
        %v1099 = vpack.c.b16 %v1033, %v1031
        %v1100 = vpack.c.b16 %v1034, %v1032
        %v1101 = vpack.c.b16 %v1037, %v1035
        %v1102 = vpack.c.b16 %v1038, %v1036
        %v1103 = vpack.c.b16 %v1039, %v1039
        %v1104 = vpack.c.b16 %v1040, %v1040
        %vm1137 = vcmask 392192
        %v1139 = vsel %vm1137, %v1042, 0
        %v1142 = vsel %vm1137, %v1044, 0
        %v1145 = vsel %vm1137, %v1046, 0
        %v1148 = vsel %vm1137, %v1048, 0
        %v1151 = vsel %vm1137, %v1050, 0
        %v1154 = vsel %vm1137, %v1052, 0
        %v1157 = vsel %vm1137, %v1054, 0
        %v1160 = vsel %vm1137, %v1056, 0
        %v1163 = vsel %vm1137, %v1058, 0
        %v1166 = vsel %vm1137, %v1060, 0
        %v1169 = vsel %vm1137, %v1062, 0
        %v1172 = vsel %vm1137, %v1064, 0
        %v1175 = vsel %vm1137, %v1066, 0
        %v1178 = vsel %vm1137, %v1068, 0
        %v1181 = vsel %vm1137, %v1070, 0
        %v1184 = vsel %vm1137, %v1072, 0
        %v1187 = vsel %vm1137, %v1074, 0
        %v1190 = vsel %vm1137, %v1076, 0
        %v1193 = vsel %vm1137, %v1078, 0
        %v1196 = vsel %vm1137, %v1080, 0
        %v1199 = vsel %vm1137, %v1082, 0
        %v1202 = vsel %vm1137, %v1084, 0
        %v1205 = vsel %vm1137, %v1086, 0
        %v1208 = vsel %vm1137, %v1088, 0
        %v1211 = vsel %vm1137, %v1090, 0
        %v1214 = vsel %vm1137, %v1092, 0
        %v1217 = vsel %vm1137, %v1094, 0
        %v1220 = vsel %vm1137, %v1096, 0
        %v1223 = vsel %vm1137, %v1098, 0
        %v1226 = vsel %vm1137, %v1100, 0
        %v1229 = vsel %vm1137, %v1102, 0
        %v1232 = vsel %vm1137, %v1104, 0
        %1234 = vmatprep.subr.bf16.mxu0 0
        %1235 = vmatpush1.bf16.msra.mxu0 %v841
        %1236 = vmatprep.subr.bf16.mxu0 0
        %1237 = vmatpush1.bf16.msra.mxu0 %v842
        %1238 = vmatprep.subr.bf16.mxu0 0
        %1239 = vmatpush1.bf16.msra.mxu0 %v843
        %1240 = vmatprep.subr.bf16.mxu0 0
        %1241 = vmatpush1.bf16.msra.mxu0 %v844
        %1242 = vmatprep.subr.bf16.mxu0 0
        %1243 = vmatpush1.bf16.msra.mxu0 %v845
        %1244 = vmatprep.subr.bf16.mxu0 0
        %1245 = vmatpush1.bf16.msra.mxu0 %v846
        %1246 = vmatprep.subr.bf16.mxu0 0
        %1247 = vmatpush1.bf16.msra.mxu0 %v847
        %1248 = vmatprep.subr.bf16.mxu0 0
        %1249 = vmatpush1.bf16.msra.mxu0 %v848
        %1250 = vmatprep.subr.bf16.mxu0 0
        %1251 = vmatpush1.bf16.msra.mxu0 %v849
        %1252 = vmatprep.subr.bf16.mxu0 0
        %1253 = vmatpush1.bf16.msra.mxu0 %v850
        %1254 = vmatprep.subr.bf16.mxu0 0
        %1255 = vmatpush1.bf16.msra.mxu0 %v851
        %1256 = vmatprep.subr.bf16.mxu0 0
        %1257 = vmatpush1.bf16.msra.mxu0 0
        %1258 = vmatprep.subr.bf16.mxu0 0
        %1259 = vmatpush1.bf16.msra.mxu0 0
        %1260 = vmatprep.subr.bf16.mxu0 0
        %1261 = vmatpush1.bf16.msra.mxu0 0
        %1262 = vmatprep.subr.bf16.mxu0 0
        %1263 = vmatpush1.bf16.msra.mxu0 0
        %1264 = vmatprep.subr.bf16.mxu0 0
        %1265 = vmatpush1.bf16.msra.mxu0 0
        %1266 = vmatprep.mubr.bf16.mxu0 %v1139
        %1267 = vmatmul.mubr.bf16.gmra.mrb[0].mxu0 %v1041
        %v1268 = vpop.f32.mrb[0].mxu0
        %v1269 = vadd.f32 0.0, %v1268
        %v1270 = vpop.f32.mrb[0].mxu0
        %v1271 = vpop.f32.mrb[0].mxu0
        %v1272 = vadd.f32 0.0, %v1271
        %v1273 = vpop.f32.mrb[0].mxu0
        %1274 = vmatprep.mubr.bf16.mxu0 %v1142
        %1275 = vmatmul.mubr.bf16.gmra.mrb[0].mxu0 %v1043
        %v1276 = vpop.f32.mrb[0].mxu0
        %v1277 = vadd.f32 0.0, %v1276
        %v1278 = vpop.f32.mrb[0].mxu0
        %v1279 = vpop.f32.mrb[0].mxu0
        %v1280 = vadd.f32 0.0, %v1279
        %v1281 = vpop.f32.mrb[0].mxu0
        %1282 = vmatprep.mubr.bf16.mxu0 %v1145
        %1283 = vmatmul.mubr.bf16.gmra.mrb[0].mxu0 %v1045
        %v1284 = vpop.f32.mrb[0].mxu0
        %v1285 = vadd.f32 0.0, %v1284
        %v1286 = vpop.f32.mrb[0].mxu0
        %v1287 = vpop.f32.mrb[0].mxu0
        %v1288 = vadd.f32 0.0, %v1287
        %v1289 = vpop.f32.mrb[0].mxu0
        %1290 = vmatprep.mubr.bf16.mxu0 %v1148
        %1291 = vmatmul.mubr.bf16.gmra.mrb[0].mxu0 %v1047
        %v1292 = vpop.f32.mrb[0].mxu0
        %v1293 = vadd.f32 0.0, %v1292
        %v1294 = vpop.f32.mrb[0].mxu0
        %v1295 = vpop.f32.mrb[0].mxu0
        %v1296 = vadd.f32 0.0, %v1295
        %v1297 = vpop.f32.mrb[0].mxu0
        %1298 = vmatprep.mubr.bf16.mxu0 %v1151
        %1299 = vmatmul.mubr.bf16.gmra.mrb[0].mxu0 %v1049
        %v1300 = vpop.f32.mrb[0].mxu0
        %v1301 = vadd.f32 0.0, %v1300
        %v1302 = vpop.f32.mrb[0].mxu0
        %v1303 = vpop.f32.mrb[0].mxu0
        %v1304 = vadd.f32 0.0, %v1303
        %v1305 = vpop.f32.mrb[0].mxu0
        %1306 = vmatprep.mubr.bf16.mxu0 %v1154
        %1307 = vmatmul.mubr.bf16.gmra.mrb[0].mxu0 %v1051
        %v1308 = vpop.f32.mrb[0].mxu0
        %v1309 = vadd.f32 0.0, %v1308
        %v1310 = vpop.f32.mrb[0].mxu0
        %v1311 = vpop.f32.mrb[0].mxu0
        %v1312 = vadd.f32 0.0, %v1311
        %v1313 = vpop.f32.mrb[0].mxu0
        %1314 = vmatprep.mubr.bf16.mxu0 %v1157
        %1315 = vmatmul.mubr.bf16.gmra.mrb[0].mxu0 %v1053
        %v1316 = vpop.f32.mrb[0].mxu0
        %v1317 = vadd.f32 0.0, %v1316
        %v1318 = vpop.f32.mrb[0].mxu0
        %v1319 = vpop.f32.mrb[0].mxu0
        %v1320 = vadd.f32 0.0, %v1319
        %v1321 = vpop.f32.mrb[0].mxu0
        %1322 = vmatprep.mubr.bf16.mxu0 %v1160
        %1323 = vmatmul.mubr.bf16.gmra.mrb[0].mxu0 %v1055
        %v1324 = vpop.f32.mrb[0].mxu0
        %v1325 = vadd.f32 0.0, %v1324
        %v1326 = vpop.f32.mrb[0].mxu0
        %v1327 = vpop.f32.mrb[0].mxu0
        %v1328 = vadd.f32 0.0, %v1327
        %v1329 = vpop.f32.mrb[0].mxu0
        %1330 = vmatprep.mubr.bf16.mxu0 %v1163
        %1331 = vmatmul.mubr.bf16.gmra.mrb[0].mxu0 %v1057
        %v1332 = vpop.f32.mrb[0].mxu0
        %v1333 = vadd.f32 0.0, %v1332
        %v1334 = vpop.f32.mrb[0].mxu0
        %v1335 = vpop.f32.mrb[0].mxu0
        %v1336 = vadd.f32 0.0, %v1335
        %v1337 = vpop.f32.mrb[0].mxu0
        %1338 = vmatprep.mubr.bf16.mxu0 %v1166
        %1339 = vmatmul.mubr.bf16.gmra.mrb[0].mxu0 %v1059
        %v1340 = vpop.f32.mrb[0].mxu0
        %v1341 = vadd.f32 0.0, %v1340
        %v1342 = vpop.f32.mrb[0].mxu0
        %v1343 = vpop.f32.mrb[0].mxu0
        %v1344 = vadd.f32 0.0, %v1343
        %v1345 = vpop.f32.mrb[0].mxu0
        %1346 = vmatprep.mubr.bf16.mxu0 %v1169
        %1347 = vmatmul.mubr.bf16.gmra.mrb[0].mxu0 %v1061
        %v1348 = vpop.f32.mrb[0].mxu0
        %v1349 = vadd.f32 0.0, %v1348
        %v1350 = vpop.f32.mrb[0].mxu0
        %v1351 = vpop.f32.mrb[0].mxu0
        %v1352 = vadd.f32 0.0, %v1351
        %v1353 = vpop.f32.mrb[0].mxu0
        %1354 = vmatprep.mubr.bf16.mxu0 %v1172
        %1355 = vmatmul.mubr.bf16.gmra.mrb[0].mxu0 %v1063
        %v1356 = vpop.f32.mrb[0].mxu0
        %v1357 = vadd.f32 0.0, %v1356
        %v1358 = vpop.f32.mrb[0].mxu0
        %v1359 = vpop.f32.mrb[0].mxu0
        %v1360 = vadd.f32 0.0, %v1359
        %v1361 = vpop.f32.mrb[0].mxu0
        %1362 = vmatprep.mubr.bf16.mxu0 %v1175
        %1363 = vmatmul.mubr.bf16.gmra.mrb[0].mxu0 %v1065
        %v1364 = vpop.f32.mrb[0].mxu0
        %v1365 = vadd.f32 0.0, %v1364
        %v1366 = vpop.f32.mrb[0].mxu0
        %v1367 = vpop.f32.mrb[0].mxu0
        %v1368 = vadd.f32 0.0, %v1367
        %v1369 = vpop.f32.mrb[0].mxu0
        %1370 = vmatprep.mubr.bf16.mxu0 %v1178
        %1371 = vmatmul.mubr.bf16.gmra.mrb[0].mxu0 %v1067
        %v1372 = vpop.f32.mrb[0].mxu0
        %v1373 = vadd.f32 0.0, %v1372
        %v1374 = vpop.f32.mrb[0].mxu0
        %v1375 = vpop.f32.mrb[0].mxu0
        %v1376 = vadd.f32 0.0, %v1375
        %v1377 = vpop.f32.mrb[0].mxu0
        %1378 = vmatprep.mubr.bf16.mxu0 %v1181
        %1379 = vmatmul.mubr.bf16.gmra.mrb[0].mxu0 %v1069
        %v1380 = vpop.f32.mrb[0].mxu0
        %v1381 = vadd.f32 0.0, %v1380
        %v1382 = vpop.f32.mrb[0].mxu0
        %v1383 = vpop.f32.mrb[0].mxu0
        %v1384 = vadd.f32 0.0, %v1383
        %v1385 = vpop.f32.mrb[0].mxu0
        %1386 = vmatprep.mubr.bf16.mxu0 %v1184
        %1387 = vmatmul.mubr.bf16.gmra.mrb[0].mxu0 %v1071
        %v1388 = vpop.f32.mrb[0].mxu0
        %v1389 = vadd.f32 0.0, %v1388
        %v1390 = vpop.f32.mrb[0].mxu0
        %v1391 = vpop.f32.mrb[0].mxu0
        %v1392 = vadd.f32 0.0, %v1391
        %v1393 = vpop.f32.mrb[0].mxu0
        %1394 = vmatprep.mubr.bf16.mxu0 %v1187
        %1395 = vmatmul.mubr.bf16.gmra.mrb[0].mxu0 %v1073
        %v1396 = vpop.f32.mrb[0].mxu0
        %v1397 = vadd.f32 0.0, %v1396
        %v1398 = vpop.f32.mrb[0].mxu0
        %v1399 = vpop.f32.mrb[0].mxu0
        %v1400 = vadd.f32 0.0, %v1399
        %v1401 = vpop.f32.mrb[0].mxu0
        %1402 = vmatprep.mubr.bf16.mxu0 %v1190
        %1403 = vmatmul.mubr.bf16.gmra.mrb[0].mxu0 %v1075
        %v1404 = vpop.f32.mrb[0].mxu0
        %v1405 = vadd.f32 0.0, %v1404
        %v1406 = vpop.f32.mrb[0].mxu0
        %v1407 = vpop.f32.mrb[0].mxu0
        %v1408 = vadd.f32 0.0, %v1407
        %v1409 = vpop.f32.mrb[0].mxu0
        %1410 = vmatprep.mubr.bf16.mxu0 %v1193
        %1411 = vmatmul.mubr.bf16.gmra.mrb[0].mxu0 %v1077
        %v1412 = vpop.f32.mrb[0].mxu0
        %v1413 = vadd.f32 0.0, %v1412
        %v1414 = vpop.f32.mrb[0].mxu0
        %v1415 = vpop.f32.mrb[0].mxu0
        %v1416 = vadd.f32 0.0, %v1415
        %v1417 = vpop.f32.mrb[0].mxu0
        %1418 = vmatprep.mubr.bf16.mxu0 %v1196
        %1419 = vmatmul.mubr.bf16.gmra.mrb[0].mxu0 %v1079
        %v1420 = vpop.f32.mrb[0].mxu0
        %v1421 = vadd.f32 0.0, %v1420
        %v1422 = vpop.f32.mrb[0].mxu0
        %v1423 = vpop.f32.mrb[0].mxu0
        %v1424 = vadd.f32 0.0, %v1423
        %v1425 = vpop.f32.mrb[0].mxu0
        %1426 = vmatprep.mubr.bf16.mxu0 %v1199
        %1427 = vmatmul.mubr.bf16.gmra.mrb[0].mxu0 %v1081
        %v1428 = vpop.f32.mrb[0].mxu0
        %v1429 = vadd.f32 0.0, %v1428
        %v1430 = vpop.f32.mrb[0].mxu0
        %v1431 = vpop.f32.mrb[0].mxu0
        %v1432 = vadd.f32 0.0, %v1431
        %v1433 = vpop.f32.mrb[0].mxu0
        %1434 = vmatprep.mubr.bf16.mxu0 %v1202
        %1435 = vmatmul.mubr.bf16.gmra.mrb[0].mxu0 %v1083
        %v1436 = vpop.f32.mrb[0].mxu0
        %v1437 = vadd.f32 0.0, %v1436
        %v1438 = vpop.f32.mrb[0].mxu0
        %v1439 = vpop.f32.mrb[0].mxu0
        %v1440 = vadd.f32 0.0, %v1439
        %v1441 = vpop.f32.mrb[0].mxu0
        %1442 = vmatprep.mubr.bf16.mxu0 %v1205
        %1443 = vmatmul.mubr.bf16.gmra.mrb[0].mxu0 %v1085
        %v1444 = vpop.f32.mrb[0].mxu0
        %v1445 = vadd.f32 0.0, %v1444
        %v1446 = vpop.f32.mrb[0].mxu0
        %v1447 = vpop.f32.mrb[0].mxu0
        %v1448 = vadd.f32 0.0, %v1447
        %v1449 = vpop.f32.mrb[0].mxu0
        %1450 = vmatprep.mubr.bf16.mxu0 %v1208
        %1451 = vmatmul.mubr.bf16.gmra.mrb[0].mxu0 %v1087
        %v1452 = vpop.f32.mrb[0].mxu0
        %v1453 = vadd.f32 0.0, %v1452
        %v1454 = vpop.f32.mrb[0].mxu0
        %v1455 = vpop.f32.mrb[0].mxu0
        %v1456 = vadd.f32 0.0, %v1455
        %v1457 = vpop.f32.mrb[0].mxu0
        %1458 = vmatprep.mubr.bf16.mxu0 %v1211
        %1459 = vmatmul.mubr.bf16.gmra.mrb[0].mxu0 %v1089
        %v1460 = vpop.f32.mrb[0].mxu0
        %v1461 = vadd.f32 0.0, %v1460
        %v1462 = vpop.f32.mrb[0].mxu0
        %v1463 = vpop.f32.mrb[0].mxu0
        %v1464 = vadd.f32 0.0, %v1463
        %v1465 = vpop.f32.mrb[0].mxu0
        %1466 = vmatprep.mubr.bf16.mxu0 %v1214
        %1467 = vmatmul.mubr.bf16.gmra.mrb[0].mxu0 %v1091
        %v1468 = vpop.f32.mrb[0].mxu0
        %v1469 = vadd.f32 0.0, %v1468
        %v1470 = vpop.f32.mrb[0].mxu0
        %v1471 = vpop.f32.mrb[0].mxu0
        %v1472 = vadd.f32 0.0, %v1471
        %v1473 = vpop.f32.mrb[0].mxu0
        %1474 = vmatprep.mubr.bf16.mxu0 %v1217
        %1475 = vmatmul.mubr.bf16.gmra.mrb[0].mxu0 %v1093
        %v1476 = vpop.f32.mrb[0].mxu0
        %v1477 = vadd.f32 0.0, %v1476
        %v1478 = vpop.f32.mrb[0].mxu0
        %v1479 = vpop.f32.mrb[0].mxu0
        %v1480 = vadd.f32 0.0, %v1479
        %v1481 = vpop.f32.mrb[0].mxu0
        %1482 = vmatprep.mubr.bf16.mxu0 %v1220
        %1483 = vmatmul.mubr.bf16.gmra.mrb[0].mxu0 %v1095
        %v1484 = vpop.f32.mrb[0].mxu0
        %v1485 = vadd.f32 0.0, %v1484
        %v1486 = vpop.f32.mrb[0].mxu0
        %v1487 = vpop.f32.mrb[0].mxu0
        %v1488 = vadd.f32 0.0, %v1487
        %v1489 = vpop.f32.mrb[0].mxu0
        %1490 = vmatprep.mubr.bf16.mxu0 %v1223
        %1491 = vmatmul.mubr.bf16.gmra.mrb[0].mxu0 %v1097
        %v1492 = vpop.f32.mrb[0].mxu0
        %v1493 = vadd.f32 0.0, %v1492
        %v1494 = vpop.f32.mrb[0].mxu0
        %v1495 = vpop.f32.mrb[0].mxu0
        %v1496 = vadd.f32 0.0, %v1495
        %v1497 = vpop.f32.mrb[0].mxu0
        %1498 = vmatprep.mubr.bf16.mxu0 %v1226
        %1499 = vmatmul.mubr.bf16.gmra.mrb[0].mxu0 %v1099
        %v1500 = vpop.f32.mrb[0].mxu0
        %v1501 = vadd.f32 0.0, %v1500
        %v1502 = vpop.f32.mrb[0].mxu0
        %v1503 = vpop.f32.mrb[0].mxu0
        %v1504 = vadd.f32 0.0, %v1503
        %v1505 = vpop.f32.mrb[0].mxu0
        %1506 = vmatprep.mubr.bf16.mxu0 %v1229
        %1507 = vmatmul.mubr.bf16.gmra.mrb[0].mxu0 %v1101
        %v1508 = vpop.f32.mrb[0].mxu0
        %v1509 = vadd.f32 0.0, %v1508
        %v1510 = vpop.f32.mrb[0].mxu0
        %v1511 = vpop.f32.mrb[0].mxu0
        %v1512 = vadd.f32 0.0, %v1511
        %v1513 = vpop.f32.mrb[0].mxu0
        %1514 = vmatprep.mubr.bf16.mxu0 %v1232
        %1515 = vmatmul.mubr.bf16.gmra.mrb[0].mxu0 %v1103
        %v1516 = vpop.f32.mrb[0].mxu0
        %v1517 = vadd.f32 0.0, %v1516
        %v1518 = vpop.f32.mrb[0].mxu0
        %v1519 = vpop.f32.mrb[0].mxu0
        %v1520 = vpop.f32.mrb[0].mxu0
        %1521 = vdwg.mxu0
        %1529 = vrot.lane.b32.xlu0 %v1296, 16
        %v1530 = vpop.permute.xlu0 %1529
        %1531 = vrot.lane.b32.xlu0 %v1301, 16
        %v1532 = vpop.permute.xlu0 %1531
        %1533 = vrot.lane.b32.xlu0 %v1304, 16
        %v1534 = vpop.permute.xlu0 %1533
        %1535 = vrot.lane.b32.xlu0 %v1309, 16
        %v1536 = vpop.permute.xlu0 %1535
        %1537 = vrot.lane.b32.xlu0 %v1312, 16
        %v1538 = vpop.permute.xlu0 %1537
        %1539 = vrot.lane.b32.xlu0 %v1317, 16
        %v1540 = vpop.permute.xlu0 %1539
        %1541 = vrot.lane.b32.xlu0 %v1320, 16
        %v1542 = vpop.permute.xlu0 %1541
        %1557 = vrot.lane.b32.xlu0 %v1325, 32
        %v1558 = vpop.permute.xlu0 %1557
        %1559 = vrot.lane.b32.xlu0 %v1328, 32
        %v1560 = vpop.permute.xlu0 %1559
        %1561 = vrot.lane.b32.xlu0 %v1333, 32
        %v1562 = vpop.permute.xlu0 %1561
        %1563 = vrot.lane.b32.xlu0 %v1336, 32
        %v1564 = vpop.permute.xlu0 %1563
        %1565 = vrot.lane.b32.xlu0 %v1341, 32
        %v1566 = vpop.permute.xlu0 %1565
        %1567 = vrot.lane.b32.xlu0 %v1344, 32
        %v1568 = vpop.permute.xlu0 %1567
        %1569 = vrot.lane.b32.xlu0 %v1349, 32
        %v1570 = vpop.permute.xlu0 %1569
        %1585 = vrot.lane.b32.xlu0 %v1352, 48
        %v1586 = vpop.permute.xlu0 %1585
        %1587 = vrot.lane.b32.xlu0 %v1357, 48
        %v1588 = vpop.permute.xlu0 %1587
        %1589 = vrot.lane.b32.xlu0 %v1360, 48
        %v1590 = vpop.permute.xlu0 %1589
        %1591 = vrot.lane.b32.xlu0 %v1365, 48
        %v1592 = vpop.permute.xlu0 %1591
        %1593 = vrot.lane.b32.xlu0 %v1368, 48
        %v1594 = vpop.permute.xlu0 %1593
        %1595 = vrot.lane.b32.xlu0 %v1373, 48
        %v1596 = vpop.permute.xlu0 %1595
        %1597 = vrot.lane.b32.xlu0 %v1376, 48
        %v1598 = vpop.permute.xlu0 %1597
        %1613 = vrot.lane.b32.xlu0 %v1381, 64
        %v1614 = vpop.permute.xlu0 %1613
        %1615 = vrot.lane.b32.xlu0 %v1384, 64
        %v1616 = vpop.permute.xlu0 %1615
        %1617 = vrot.lane.b32.xlu0 %v1389, 64
        %v1618 = vpop.permute.xlu0 %1617
        %1619 = vrot.lane.b32.xlu0 %v1392, 64
        %v1620 = vpop.permute.xlu0 %1619
        %1621 = vrot.lane.b32.xlu0 %v1397, 64
        %v1622 = vpop.permute.xlu0 %1621
        %1623 = vrot.lane.b32.xlu0 %v1400, 64
        %v1624 = vpop.permute.xlu0 %1623
        %1625 = vrot.lane.b32.xlu0 %v1405, 64
        %v1626 = vpop.permute.xlu0 %1625
        %1641 = vrot.lane.b32.xlu0 %v1408, 80
        %v1642 = vpop.permute.xlu0 %1641
        %1643 = vrot.lane.b32.xlu0 %v1413, 80
        %v1644 = vpop.permute.xlu0 %1643
        %1645 = vrot.lane.b32.xlu0 %v1416, 80
        %v1646 = vpop.permute.xlu0 %1645
        %1647 = vrot.lane.b32.xlu0 %v1421, 80
        %v1648 = vpop.permute.xlu0 %1647
        %1649 = vrot.lane.b32.xlu0 %v1424, 80
        %v1650 = vpop.permute.xlu0 %1649
        %1651 = vrot.lane.b32.xlu0 %v1429, 80
        %v1652 = vpop.permute.xlu0 %1651
        %1653 = vrot.lane.b32.xlu0 %v1432, 80
        %v1654 = vpop.permute.xlu0 %1653
        %1669 = vrot.lane.b32.xlu0 %v1437, 96
        %v1670 = vpop.permute.xlu0 %1669
        %1671 = vrot.lane.b32.xlu0 %v1440, 96
        %v1672 = vpop.permute.xlu0 %1671
        %1673 = vrot.lane.b32.xlu0 %v1445, 96
        %v1674 = vpop.permute.xlu0 %1673
        %1675 = vrot.lane.b32.xlu0 %v1448, 96
        %v1676 = vpop.permute.xlu0 %1675
        %1677 = vrot.lane.b32.xlu0 %v1453, 96
        %v1678 = vpop.permute.xlu0 %1677
        %1679 = vrot.lane.b32.xlu0 %v1456, 96
        %v1680 = vpop.permute.xlu0 %1679
        %1681 = vrot.lane.b32.xlu0 %v1461, 96
        %v1682 = vpop.permute.xlu0 %1681
        %1697 = vrot.lane.b32.xlu0 %v1464, 112
        %v1698 = vpop.permute.xlu0 %1697
        %1699 = vrot.lane.b32.xlu0 %v1469, 112
        %v1700 = vpop.permute.xlu0 %1699
        %1701 = vrot.lane.b32.xlu0 %v1472, 112
        %v1702 = vpop.permute.xlu0 %1701
        %1703 = vrot.lane.b32.xlu0 %v1477, 112
        %v1704 = vpop.permute.xlu0 %1703
        %1705 = vrot.lane.b32.xlu0 %v1480, 112
        %v1706 = vpop.permute.xlu0 %1705
        %1707 = vrot.lane.b32.xlu0 %v1485, 112
        %v1708 = vpop.permute.xlu0 %1707
        %1709 = vrot.lane.b32.xlu0 %v1488, 112
        %v1710 = vpop.permute.xlu0 %1709
        %vm1718 = vcmask 130048
        %v1719 = vsel %vm1718, %v1269, %v1530
        %v1720 = vsel %vm1718, %v1272, %v1532
        %v1721 = vsel %vm1718, %v1277, %v1534
        %v1722 = vsel %vm1718, %v1280, %v1536
        %v1723 = vsel %vm1718, %v1285, %v1538
        %v1724 = vsel %vm1718, %v1288, %v1540
        %v1725 = vsel %vm1718, %v1293, %v1542
        %vm1726 = vcmask 261120
        %v1727 = vsel %vm1726, %v1719, %v1558
        %v1728 = vsel %vm1726, %v1720, %v1560
        %v1729 = vsel %vm1726, %v1721, %v1562
        %v1730 = vsel %vm1726, %v1722, %v1564
        %v1731 = vsel %vm1726, %v1723, %v1566
        %v1732 = vsel %vm1726, %v1724, %v1568
        %v1733 = vsel %vm1726, %v1725, %v1570
        %v1734 = vsel %vm1137, %v1727, %v1586
        %v1735 = vsel %vm1137, %v1728, %v1588
        %v1736 = vsel %vm1137, %v1729, %v1590
        %v1737 = vsel %vm1137, %v1730, %v1592
        %v1738 = vsel %vm1137, %v1731, %v1594
        %v1739 = vsel %vm1137, %v1732, %v1596
        %v1740 = vsel %vm1137, %v1733, %v1598
        %vm1741 = vcmask 523264
        %v1742 = vsel %vm1741, %v1734, %v1614
        %v1743 = vsel %vm1741, %v1735, %v1616
        %v1744 = vsel %vm1741, %v1736, %v1618
        %v1745 = vsel %vm1741, %v1737, %v1620
        %v1746 = vsel %vm1741, %v1738, %v1622
        %v1747 = vsel %vm1741, %v1739, %v1624
        %v1748 = vsel %vm1741, %v1740, %v1626
        %vm1749 = vcmask 654336
        %v1750 = vsel %vm1749, %v1742, %v1642
        %v1751 = vsel %vm1749, %v1743, %v1644
        %v1752 = vsel %vm1749, %v1744, %v1646
        %v1753 = vsel %vm1749, %v1745, %v1648
        %v1754 = vsel %vm1749, %v1746, %v1650
        %v1755 = vsel %vm1749, %v1747, %v1652
        %v1756 = vsel %vm1749, %v1748, %v1654
        %vm1757 = vcmask 785408
        %v1758 = vsel %vm1757, %v1750, %v1670
        %v1759 = vsel %vm1757, %v1751, %v1672
        %v1760 = vsel %vm1757, %v1752, %v1674
        %v1761 = vsel %vm1757, %v1753, %v1676
        %v1762 = vsel %vm1757, %v1754, %v1678
        %v1763 = vsel %vm1757, %v1755, %v1680
        %v1764 = vsel %vm1757, %v1756, %v1682
        %vm1765 = vcmask 916480
        %v1766 = vsel %vm1765, %v1758, %v1698
        %v1767 = vsel %vm1765, %v1759, %v1700
        %v1768 = vsel %vm1765, %v1760, %v1702
        %v1769 = vsel %vm1765, %v1761, %v1704
        %v1770 = vsel %vm1765, %v1762, %v1706
        %v1771 = vsel %vm1765, %v1763, %v1708
        %v1772 = vsel %vm1765, %v1764, %v1710
        %v1773 = vpack.c.bf16 %v1767, %v1766
        %v1774 = vpack.c.bf16 %v1496, %v1493
        %v1775 = vpack.c.bf16 %v1769, %v1768
        %v1776 = vpack.c.bf16 %v1504, %v1501
        %v1777 = vpack.c.bf16 %v1771, %v1770
        %v1778 = vpack.c.bf16 %v1512, %v1509
        %v1779 = vpack.c.bf16 %v1772, %v1772
        %v1780 = vpack.c.bf16 %v1517, %v1517
        %v1781 = vld [vmem:[%s4] sm:$0xf]
        %v1782 = vld [vmem:[%s4 + $0x4] sm:$0xf]
        %v1783 = vld [vmem:[%s4 + $0x8] sm:$0xf]
        %v1784 = vld [vmem:[%s4 + $0xc] sm:$0xf]
        %v1785 = vld [vmem:[%s4 + $0x10] sm:$0xf]
        %v1786 = vld [vmem:[%s4 + $0x14] sm:$0xf]
        %v1787 = vld [vmem:[%s4 + $0x18] sm:$0xf]
        %v1788 = vld [vmem:[%s4 + $0x1c] sm:$0xf]
        %v1789 = vld [vmem:[%s4 + $0x20] sm:$0xf]
        %v1790 = vld [vmem:[%s4 + $0x24] sm:$0xf]
        %v1791 = vld [vmem:[%s4 + $0x28] sm:$0xf]
        %v1792 = vld [vmem:[%s4 + $0x2c] sm:$0xf]
        %v1793 = vld [vmem:[%s4 + $0x30] sm:$0xf]
        %v1794 = vld [vmem:[%s4 + $0x34] sm:$0xf]
        %v1795 = vld [vmem:[%s4 + $0x38] sm:$0xf]
        %v1796 = vld [vmem:[%s4 + $0x3c] sm:$0xf]
        %v1797 = vld [vmem:[%s4 + $0x40] sm:$0xf]
        %v1798 = vld [vmem:[%s4 + $0x44] sm:$0xf]
        %v1799 = vld [vmem:[%s5] sm:$0x1]
        %v1801 = vlaneseq
        %v1802 = vshrl.u32 %v1801, 7
        %v1803 = vsub.s32 0, %v1802
        %v1804 = vrot.slane %v1799, %v1803
        %v1824 = vunpack.c.l.b16 %v1781
        %v1825 = vunpack.c.l.b16 %v1782
        %v1826 = vunpack.c.l.b16 %v1783
        %v1827 = vunpack.c.l.b16 %v1784
        %v1828 = vunpack.c.l.b16 %v1785
        %v1829 = vunpack.c.l.b16 %v1786
        %v1830 = vunpack.c.l.b16 %v1787
        %v1831 = vunpack.c.l.b16 %v1788
        %v1832 = vunpack.c.l.b16 %v1789
        %v1833 = vunpack.c.l.b16 %v1790
        %v1834 = vunpack.c.l.b16 %v1791
        %v1835 = vunpack.c.l.b16 %v1792
        %v1836 = vunpack.c.l.b16 %v1793
        %v1837 = vunpack.c.l.b16 %v1794
        %v1838 = vunpack.c.l.b16 %v1795
        %v1839 = vunpack.c.l.b16 %v1796
        %v1840 = vunpack.c.l.b16 %v1797
        %v1841 = vunpack.c.l.b16 %v1798
        %v1842 = vpack.c.b16 %v1825, %v1824
        %v1843 = vpack.c.b16 %v1827, %v1826
        %v1844 = vpack.c.b16 %v1829, %v1828
        %v1845 = vpack.c.b16 %v1831, %v1830
        %v1846 = vpack.c.b16 %v1833, %v1832
        %v1847 = vpack.c.b16 %v1835, %v1834
        %v1848 = vpack.c.b16 %v1837, %v1836
        %v1849 = vpack.c.b16 %v1839, %v1838
        %v1850 = vpack.c.b16 %v1841, %v1840
        %v1861 = vsel %vm1718, %v1774, 0
        %v1864 = vsel %vm1718, %v1776, 0
        %v1867 = vsel %vm1718, %v1778, 0
        %v1870 = vsel %vm1718, %v1780, 0
        %1872 = vmatprep.subr.bf16.mxu0 0
        %1873 = vmatpush1.bf16.msra.mxu0 %v1842
        %1874 = vmatprep.subr.bf16.mxu0 0
        %1875 = vmatpush1.bf16.msra.mxu0 %v1843
        %1876 = vmatprep.subr.bf16.mxu0 0
        %1877 = vmatpush1.bf16.msra.mxu0 %v1844
        %1878 = vmatprep.subr.bf16.mxu0 0
        %1879 = vmatpush1.bf16.msra.mxu0 %v1845
        %1880 = vmatprep.subr.bf16.mxu0 0
        %1881 = vmatpush1.bf16.msra.mxu0 %v1846
        %1882 = vmatprep.subr.bf16.mxu0 0
        %1883 = vmatpush1.bf16.msra.mxu0 %v1847
        %1884 = vmatprep.subr.bf16.mxu0 0
        %1885 = vmatpush1.bf16.msra.mxu0 %v1848
        %1886 = vmatprep.subr.bf16.mxu0 0
        %1887 = vmatpush1.bf16.msra.mxu0 %v1849
        %1888 = vmatprep.subr.bf16.mxu0 0
        %1889 = vmatpush1.bf16.msra.mxu0 %v1850
        %1890 = vmatprep.subr.bf16.mxu0 0
        %1891 = vmatpush1.bf16.msra.mxu0 0
        %1892 = vmatprep.subr.bf16.mxu0 0
        %1893 = vmatpush1.bf16.msra.mxu0 0
        %1894 = vmatprep.subr.bf16.mxu0 0
        %1895 = vmatpush1.bf16.msra.mxu0 0
        %1896 = vmatprep.subr.bf16.mxu0 0
        %1897 = vmatpush1.bf16.msra.mxu0 0
        %1898 = vmatprep.subr.bf16.mxu0 0
        %1899 = vmatpush1.bf16.msra.mxu0 0
        %1900 = vmatprep.subr.bf16.mxu0 0
        %1901 = vmatpush1.bf16.msra.mxu0 0
        %1902 = vmatprep.subr.bf16.mxu0 0
        %1903 = vmatpush1.bf16.msra.mxu0 0
        %1904 = vmatprep.mubr.bf16.mxu0 %v1861
        %1905 = vmatmul.mubr.bf16.gmra.mrb[0].mxu0 %v1773
        %v1906 = vpop.f32.mrb[0].mxu0
        %v1907 = vadd.f32 %v1804, %v1906
        %v1908 = vpop.f32.mrb[0].mxu0
        %v1909 = vpop.f32.mrb[0].mxu0
        %v1910 = vadd.f32 %v1804, %v1909
        %v1911 = vpop.f32.mrb[0].mxu0
        %1912 = vmatprep.mubr.bf16.mxu0 %v1864
        %1913 = vmatmul.mubr.bf16.gmra.mrb[0].mxu0 %v1775
        %v1914 = vpop.f32.mrb[0].mxu0
        %v1915 = vadd.f32 %v1804, %v1914
        %v1916 = vpop.f32.mrb[0].mxu0
        %v1917 = vpop.f32.mrb[0].mxu0
        %v1918 = vadd.f32 %v1804, %v1917
        %v1919 = vpop.f32.mrb[0].mxu0
        %1920 = vmatprep.mubr.bf16.mxu0 %v1867
        %1921 = vmatmul.mubr.bf16.gmra.mrb[0].mxu0 %v1777
        %v1922 = vpop.f32.mrb[0].mxu0
        %v1923 = vadd.f32 %v1804, %v1922
        %v1924 = vpop.f32.mrb[0].mxu0
        %v1925 = vpop.f32.mrb[0].mxu0
        %v1926 = vadd.f32 %v1804, %v1925
        %v1927 = vpop.f32.mrb[0].mxu0
        %1928 = vmatprep.mubr.bf16.mxu0 %v1870
        %1929 = vmatmul.mubr.bf16.gmra.mrb[0].mxu0 %v1779
        %v1930 = vpop.f32.mrb[0].mxu0
        %v1931 = vadd.f32 %v1804, %v1930
        %v1932 = vpop.f32.mrb[0].mxu0
        %v1933 = vpop.f32.mrb[0].mxu0
        %v1934 = vpop.f32.mrb[0].mxu0
        %1935 = vdwg.mxu0
        %v1936 = vmax.f32 %v1907, 0.0
        %v1937 = vmax.f32 %v1910, 0.0
        %v1938 = vmax.f32 %v1915, 0.0
        %v1939 = vmax.f32 %v1918, 0.0
        %v1940 = vmax.f32 %v1923, 0.0
        %v1941 = vmax.f32 %v1926, 0.0
        %v1942 = vmax.f32 %v1931, 0.0
        %v1943 = vld [vmem:[%s6] sm:$0xff]
        %v1944 = vld [vmem:[%s6 + $0x8] sm:$0xff]
        %v1945 = vld [vmem:[%s6 + $0x10] sm:$0xff]
        %v1946 = vld [vmem:[%s6 + $0x18] sm:$0xff]
        %v1947 = vld [vmem:[%s6 + $0x20] sm:$0xff]
        %v1948 = vld [vmem:[%s6 + $0x28] sm:$0xff]
        %v1949 = vld [vmem:[%s6 + $0x30] sm:$0xff]
        %1951 = vset.pattern.permute.xlu0 0
        %1952 = vperm.xlu0 %1951, %v1943
        %v1953 = vpop.permute.xlu0 %1952
        %1956 = vset.pattern.permute.xlu0 0
        %1957 = vperm.xlu0 %1956, %v1944
        %v1958 = vpop.permute.xlu0 %1957
        %1961 = vset.pattern.permute.xlu0 0
        %1962 = vperm.xlu0 %1961, %v1945
        %v1963 = vpop.permute.xlu0 %1962
        %1966 = vset.pattern.permute.xlu0 0
        %1967 = vperm.xlu0 %1966, %v1946
        %v1968 = vpop.permute.xlu0 %1967
        %1971 = vset.pattern.permute.xlu0 0
        %1972 = vperm.xlu0 %1971, %v1947
        %v1973 = vpop.permute.xlu0 %1972
        %1976 = vset.pattern.permute.xlu0 0
        %1977 = vperm.xlu0 %1976, %v1948
        %v1978 = vpop.permute.xlu0 %1977
        %1981 = vset.pattern.permute.xlu0 0
        %1982 = vperm.xlu0 %1981, %v1949
        %v1983 = vpop.permute.xlu0 %1982
        %v1985 = vmul.f32 %v1953, 0.0
        %v1986 = vmul.f32 %v1958, %v1936
        %v1987 = vmul.f32 %v1963, %v1937
        %v1988 = vmul.f32 %v1968, %v1938
        %v1989 = vmul.f32 %v1973, %v1939
        %v1990 = vmul.f32 %v1978, %v1940
        %v1991 = vmul.f32 %v1983, %v1941
        %s1992 = scalar_lea.vmem %s6, 56
        %v1993 = vld [vmem:[%s1992] sm:$0xff]
        %v1994 = vld [vmem:[%s1992 + $0x8] sm:$0xff]
        %v1995 = vld [vmem:[%s1992 + $0x10] sm:$0xff]
        %v1996 = vld [vmem:[%s1992 + $0x18] sm:$0xff]
        %v1997 = vld [vmem:[%s1992 + $0x20] sm:$0xff]
        %v1998 = vld [vmem:[%s1992 + $0x28] sm:$0xff]
        %v1999 = vld [vmem:[%s1992 + $0x30] sm:$0xff]
        %2001 = vset.pattern.permute.xlu0 0
        %2002 = vperm.xlu0 %2001, %v1993
        %v2003 = vpop.permute.xlu0 %2002
        %2006 = vset.pattern.permute.xlu0 0
        %2007 = vperm.xlu0 %2006, %v1994
        %v2008 = vpop.permute.xlu0 %2007
        %2011 = vset.pattern.permute.xlu0 0
        %2012 = vperm.xlu0 %2011, %v1995
        %v2013 = vpop.permute.xlu0 %2012
        %2016 = vset.pattern.permute.xlu0 0
        %2017 = vperm.xlu0 %2016, %v1996
        %v2018 = vpop.permute.xlu0 %2017
        %2021 = vset.pattern.permute.xlu0 0
        %2022 = vperm.xlu0 %2021, %v1997
        %v2023 = vpop.permute.xlu0 %2022
        %2026 = vset.pattern.permute.xlu0 0
        %2027 = vperm.xlu0 %2026, %v1998
        %v2028 = vpop.permute.xlu0 %2027
        %2031 = vset.pattern.permute.xlu0 0
        %2032 = vperm.xlu0 %2031, %v1999
        %v2033 = vpop.permute.xlu0 %2032
        %vm2043 = vcmask 1046528
        %v2044 = vrot.slane 0.0, 1
        %v2045 = vrot.slane %v1936, 1
        %v2046 = vsel %vm2043, %v2044, %v2045
        %v2047 = vrot.slane %v1937, 1
        %v2048 = vsel %vm2043, %v2045, %v2047
        %v2049 = vrot.slane %v1938, 1
        %v2050 = vsel %vm2043, %v2047, %v2049
        %v2051 = vrot.slane %v1939, 1
        %v2052 = vsel %vm2043, %v2049, %v2051
        %v2053 = vrot.slane %v1940, 1
        %v2054 = vsel %vm2043, %v2051, %v2053
        %v2055 = vrot.slane %v1941, 1
        %v2056 = vsel %vm2043, %v2053, %v2055
        %v2057 = vrot.slane %v1942, 1
        %v2058 = vsel %vm2043, %v2055, %v2057
        %v2066 = vmul.f32 %v2003, %v2046
        %v2067 = vmul.f32 %v2008, %v2048
        %v2068 = vmul.f32 %v2013, %v2050
        %v2069 = vmul.f32 %v2018, %v2052
        %v2070 = vmul.f32 %v2023, %v2054
        %v2071 = vmul.f32 %v2028, %v2056
        %v2072 = vmul.f32 %v2033, %v2058
        %s2073 = scalar_lea.vmem %s6, 112
        %v2074 = vld [vmem:[%s2073] sm:$0xff]
        %v2075 = vld [vmem:[%s2073 + $0x8] sm:$0xff]
        %v2076 = vld [vmem:[%s2073 + $0x10] sm:$0xff]
        %v2077 = vld [vmem:[%s2073 + $0x18] sm:$0xff]
        %v2078 = vld [vmem:[%s2073 + $0x20] sm:$0xff]
        %v2079 = vld [vmem:[%s2073 + $0x28] sm:$0xff]
        %v2080 = vld [vmem:[%s2073 + $0x30] sm:$0xff]
        %2082 = vset.pattern.permute.xlu0 0
        %2083 = vperm.xlu0 %2082, %v2074
        %v2084 = vpop.permute.xlu0 %2083
        %2087 = vset.pattern.permute.xlu0 0
        %2088 = vperm.xlu0 %2087, %v2075
        %v2089 = vpop.permute.xlu0 %2088
        %2092 = vset.pattern.permute.xlu0 0
        %2093 = vperm.xlu0 %2092, %v2076
        %v2094 = vpop.permute.xlu0 %2093
        %2097 = vset.pattern.permute.xlu0 0
        %2098 = vperm.xlu0 %2097, %v2077
        %v2099 = vpop.permute.xlu0 %2098
        %2102 = vset.pattern.permute.xlu0 0
        %2103 = vperm.xlu0 %2102, %v2078
        %v2104 = vpop.permute.xlu0 %2103
        %2107 = vset.pattern.permute.xlu0 0
        %2108 = vperm.xlu0 %2107, %v2079
        %v2109 = vpop.permute.xlu0 %2108
        %2112 = vset.pattern.permute.xlu0 0
        %2113 = vperm.xlu0 %2112, %v2080
        %v2114 = vpop.permute.xlu0 %2113
        %vm2116 = vcmask 1045504
        %v2117 = vrot.slane 0.0, 2
        %v2118 = vrot.slane %v1936, 2
        %v2119 = vsel %vm2116, %v2117, %v2118
        %v2120 = vrot.slane %v1937, 2
        %v2121 = vsel %vm2116, %v2118, %v2120
        %v2122 = vrot.slane %v1938, 2
        %v2123 = vsel %vm2116, %v2120, %v2122
        %v2124 = vrot.slane %v1939, 2
        %v2125 = vsel %vm2116, %v2122, %v2124
        %v2126 = vrot.slane %v1940, 2
        %v2127 = vsel %vm2116, %v2124, %v2126
        %v2128 = vrot.slane %v1941, 2
        %v2129 = vsel %vm2116, %v2126, %v2128
        %v2130 = vrot.slane %v1942, 2
        %v2131 = vsel %vm2116, %v2128, %v2130
        %v2139 = vmul.f32 %v2084, %v2119
        %v2140 = vmul.f32 %v2089, %v2121
        %v2141 = vmul.f32 %v2094, %v2123
        %v2142 = vmul.f32 %v2099, %v2125
        %v2143 = vmul.f32 %v2104, %v2127
        %v2144 = vmul.f32 %v2109, %v2129
        %v2145 = vmul.f32 %v2114, %v2131
        %s2146 = scalar_lea.vmem %s6, 168
        %v2147 = vld [vmem:[%s2146] sm:$0xff]
        %v2148 = vld [vmem:[%s2146 + $0x8] sm:$0xff]
        %v2149 = vld [vmem:[%s2146 + $0x10] sm:$0xff]
        %v2150 = vld [vmem:[%s2146 + $0x18] sm:$0xff]
        %v2151 = vld [vmem:[%s2146 + $0x20] sm:$0xff]
        %v2152 = vld [vmem:[%s2146 + $0x28] sm:$0xff]
        %v2153 = vld [vmem:[%s2146 + $0x30] sm:$0xff]
        %2155 = vset.pattern.permute.xlu0 0
        %2156 = vperm.xlu0 %2155, %v2147
        %v2157 = vpop.permute.xlu0 %2156
        %2160 = vset.pattern.permute.xlu0 0
        %2161 = vperm.xlu0 %2160, %v2148
        %v2162 = vpop.permute.xlu0 %2161
        %2165 = vset.pattern.permute.xlu0 0
        %2166 = vperm.xlu0 %2165, %v2149
        %v2167 = vpop.permute.xlu0 %2166
        %2170 = vset.pattern.permute.xlu0 0
        %2171 = vperm.xlu0 %2170, %v2150
        %v2172 = vpop.permute.xlu0 %2171
        %2175 = vset.pattern.permute.xlu0 0
        %2176 = vperm.xlu0 %2175, %v2151
        %v2177 = vpop.permute.xlu0 %2176
        %2180 = vset.pattern.permute.xlu0 0
        %2181 = vperm.xlu0 %2180, %v2152
        %v2182 = vpop.permute.xlu0 %2181
        %2185 = vset.pattern.permute.xlu0 0
        %2186 = vperm.xlu0 %2185, %v2153
        %v2187 = vpop.permute.xlu0 %2186
        %vm2189 = vcmask 1040384
        %v2190 = vrot.slane 0.0, 7
        %v2191 = vrot.slane %v1936, 7
        %v2192 = vsel %vm2189, %v2190, %v2191
        %v2193 = vrot.slane %v1937, 7
        %v2194 = vsel %vm2189, %v2191, %v2193
        %v2195 = vrot.slane %v1938, 7
        %v2196 = vsel %vm2189, %v2193, %v2195
        %v2197 = vrot.slane %v1939, 7
        %v2198 = vsel %vm2189, %v2195, %v2197
        %v2199 = vrot.slane %v1940, 7
        %v2200 = vsel %vm2189, %v2197, %v2199
        %v2201 = vrot.slane %v1941, 7
        %v2202 = vsel %vm2189, %v2199, %v2201
        %v2203 = vrot.slane %v1942, 7
        %v2204 = vsel %vm2189, %v2201, %v2203
        %v2212 = vmul.f32 %v2157, %v2192
        %v2213 = vmul.f32 %v2162, %v2194
        %v2214 = vmul.f32 %v2167, %v2196
        %v2215 = vmul.f32 %v2172, %v2198
        %v2216 = vmul.f32 %v2177, %v2200
        %v2217 = vmul.f32 %v2182, %v2202
        %v2218 = vmul.f32 %v2187, %v2204
        %s2219 = scalar_lea.vmem %s6, 224
        %v2220 = vld [vmem:[%s2219] sm:$0xff]
        %v2221 = vld [vmem:[%s2219 + $0x8] sm:$0xff]
        %v2222 = vld [vmem:[%s2219 + $0x10] sm:$0xff]
        %v2223 = vld [vmem:[%s2219 + $0x18] sm:$0xff]
        %v2224 = vld [vmem:[%s2219 + $0x20] sm:$0xff]
        %v2225 = vld [vmem:[%s2219 + $0x28] sm:$0xff]
        %v2226 = vld [vmem:[%s2219 + $0x30] sm:$0xff]
        %2228 = vset.pattern.permute.xlu0 0
        %2229 = vperm.xlu0 %2228, %v2220
        %v2230 = vpop.permute.xlu0 %2229
        %2233 = vset.pattern.permute.xlu0 0
        %2234 = vperm.xlu0 %2233, %v2221
        %v2235 = vpop.permute.xlu0 %2234
        %2238 = vset.pattern.permute.xlu0 0
        %2239 = vperm.xlu0 %2238, %v2222
        %v2240 = vpop.permute.xlu0 %2239
        %2243 = vset.pattern.permute.xlu0 0
        %2244 = vperm.xlu0 %2243, %v2223
        %v2245 = vpop.permute.xlu0 %2244
        %2248 = vset.pattern.permute.xlu0 0
        %2249 = vperm.xlu0 %2248, %v2224
        %v2250 = vpop.permute.xlu0 %2249
        %2253 = vset.pattern.permute.xlu0 0
        %2254 = vperm.xlu0 %2253, %v2225
        %v2255 = vpop.permute.xlu0 %2254
        %2258 = vset.pattern.permute.xlu0 0
        %2259 = vperm.xlu0 %2258, %v2226
        %v2260 = vpop.permute.xlu0 %2259
        %v2262 = vmul.f32 %v2230, %v1936
        %v2263 = vmul.f32 %v2235, %v1937
        %v2264 = vmul.f32 %v2240, %v1938
        %v2265 = vmul.f32 %v2245, %v1939
        %v2266 = vmul.f32 %v2250, %v1940
        %v2267 = vmul.f32 %v2255, %v1941
        %v2268 = vmul.f32 %v2260, %v1942
        %s2269 = scalar_lea.vmem %s6, 280
        %v2270 = vld [vmem:[%s2269] sm:$0xff]
        %v2271 = vld [vmem:[%s2269 + $0x8] sm:$0xff]
        %v2272 = vld [vmem:[%s2269 + $0x10] sm:$0xff]
        %v2273 = vld [vmem:[%s2269 + $0x18] sm:$0xff]
        %v2274 = vld [vmem:[%s2269 + $0x20] sm:$0xff]
        %v2275 = vld [vmem:[%s2269 + $0x28] sm:$0xff]
        %v2276 = vld [vmem:[%s2269 + $0x30] sm:$0xff]
        %2278 = vset.pattern.permute.xlu0 0
        %2279 = vperm.xlu0 %2278, %v2270
        %v2280 = vpop.permute.xlu0 %2279
        %2283 = vset.pattern.permute.xlu0 0
        %2284 = vperm.xlu0 %2283, %v2271
        %v2285 = vpop.permute.xlu0 %2284
        %2288 = vset.pattern.permute.xlu0 0
        %2289 = vperm.xlu0 %2288, %v2272
        %v2290 = vpop.permute.xlu0 %2289
        %2293 = vset.pattern.permute.xlu0 0
        %2294 = vperm.xlu0 %2293, %v2273
        %v2295 = vpop.permute.xlu0 %2294
        %2298 = vset.pattern.permute.xlu0 0
        %2299 = vperm.xlu0 %2298, %v2274
        %v2300 = vpop.permute.xlu0 %2299
        %2303 = vset.pattern.permute.xlu0 0
        %2304 = vperm.xlu0 %2303, %v2275
        %v2305 = vpop.permute.xlu0 %2304
        %2308 = vset.pattern.permute.xlu0 0
        %2309 = vperm.xlu0 %2308, %v2276
        %v2310 = vpop.permute.xlu0 %2309
        %v2312 = vsel %vm2043, %v2057, %v2044
        %v2314 = vmul.f32 %v2280, %v2048
        %v2315 = vmul.f32 %v2285, %v2050
        %v2316 = vmul.f32 %v2290, %v2052
        %v2317 = vmul.f32 %v2295, %v2054
        %v2318 = vmul.f32 %v2300, %v2056
        %v2319 = vmul.f32 %v2305, %v2058
        %v2320 = vmul.f32 %v2310, %v2312
        %s2321 = scalar_lea.vmem %s6, 336
        %v2322 = vld [vmem:[%s2321] sm:$0xff]
        %v2323 = vld [vmem:[%s2321 + $0x8] sm:$0xff]
        %v2324 = vld [vmem:[%s2321 + $0x10] sm:$0xff]
        %v2325 = vld [vmem:[%s2321 + $0x18] sm:$0xff]
        %v2326 = vld [vmem:[%s2321 + $0x20] sm:$0xff]
        %v2327 = vld [vmem:[%s2321 + $0x28] sm:$0xff]
        %v2328 = vld [vmem:[%s2321 + $0x30] sm:$0xff]
        %2330 = vset.pattern.permute.xlu0 0
        %2331 = vperm.xlu0 %2330, %v2322
        %v2332 = vpop.permute.xlu0 %2331
        %2335 = vset.pattern.permute.xlu0 0
        %2336 = vperm.xlu0 %2335, %v2323
        %v2337 = vpop.permute.xlu0 %2336
        %2340 = vset.pattern.permute.xlu0 0
        %2341 = vperm.xlu0 %2340, %v2324
        %v2342 = vpop.permute.xlu0 %2341
        %2345 = vset.pattern.permute.xlu0 0
        %2346 = vperm.xlu0 %2345, %v2325
        %v2347 = vpop.permute.xlu0 %2346
        %2350 = vset.pattern.permute.xlu0 0
        %2351 = vperm.xlu0 %2350, %v2326
        %v2352 = vpop.permute.xlu0 %2351
        %2355 = vset.pattern.permute.xlu0 0
        %2356 = vperm.xlu0 %2355, %v2327
        %v2357 = vpop.permute.xlu0 %2356
        %2360 = vset.pattern.permute.xlu0 0
        %2361 = vperm.xlu0 %2360, %v2328
        %v2362 = vpop.permute.xlu0 %2361
        %v2364 = vrot.slane %v1936, 6
        %v2365 = vrot.slane %v1937, 6
        %v2366 = vsel %vm631, %v2364, %v2365
        %v2367 = vrot.slane %v1938, 6
        %v2368 = vsel %vm631, %v2365, %v2367
        %v2369 = vrot.slane %v1939, 6
        %v2370 = vsel %vm631, %v2367, %v2369
        %v2371 = vrot.slane %v1940, 6
        %v2372 = vsel %vm631, %v2369, %v2371
        %v2373 = vrot.slane %v1941, 6
        %v2374 = vsel %vm631, %v2371, %v2373
        %v2375 = vrot.slane %v1942, 6
        %v2376 = vsel %vm631, %v2373, %v2375
        %v2377 = vrot.slane 0.0, 6
        %v2378 = vsel %vm631, %v2375, %v2377
        %v2386 = vmul.f32 %v2332, %v2366
        %v2387 = vmul.f32 %v2337, %v2368
        %v2388 = vmul.f32 %v2342, %v2370
        %v2389 = vmul.f32 %v2347, %v2372
        %v2390 = vmul.f32 %v2352, %v2374
        %v2391 = vmul.f32 %v2357, %v2376
        %v2392 = vmul.f32 %v2362, %v2378
        %s2393 = scalar_lea.vmem %s6, 392
        %v2394 = vld [vmem:[%s2393] sm:$0xff]
        %v2395 = vld [vmem:[%s2393 + $0x8] sm:$0xff]
        %v2396 = vld [vmem:[%s2393 + $0x10] sm:$0xff]
        %v2397 = vld [vmem:[%s2393 + $0x18] sm:$0xff]
        %v2398 = vld [vmem:[%s2393 + $0x20] sm:$0xff]
        %v2399 = vld [vmem:[%s2393 + $0x28] sm:$0xff]
        %v2400 = vld [vmem:[%s2393 + $0x30] sm:$0xff]
        %2402 = vset.pattern.permute.xlu0 0
        %2403 = vperm.xlu0 %2402, %v2394
        %v2404 = vpop.permute.xlu0 %2403
        %2407 = vset.pattern.permute.xlu0 0
        %2408 = vperm.xlu0 %2407, %v2395
        %v2409 = vpop.permute.xlu0 %2408
        %2412 = vset.pattern.permute.xlu0 0
        %2413 = vperm.xlu0 %2412, %v2396
        %v2414 = vpop.permute.xlu0 %2413
        %2417 = vset.pattern.permute.xlu0 0
        %2418 = vperm.xlu0 %2417, %v2397
        %v2419 = vpop.permute.xlu0 %2418
        %2422 = vset.pattern.permute.xlu0 0
        %2423 = vperm.xlu0 %2422, %v2398
        %v2424 = vpop.permute.xlu0 %2423
        %2427 = vset.pattern.permute.xlu0 0
        %2428 = vperm.xlu0 %2427, %v2399
        %v2429 = vpop.permute.xlu0 %2428
        %2432 = vset.pattern.permute.xlu0 0
        %2433 = vperm.xlu0 %2432, %v2400
        %v2434 = vpop.permute.xlu0 %2433
        %v2436 = vsel %vm2189, %v2203, %v2190
        %v2438 = vmul.f32 %v2404, %v2194
        %v2439 = vmul.f32 %v2409, %v2196
        %v2440 = vmul.f32 %v2414, %v2198
        %v2441 = vmul.f32 %v2419, %v2200
        %v2442 = vmul.f32 %v2424, %v2202
        %v2443 = vmul.f32 %v2429, %v2204
        %v2444 = vmul.f32 %v2434, %v2436
        %s2445 = scalar_lea.vmem %s6, 448
        %v2446 = vld [vmem:[%s2445] sm:$0xff]
        %v2447 = vld [vmem:[%s2445 + $0x8] sm:$0xff]
        %v2448 = vld [vmem:[%s2445 + $0x10] sm:$0xff]
        %v2449 = vld [vmem:[%s2445 + $0x18] sm:$0xff]
        %v2450 = vld [vmem:[%s2445 + $0x20] sm:$0xff]
        %v2451 = vld [vmem:[%s2445 + $0x28] sm:$0xff]
        %v2452 = vld [vmem:[%s2445 + $0x30] sm:$0xff]
        %2454 = vset.pattern.permute.xlu0 0
        %2455 = vperm.xlu0 %2454, %v2446
        %v2456 = vpop.permute.xlu0 %2455
        %2459 = vset.pattern.permute.xlu0 0
        %2460 = vperm.xlu0 %2459, %v2447
        %v2461 = vpop.permute.xlu0 %2460
        %2464 = vset.pattern.permute.xlu0 0
        %2465 = vperm.xlu0 %2464, %v2448
        %v2466 = vpop.permute.xlu0 %2465
        %2469 = vset.pattern.permute.xlu0 0
        %2470 = vperm.xlu0 %2469, %v2449
        %v2471 = vpop.permute.xlu0 %2470
        %2474 = vset.pattern.permute.xlu0 0
        %2475 = vperm.xlu0 %2474, %v2450
        %v2476 = vpop.permute.xlu0 %2475
        %2479 = vset.pattern.permute.xlu0 0
        %2480 = vperm.xlu0 %2479, %v2451
        %v2481 = vpop.permute.xlu0 %2480
        %2484 = vset.pattern.permute.xlu0 0
        %2485 = vperm.xlu0 %2484, %v2452
        %v2486 = vpop.permute.xlu0 %2485
        %v2488 = vmul.f32 %v2456, %v1937
        %v2489 = vmul.f32 %v2461, %v1938
        %v2490 = vmul.f32 %v2466, %v1939
        %v2491 = vmul.f32 %v2471, %v1940
        %v2492 = vmul.f32 %v2476, %v1941
        %v2493 = vmul.f32 %v2481, %v1942
        %v2494 = vmul.f32 %v2486, 0.0
        %2502 = vrot.lane.b32.xlu0 %v2066, 32
        %v2503 = vpop.permute.xlu0 %2502
        %2504 = vrot.lane.b32.xlu0 %v2067, 32
        %v2505 = vpop.permute.xlu0 %2504
        %2506 = vrot.lane.b32.xlu0 %v2068, 32
        %v2507 = vpop.permute.xlu0 %2506
        %2508 = vrot.lane.b32.xlu0 %v2069, 32
        %v2509 = vpop.permute.xlu0 %2508
        %2510 = vrot.lane.b32.xlu0 %v2070, 32
        %v2511 = vpop.permute.xlu0 %2510
        %2512 = vrot.lane.b32.xlu0 %v2071, 32
        %v2513 = vpop.permute.xlu0 %2512
        %2514 = vrot.lane.b32.xlu0 %v2072, 32
        %v2515 = vpop.permute.xlu0 %2514
        %2530 = vrot.lane.b32.xlu0 %v2139, 64
        %v2531 = vpop.permute.xlu0 %2530
        %2532 = vrot.lane.b32.xlu0 %v2140, 64
        %v2533 = vpop.permute.xlu0 %2532
        %2534 = vrot.lane.b32.xlu0 %v2141, 64
        %v2535 = vpop.permute.xlu0 %2534
        %2536 = vrot.lane.b32.xlu0 %v2142, 64
        %v2537 = vpop.permute.xlu0 %2536
        %2538 = vrot.lane.b32.xlu0 %v2143, 64
        %v2539 = vpop.permute.xlu0 %2538
        %2540 = vrot.lane.b32.xlu0 %v2144, 64
        %v2541 = vpop.permute.xlu0 %2540
        %2542 = vrot.lane.b32.xlu0 %v2145, 64
        %v2543 = vpop.permute.xlu0 %2542
        %2558 = vrot.lane.b32.xlu0 %v2212, 96
        %v2559 = vpop.permute.xlu0 %2558
        %2560 = vrot.lane.b32.xlu0 %v2213, 96
        %v2561 = vpop.permute.xlu0 %2560
        %2562 = vrot.lane.b32.xlu0 %v2214, 96
        %v2563 = vpop.permute.xlu0 %2562
        %2564 = vrot.lane.b32.xlu0 %v2215, 96
        %v2565 = vpop.permute.xlu0 %2564
        %2566 = vrot.lane.b32.xlu0 %v2216, 96
        %v2567 = vpop.permute.xlu0 %2566
        %2568 = vrot.lane.b32.xlu0 %v2217, 96
        %v2569 = vpop.permute.xlu0 %2568
        %2570 = vrot.lane.b32.xlu0 %v2218, 96
        %v2571 = vpop.permute.xlu0 %2570
        %2586 = vrot.lane.b32.xlu0 %v2314, 32
        %v2587 = vpop.permute.xlu0 %2586
        %2588 = vrot.lane.b32.xlu0 %v2315, 32
        %v2589 = vpop.permute.xlu0 %2588
        %2590 = vrot.lane.b32.xlu0 %v2316, 32
        %v2591 = vpop.permute.xlu0 %2590
        %2592 = vrot.lane.b32.xlu0 %v2317, 32
        %v2593 = vpop.permute.xlu0 %2592
        %2594 = vrot.lane.b32.xlu0 %v2318, 32
        %v2595 = vpop.permute.xlu0 %2594
        %2596 = vrot.lane.b32.xlu0 %v2319, 32
        %v2597 = vpop.permute.xlu0 %2596
        %2598 = vrot.lane.b32.xlu0 %v2320, 32
        %v2599 = vpop.permute.xlu0 %2598
        %2614 = vrot.lane.b32.xlu0 %v2386, 64
        %v2615 = vpop.permute.xlu0 %2614
        %2616 = vrot.lane.b32.xlu0 %v2387, 64
        %v2617 = vpop.permute.xlu0 %2616
        %2618 = vrot.lane.b32.xlu0 %v2388, 64
        %v2619 = vpop.permute.xlu0 %2618
        %2620 = vrot.lane.b32.xlu0 %v2389, 64
        %v2621 = vpop.permute.xlu0 %2620
        %2622 = vrot.lane.b32.xlu0 %v2390, 64
        %v2623 = vpop.permute.xlu0 %2622
        %2624 = vrot.lane.b32.xlu0 %v2391, 64
        %v2625 = vpop.permute.xlu0 %2624
        %2626 = vrot.lane.b32.xlu0 %v2392, 64
        %v2627 = vpop.permute.xlu0 %2626
        %2642 = vrot.lane.b32.xlu0 %v2438, 96
        %v2643 = vpop.permute.xlu0 %2642
        %2644 = vrot.lane.b32.xlu0 %v2439, 96
        %v2645 = vpop.permute.xlu0 %2644
        %2646 = vrot.lane.b32.xlu0 %v2440, 96
        %v2647 = vpop.permute.xlu0 %2646
        %2648 = vrot.lane.b32.xlu0 %v2441, 96
        %v2649 = vpop.permute.xlu0 %2648
        %2650 = vrot.lane.b32.xlu0 %v2442, 96
        %v2651 = vpop.permute.xlu0 %2650
        %2652 = vrot.lane.b32.xlu0 %v2443, 96
        %v2653 = vpop.permute.xlu0 %2652
        %2654 = vrot.lane.b32.xlu0 %v2444, 96
        %v2655 = vpop.permute.xlu0 %2654
        %v2663 = vsel %vm1726, %v1985, %v2503
        %v2664 = vsel %vm1726, %v1986, %v2505
        %v2665 = vsel %vm1726, %v1987, %v2507
        %v2666 = vsel %vm1726, %v1988, %v2509
        %v2667 = vsel %vm1726, %v1989, %v2511
        %v2668 = vsel %vm1726, %v1990, %v2513
        %v2669 = vsel %vm1726, %v1991, %v2515
        %v2670 = vsel %vm1741, %v2663, %v2531
        %v2671 = vsel %vm1741, %v2664, %v2533
        %v2672 = vsel %vm1741, %v2665, %v2535
        %v2673 = vsel %vm1741, %v2666, %v2537
        %v2674 = vsel %vm1741, %v2667, %v2539
        %v2675 = vsel %vm1741, %v2668, %v2541
        %v2676 = vsel %vm1741, %v2669, %v2543
        %v2677 = vsel %vm1757, %v2670, %v2559
        %v2678 = vsel %vm1757, %v2671, %v2561
        %v2679 = vsel %vm1757, %v2672, %v2563
        %v2680 = vsel %vm1757, %v2673, %v2565
        %v2681 = vsel %vm1757, %v2674, %v2567
        %v2682 = vsel %vm1757, %v2675, %v2569
        %v2683 = vsel %vm1757, %v2676, %v2571
        %v2684 = vsel %vm1726, %v2262, %v2587
        %v2685 = vsel %vm1726, %v2263, %v2589
        %v2686 = vsel %vm1726, %v2264, %v2591
        %v2687 = vsel %vm1726, %v2265, %v2593
        %v2688 = vsel %vm1726, %v2266, %v2595
        %v2689 = vsel %vm1726, %v2267, %v2597
        %v2690 = vsel %vm1726, %v2268, %v2599
        %v2691 = vsel %vm1741, %v2684, %v2615
        %v2692 = vsel %vm1741, %v2685, %v2617
        %v2693 = vsel %vm1741, %v2686, %v2619
        %v2694 = vsel %vm1741, %v2687, %v2621
        %v2695 = vsel %vm1741, %v2688, %v2623
        %v2696 = vsel %vm1741, %v2689, %v2625
        %v2697 = vsel %vm1741, %v2690, %v2627
        %v2698 = vsel %vm1757, %v2691, %v2643
        %v2699 = vsel %vm1757, %v2692, %v2645
        %v2700 = vsel %vm1757, %v2693, %v2647
        %v2701 = vsel %vm1757, %v2694, %v2649
        %v2702 = vsel %vm1757, %v2695, %v2651
        %v2703 = vsel %vm1757, %v2696, %v2653
        %v2704 = vsel %vm1757, %v2697, %v2655
        %v2705 = vpack.c.bf16 %v2678, %v2677
        %v2706 = vpack.c.bf16 %v2699, %v2698
        %v2707 = vpack.c.bf16 %v2489, %v2488
        %v2708 = vpack.c.bf16 %v2680, %v2679
        %v2709 = vpack.c.bf16 %v2701, %v2700
        %v2710 = vpack.c.bf16 %v2491, %v2490
        %v2711 = vpack.c.bf16 %v2682, %v2681
        %v2712 = vpack.c.bf16 %v2703, %v2702
        %v2713 = vpack.c.bf16 %v2493, %v2492
        %v2714 = vpack.c.bf16 %v2683, %v2683
        %v2715 = vpack.c.bf16 %v2704, %v2704
        %v2716 = vpack.c.bf16 %v2494, %v2494
        %v2717 = vld [vmem:[%s7] sm:$0xf]
        %v2718 = vld [vmem:[%s7 + $0x4] sm:$0xf]
        %v2719 = vld [vmem:[%s7 + $0x8] sm:$0xf]
        %v2720 = vld [vmem:[%s7 + $0xc] sm:$0xf]
        %v2721 = vld [vmem:[%s7 + $0x10] sm:$0xf]
        %v2722 = vld [vmem:[%s7 + $0x14] sm:$0xf]
        %v2723 = vld [vmem:[%s7 + $0x18] sm:$0xf]
        %v2724 = vld [vmem:[%s7 + $0x1c] sm:$0xf]
        %v2725 = vld [vmem:[%s7 + $0x20] sm:$0xf]
        %v2726 = vld [vmem:[%s7 + $0x24] sm:$0xf]
        %v2727 = vld [vmem:[%s7 + $0x28] sm:$0xf]
        %v2728 = vld [vmem:[%s7 + $0x2c] sm:$0xf]
        %v2729 = vld [vmem:[%s7 + $0x30] sm:$0xf]
        %v2730 = vld [vmem:[%s7 + $0x34] sm:$0xf]
        %v2731 = vld [vmem:[%s7 + $0x38] sm:$0xf]
        %v2732 = vld [vmem:[%s7 + $0x3c] sm:$0xf]
        %v2733 = vld [vmem:[%s7 + $0x40] sm:$0xf]
        %v2734 = vld [vmem:[%s7 + $0x44] sm:$0xf]
        %v2735 = vld [vmem:[%s7 + $0x48] sm:$0xf]
        %v2736 = vld [vmem:[%s7 + $0x4c] sm:$0xf]
        %v2737 = vld [vmem:[%s7 + $0x50] sm:$0xf]
        %v2738 = vld [vmem:[%s7 + $0x54] sm:$0xf]
        %v2739 = vld [vmem:[%s7 + $0x58] sm:$0xf]
        %v2740 = vld [vmem:[%s7 + $0x5c] sm:$0xf]
        %v2741 = vld [vmem:[%s7 + $0x60] sm:$0xf]
        %v2742 = vld [vmem:[%s7 + $0x64] sm:$0xf]
        %v2743 = vld [vmem:[%s7 + $0x68] sm:$0xf]
        %v2744 = vld [vmem:[%s7 + $0x6c] sm:$0xf]
        %v2745 = vld [vmem:[%s7 + $0x70] sm:$0xf]
        %v2746 = vld [vmem:[%s7 + $0x74] sm:$0xf]
        %v2747 = vld [vmem:[%s7 + $0x78] sm:$0xf]
        %v2748 = vld [vmem:[%s7 + $0x7c] sm:$0xf]
        %v2749 = vld [vmem:[%s7 + $0x80] sm:$0xf]
        %v2750 = vld [vmem:[%s7 + $0x84] sm:$0xf]
        %v2751 = vld [vmem:[%s7 + $0x88] sm:$0xf]
        %v2752 = vld [vmem:[%s7 + $0x8c] sm:$0xf]
        %v2753 = vld [vmem:[%s8] sm:$0x1]
        %v2755 = vlaneseq
        %v2756 = vshrl.u32 %v2755, 7
        %v2757 = vsub.s32 0, %v2756
        %v2758 = vrot.slane %v2753, %v2757
        %v2796 = vunpack.c.l.b16 %v2717
        %v2797 = vunpack.c.l.b16 %v2718
        %v2798 = vunpack.c.l.b16 %v2719
        %v2799 = vunpack.c.l.b16 %v2720
        %v2800 = vunpack.c.l.b16 %v2721
        %v2801 = vunpack.c.l.b16 %v2722
        %v2802 = vunpack.c.l.b16 %v2723
        %v2803 = vunpack.c.l.b16 %v2724
        %v2804 = vunpack.c.l.b16 %v2725
        %v2805 = vunpack.c.l.b16 %v2726
        %v2806 = vunpack.c.l.b16 %v2727
        %v2807 = vunpack.c.l.b16 %v2728
        %v2808 = vunpack.c.l.b16 %v2729
        %v2809 = vunpack.c.l.b16 %v2730
        %v2810 = vunpack.c.l.b16 %v2731
        %v2811 = vunpack.c.l.b16 %v2732
        %v2812 = vunpack.c.l.b16 %v2733
        %v2813 = vunpack.c.l.b16 %v2734
        %v2814 = vunpack.c.l.b16 %v2735
        %v2815 = vunpack.c.l.b16 %v2736
        %v2816 = vunpack.c.l.b16 %v2737
        %v2817 = vunpack.c.l.b16 %v2738
        %v2818 = vunpack.c.l.b16 %v2739
        %v2819 = vunpack.c.l.b16 %v2740
        %v2820 = vunpack.c.l.b16 %v2741
        %v2821 = vunpack.c.l.b16 %v2742
        %v2822 = vunpack.c.l.b16 %v2743
        %v2823 = vunpack.c.l.b16 %v2744
        %v2824 = vunpack.c.l.b16 %v2745
        %v2825 = vunpack.c.l.b16 %v2746
        %v2826 = vunpack.c.l.b16 %v2747
        %v2827 = vunpack.c.l.b16 %v2748
        %v2828 = vunpack.c.l.b16 %v2749
        %v2829 = vunpack.c.l.b16 %v2750
        %v2830 = vunpack.c.l.b16 %v2751
        %v2831 = vunpack.c.l.b16 %v2752
        %v2832 = vpack.c.b16 %v2797, %v2796
        %v2833 = vpack.c.b16 %v2799, %v2798
        %v2834 = vpack.c.b16 %v2801, %v2800
        %v2835 = vpack.c.b16 %v2803, %v2802
        %v2836 = vpack.c.b16 %v2805, %v2804
        %v2837 = vpack.c.b16 %v2807, %v2806
        %v2838 = vpack.c.b16 %v2809, %v2808
        %v2839 = vpack.c.b16 %v2811, %v2810
        %v2840 = vpack.c.b16 %v2813, %v2812
        %v2841 = vpack.c.b16 %v2815, %v2814
        %v2842 = vpack.c.b16 %v2817, %v2816
        %v2843 = vpack.c.b16 %v2819, %v2818
        %v2844 = vpack.c.b16 %v2821, %v2820
        %v2845 = vpack.c.b16 %v2823, %v2822
        %v2846 = vpack.c.b16 %v2825, %v2824
        %v2847 = vpack.c.b16 %v2827, %v2826
        %v2848 = vpack.c.b16 %v2829, %v2828
        %v2849 = vpack.c.b16 %v2831, %v2830
        %v2869 = vsel %vm1726, %v2707, 0
        %v2872 = vsel %vm1726, %v2710, 0
        %v2875 = vsel %vm1726, %v2713, 0
        %v2878 = vsel %vm1726, %v2716, 0
        %2880 = vmatprep.subr.bf16.mxu0 0
        %2881 = vmatpush1.bf16.msra.mxu0 %v2832
        %2882 = vmatprep.subr.bf16.mxu0 0
        %2883 = vmatpush1.bf16.msra.mxu0 %v2833
        %2884 = vmatprep.subr.bf16.mxu0 0
        %2885 = vmatpush1.bf16.msra.mxu0 %v2834
        %2886 = vmatprep.subr.bf16.mxu0 0
        %2887 = vmatpush1.bf16.msra.mxu0 %v2835
        %2888 = vmatprep.subr.bf16.mxu0 0
        %2889 = vmatpush1.bf16.msra.mxu0 %v2836
        %2890 = vmatprep.subr.bf16.mxu0 0
        %2891 = vmatpush1.bf16.msra.mxu0 %v2837
        %2892 = vmatprep.subr.bf16.mxu0 0
        %2893 = vmatpush1.bf16.msra.mxu0 %v2838
        %2894 = vmatprep.subr.bf16.mxu0 0
        %2895 = vmatpush1.bf16.msra.mxu0 %v2839
        %2896 = vmatprep.subr.bf16.mxu0 0
        %2897 = vmatpush1.bf16.msra.mxu0 %v2840
        %2898 = vmatprep.subr.bf16.mxu0 0
        %2899 = vmatpush1.bf16.msra.mxu0 %v2841
        %2900 = vmatprep.subr.bf16.mxu0 0
        %2901 = vmatpush1.bf16.msra.mxu0 %v2842
        %2902 = vmatprep.subr.bf16.mxu0 0
        %2903 = vmatpush1.bf16.msra.mxu0 %v2843
        %2904 = vmatprep.subr.bf16.mxu0 0
        %2905 = vmatpush1.bf16.msra.mxu0 %v2844
        %2906 = vmatprep.subr.bf16.mxu0 0
        %2907 = vmatpush1.bf16.msra.mxu0 %v2845
        %2908 = vmatprep.subr.bf16.mxu0 0
        %2909 = vmatpush1.bf16.msra.mxu0 %v2846
        %2910 = vmatprep.subr.bf16.mxu0 0
        %2911 = vmatpush1.bf16.msra.mxu0 %v2847
        %2912 = vmatprep.mubr.bf16.mxu0 %v2706
        %2913 = vmatmul.mubr.bf16.gmra.mrb[0].mxu0 %v2705
        %v2914 = vpop.f32.mrb[0].mxu0
        %v2915 = vadd.f32 %v2758, %v2914
        %v2916 = vpop.f32.mrb[0].mxu0
        %v2917 = vpop.f32.mrb[0].mxu0
        %v2918 = vadd.f32 %v2758, %v2917
        %v2919 = vpop.f32.mrb[0].mxu0
        %2920 = vmatprep.mubr.bf16.mxu0 %v2709
        %2921 = vmatmul.mubr.bf16.gmra.mrb[0].mxu0 %v2708
        %v2922 = vpop.f32.mrb[0].mxu0
        %v2923 = vadd.f32 %v2758, %v2922
        %v2924 = vpop.f32.mrb[0].mxu0
        %v2925 = vpop.f32.mrb[0].mxu0
        %v2926 = vadd.f32 %v2758, %v2925
        %v2927 = vpop.f32.mrb[0].mxu0
        %2928 = vmatprep.mubr.bf16.mxu0 %v2712
        %2929 = vmatmul.mubr.bf16.gmra.mrb[0].mxu0 %v2711
        %v2930 = vpop.f32.mrb[0].mxu0
        %v2931 = vadd.f32 %v2758, %v2930
        %v2932 = vpop.f32.mrb[0].mxu0
        %v2933 = vpop.f32.mrb[0].mxu0
        %v2934 = vadd.f32 %v2758, %v2933
        %v2935 = vpop.f32.mrb[0].mxu0
        %2936 = vmatprep.mubr.bf16.mxu0 %v2715
        %2937 = vmatmul.mubr.bf16.gmra.mrb[0].mxu0 %v2714
        %v2938 = vpop.f32.mrb[0].mxu0
        %v2939 = vadd.f32 %v2758, %v2938
        %v2940 = vpop.f32.mrb[0].mxu0
        %v2941 = vpop.f32.mrb[0].mxu0
        %v2942 = vpop.f32.mrb[0].mxu0
        %2943 = vdwg.mxu0
        %2944 = vmatprep.subr.bf16.mxu0 0
        %2945 = vmatpush1.bf16.msra.mxu0 %v2848
        %2946 = vmatprep.subr.bf16.mxu0 0
        %2947 = vmatpush1.bf16.msra.mxu0 %v2849
        %2948 = vmatprep.subr.bf16.mxu0 0
        %2949 = vmatpush1.bf16.msra.mxu0 0
        %2950 = vmatprep.subr.bf16.mxu0 0
        %2951 = vmatpush1.bf16.msra.mxu0 0
        %2952 = vmatprep.subr.bf16.mxu0 0
        %2953 = vmatpush1.bf16.msra.mxu0 0
        %2954 = vmatprep.subr.bf16.mxu0 0
        %2955 = vmatpush1.bf16.msra.mxu0 0
        %2956 = vmatprep.subr.bf16.mxu0 0
        %2957 = vmatpush1.bf16.msra.mxu0 0
        %2958 = vmatprep.subr.bf16.mxu0 0
        %2959 = vmatpush1.bf16.msra.mxu0 0
        %2960 = vmatprep.subr.bf16.mxu0 0
        %2961 = vmatpush1.bf16.msra.mxu0 0
        %2962 = vmatprep.subr.bf16.mxu0 0
        %2963 = vmatpush1.bf16.msra.mxu0 0
        %2964 = vmatprep.subr.bf16.mxu0 0
        %2965 = vmatpush1.bf16.msra.mxu0 0
        %2966 = vmatprep.subr.bf16.mxu0 0
        %2967 = vmatpush1.bf16.msra.mxu0 0
        %2968 = vmatprep.subr.bf16.mxu0 0
        %2969 = vmatpush1.bf16.msra.mxu0 0
        %2970 = vmatprep.subr.bf16.mxu0 0
        %2971 = vmatpush1.bf16.msra.mxu0 0
        %2972 = vmatprep.subr.bf16.mxu0 0
        %2973 = vmatpush1.bf16.msra.mxu0 0
        %2974 = vmatprep.subr.bf16.mxu0 0
        %2975 = vmatpush1.bf16.msra.mxu0 0
        %2976 = vmatprep.mubr.bf16.mxu0 0
        %2977 = vmatmul.mubr.bf16.gmra.mrb[0].mxu0 %v2869
        %v2978 = vpop.f32.mrb[0].mxu0
        %v2979 = vadd.f32 %v2915, %v2978
        %v2980 = vpop.f32.mrb[0].mxu0
        %v2981 = vpop.f32.mrb[0].mxu0
        %v2982 = vadd.f32 %v2918, %v2981
        %v2983 = vpop.f32.mrb[0].mxu0
        %2984 = vmatprep.mubr.bf16.mxu0 0
        %2985 = vmatmul.mubr.bf16.gmra.mrb[0].mxu0 %v2872
        %v2986 = vpop.f32.mrb[0].mxu0
        %v2987 = vadd.f32 %v2923, %v2986
        %v2988 = vpop.f32.mrb[0].mxu0
        %v2989 = vpop.f32.mrb[0].mxu0
        %v2990 = vadd.f32 %v2926, %v2989
        %v2991 = vpop.f32.mrb[0].mxu0
        %2992 = vmatprep.mubr.bf16.mxu0 0
        %2993 = vmatmul.mubr.bf16.gmra.mrb[0].mxu0 %v2875
        %v2994 = vpop.f32.mrb[0].mxu0
        %v2995 = vadd.f32 %v2931, %v2994
        %v2996 = vpop.f32.mrb[0].mxu0
        %v2997 = vpop.f32.mrb[0].mxu0
        %v2998 = vadd.f32 %v2934, %v2997
        %v2999 = vpop.f32.mrb[0].mxu0
        %3000 = vmatprep.mubr.bf16.mxu0 0
        %3001 = vmatmul.mubr.bf16.gmra.mrb[0].mxu0 %v2878
        %v3002 = vpop.f32.mrb[0].mxu0
        %v3003 = vadd.f32 %v2939, %v3002
        %v3004 = vpop.f32.mrb[0].mxu0
        %v3005 = vpop.f32.mrb[0].mxu0
        %v3006 = vpop.f32.mrb[0].mxu0
        %3007 = vdwg.mxu0
        %v3008 = vmax.f32 %v2979, 0.0
        %v3009 = vmax.f32 %v2982, 0.0
        %v3010 = vmax.f32 %v2987, 0.0
        %v3011 = vmax.f32 %v2990, 0.0
        %v3012 = vmax.f32 %v2995, 0.0
        %v3013 = vmax.f32 %v2998, 0.0
        %v3014 = vmax.f32 %v3003, 0.0
        %v3022 = vrot.slane %v3008, 1
        %v3023 = vrot.slane %v3009, 1
        %v3024 = vsel %vm2043, %v3022, %v3023
        %v3025 = vrot.slane %v3010, 1
        %v3026 = vsel %vm2043, %v3023, %v3025
        %v3027 = vrot.slane %v3011, 1
        %v3028 = vsel %vm2043, %v3025, %v3027
        %v3029 = vrot.slane %v3012, 1
        %v3030 = vsel %vm2043, %v3027, %v3029
        %v3031 = vrot.slane %v3013, 1
        %v3032 = vsel %vm2043, %v3029, %v3031
        %v3033 = vrot.slane %v3014, 1
        %v3034 = vsel %vm2043, %v3031, %v3033
        %v3035 = vsel %vm2043, %v3033, %v2044
        %3036 = vrot.lane.b32.xlu0 %v3024, 64
        %v3037 = vpop.permute.xlu0 %3036
        %3038 = vrot.lane.b32.xlu0 %v3026, 64
        %v3039 = vpop.permute.xlu0 %3038
        %3040 = vrot.lane.b32.xlu0 %v3028, 64
        %v3041 = vpop.permute.xlu0 %3040
        %3042 = vrot.lane.b32.xlu0 %v3030, 64
        %v3043 = vpop.permute.xlu0 %3042
        %3044 = vrot.lane.b32.xlu0 %v3032, 64
        %v3045 = vpop.permute.xlu0 %3044
        %3046 = vrot.lane.b32.xlu0 %v3034, 64
        %v3047 = vpop.permute.xlu0 %3046
        %3048 = vrot.lane.b32.xlu0 %v3035, 64
        %v3049 = vpop.permute.xlu0 %3048
        %v3057 = vrot.slane %v3008, 2
        %v3058 = vrot.slane %v3009, 2
        %v3059 = vsel %vm2116, %v3057, %v3058
        %v3060 = vrot.slane %v3010, 2
        %v3061 = vsel %vm2116, %v3058, %v3060
        %v3062 = vrot.slane %v3011, 2
        %v3063 = vsel %vm2116, %v3060, %v3062
        %v3064 = vrot.slane %v3012, 2
        %v3065 = vsel %vm2116, %v3062, %v3064
        %v3066 = vrot.slane %v3013, 2
        %v3067 = vsel %vm2116, %v3064, %v3066
        %v3068 = vrot.slane %v3014, 2
        %v3069 = vsel %vm2116, %v3066, %v3068
        %v3070 = vsel %vm2116, %v3068, %v2117
        %v3078 = vrot.slane %v3008, 7
        %v3079 = vrot.slane %v3009, 7
        %v3080 = vsel %vm2189, %v3078, %v3079
        %v3081 = vrot.slane %v3010, 7
        %v3082 = vsel %vm2189, %v3079, %v3081
        %v3083 = vrot.slane %v3011, 7
        %v3084 = vsel %vm2189, %v3081, %v3083
        %v3085 = vrot.slane %v3012, 7
        %v3086 = vsel %vm2189, %v3083, %v3085
        %v3087 = vrot.slane %v3013, 7
        %v3088 = vsel %vm2189, %v3085, %v3087
        %v3089 = vrot.slane %v3014, 7
        %v3090 = vsel %vm2189, %v3087, %v3089
        %v3091 = vsel %vm2189, %v3089, %v2190
        %3092 = vrot.lane.b32.xlu0 %v3080, 64
        %v3093 = vpop.permute.xlu0 %3092
        %3094 = vrot.lane.b32.xlu0 %v3082, 64
        %v3095 = vpop.permute.xlu0 %3094
        %3096 = vrot.lane.b32.xlu0 %v3084, 64
        %v3097 = vpop.permute.xlu0 %3096
        %3098 = vrot.lane.b32.xlu0 %v3086, 64
        %v3099 = vpop.permute.xlu0 %3098
        %3100 = vrot.lane.b32.xlu0 %v3088, 64
        %v3101 = vpop.permute.xlu0 %3100
        %3102 = vrot.lane.b32.xlu0 %v3090, 64
        %v3103 = vpop.permute.xlu0 %3102
        %3104 = vrot.lane.b32.xlu0 %v3091, 64
        %v3105 = vpop.permute.xlu0 %3104
        %v3113 = vsel %vm2043, %v2044, %v2044
        %3114 = vrot.lane.b32.xlu0 %v3113, 64
        %v3115 = vpop.permute.xlu0 %3114
        %v3117 = vrot.slane %v3009, 6
        %v3118 = vrot.slane %v3010, 6
        %v3119 = vsel %vm631, %v3117, %v3118
        %v3120 = vrot.slane %v3011, 6
        %v3121 = vsel %vm631, %v3118, %v3120
        %v3122 = vrot.slane %v3012, 6
        %v3123 = vsel %vm631, %v3120, %v3122
        %v3124 = vrot.slane %v3013, 6
        %v3125 = vsel %vm631, %v3122, %v3124
        %v3126 = vrot.slane %v3014, 6
        %v3127 = vsel %vm631, %v3124, %v3126
        %v3128 = vsel %vm631, %v3126, %v2377
        %v3129 = vsel %vm631, %v2377, %v2377
        %v3137 = vsel %vm2189, %v2190, %v2190
        %3138 = vrot.lane.b32.xlu0 %v3137, 64
        %v3139 = vpop.permute.xlu0 %3138
        %v3141 = vsel %vm1741, %v3008, %v3037
        %v3142 = vsel %vm1741, %v3009, %v3039
        %v3143 = vsel %vm1741, %v3010, %v3041
        %v3144 = vsel %vm1741, %v3011, %v3043
        %v3145 = vsel %vm1741, %v3012, %v3045
        %v3146 = vsel %vm1741, %v3013, %v3047
        %v3147 = vsel %vm1741, %v3014, %v3049
        %v3148 = vsel %vm1741, %v3059, %v3093
        %v3149 = vsel %vm1741, %v3061, %v3095
        %v3150 = vsel %vm1741, %v3063, %v3097
        %v3151 = vsel %vm1741, %v3065, %v3099
        %v3152 = vsel %vm1741, %v3067, %v3101
        %v3153 = vsel %vm1741, %v3069, %v3103
        %v3154 = vsel %vm1741, %v3070, %v3105
        %v3155 = vsel %vm1741, 0.0, %v3115
        %v3156 = vsel %vm1741, %v3119, %v3095
        %v3157 = vsel %vm1741, %v3121, %v3097
        %v3158 = vsel %vm1741, %v3123, %v3099
        %v3159 = vsel %vm1741, %v3125, %v3101
        %v3160 = vsel %vm1741, %v3127, %v3103
        %v3161 = vsel %vm1741, %v3128, %v3105
        %v3162 = vsel %vm1741, %v3129, %v3139
        %v3163 = vpack.c.bf16 %v3142, %v3141
        %v3164 = vpack.c.bf16 %v3149, %v3148
        %v3165 = vpack.c.bf16 %v3143, %v3142
        %v3166 = vpack.c.bf16 %v3157, %v3156
        %v3167 = vpack.c.bf16 %v3011, %v3010
        %v3168 = vpack.c.bf16 %v3144, %v3143
        %v3169 = vpack.c.bf16 %v3151, %v3150
        %v3170 = vpack.c.bf16 %v3145, %v3144
        %v3171 = vpack.c.bf16 %v3159, %v3158
        %v3172 = vpack.c.bf16 %v3013, %v3012
        %v3173 = vpack.c.bf16 %v3146, %v3145
        %v3174 = vpack.c.bf16 %v3153, %v3152
        %v3175 = vpack.c.bf16 %v3147, %v3146
        %v3176 = vpack.c.bf16 %v3161, %v3160
        %v3177 = vpack.c.bf16 0.0, %v3014
        %v3178 = vpack.c.bf16 %v3147, %v3147
        %v3179 = vpack.c.bf16 %v3154, %v3154
        %v3180 = vpack.c.bf16 %v3155, %v3155
        %v3181 = vpack.c.bf16 %v3162, %v3162
        %v3182 = vpack.c.bf16 0.0, 0.0
        %v3183 = vld [vmem:[%s9] sm:$0xf]
        %v3184 = vld [vmem:[%s9 + $0x4] sm:$0xf]
        %v3185 = vld [vmem:[%s9 + $0x8] sm:$0xf]
        %v3186 = vld [vmem:[%s9 + $0xc] sm:$0xf]
        %v3187 = vld [vmem:[%s9 + $0x10] sm:$0xf]
        %v3188 = vld [vmem:[%s9 + $0x14] sm:$0xf]
        %v3189 = vld [vmem:[%s9 + $0x18] sm:$0xf]
        %v3190 = vld [vmem:[%s9 + $0x1c] sm:$0xf]
        %v3191 = vld [vmem:[%s9 + $0x20] sm:$0xf]
        %v3192 = vld [vmem:[%s9 + $0x24] sm:$0xf]
        %v3193 = vld [vmem:[%s9 + $0x28] sm:$0xf]
        %v3194 = vld [vmem:[%s9 + $0x2c] sm:$0xf]
        %v3195 = vld [vmem:[%s9 + $0x30] sm:$0xf]
        %v3196 = vld [vmem:[%s9 + $0x34] sm:$0xf]
        %v3197 = vld [vmem:[%s9 + $0x38] sm:$0xf]
        %v3198 = vld [vmem:[%s9 + $0x3c] sm:$0xf]
        %v3199 = vld [vmem:[%s9 + $0x40] sm:$0xf]
        %v3200 = vld [vmem:[%s9 + $0x44] sm:$0xf]
        %v3201 = vld [vmem:[%s9 + $0x48] sm:$0xf]
        %v3202 = vld [vmem:[%s9 + $0x4c] sm:$0xf]
        %v3203 = vld [vmem:[%s9 + $0x50] sm:$0xf]
        %v3204 = vld [vmem:[%s9 + $0x54] sm:$0xf]
        %v3205 = vld [vmem:[%s9 + $0x58] sm:$0xf]
        %v3206 = vld [vmem:[%s9 + $0x5c] sm:$0xf]
        %v3207 = vld [vmem:[%s9 + $0x60] sm:$0xf]
        %v3208 = vld [vmem:[%s9 + $0x64] sm:$0xf]
        %v3209 = vld [vmem:[%s9 + $0x68] sm:$0xf]
        %v3210 = vld [vmem:[%s9 + $0x6c] sm:$0xf]
        %v3211 = vld [vmem:[%s9 + $0x70] sm:$0xf]
        %v3212 = vld [vmem:[%s9 + $0x74] sm:$0xf]
        %v3213 = vld [vmem:[%s9 + $0x78] sm:$0xf]
        %v3214 = vld [vmem:[%s9 + $0x7c] sm:$0xf]
        %v3215 = vld [vmem:[%s9 + $0x80] sm:$0xf]
        %v3216 = vld [vmem:[%s9 + $0x84] sm:$0xf]
        %v3217 = vld [vmem:[%s9 + $0x88] sm:$0xf]
        %v3218 = vld [vmem:[%s9 + $0x8c] sm:$0xf]
        %v3219 = vld [vmem:[%s9 + $0x90] sm:$0xf]
        %v3220 = vld [vmem:[%s9 + $0x94] sm:$0xf]
        %v3221 = vld [vmem:[%s9 + $0x98] sm:$0xf]
        %v3222 = vld [vmem:[%s9 + $0x9c] sm:$0xf]
        %v3223 = vld [vmem:[%s9 + $0xa0] sm:$0xf]
        %v3224 = vld [vmem:[%s9 + $0xa4] sm:$0xf]
        %v3225 = vld [vmem:[%s9 + $0xa8] sm:$0xf]
        %v3226 = vld [vmem:[%s9 + $0xac] sm:$0xf]
        %v3227 = vld [vmem:[%s9 + $0xb0] sm:$0xf]
        %v3228 = vld [vmem:[%s9 + $0xb4] sm:$0xf]
        %v3229 = vld [vmem:[%s9 + $0xb8] sm:$0xf]
        %v3230 = vld [vmem:[%s9 + $0xbc] sm:$0xf]
        %v3231 = vld [vmem:[%s9 + $0xc0] sm:$0xf]
        %v3232 = vld [vmem:[%s9 + $0xc4] sm:$0xf]
        %v3233 = vld [vmem:[%s9 + $0xc8] sm:$0xf]
        %v3234 = vld [vmem:[%s9 + $0xcc] sm:$0xf]
        %v3235 = vld [vmem:[%s9 + $0xd0] sm:$0xf]
        %v3236 = vld [vmem:[%s9 + $0xd4] sm:$0xf]
        %v3237 = vld [vmem:[%s9 + $0xd8] sm:$0xf]
        %v3238 = vld [vmem:[%s9 + $0xdc] sm:$0xf]
        %v3239 = vld [vmem:[%s9 + $0xe0] sm:$0xf]
        %v3240 = vld [vmem:[%s9 + $0xe4] sm:$0xf]
        %v3241 = vld [vmem:[%s9 + $0xe8] sm:$0xf]
        %v3242 = vld [vmem:[%s9 + $0xec] sm:$0xf]
        %v3243 = vld [vmem:[%s9 + $0xf0] sm:$0xf]
        %v3244 = vld [vmem:[%s9 + $0xf4] sm:$0xf]
        %v3245 = vld [vmem:[%s9 + $0xf8] sm:$0xf]
        %v3246 = vld [vmem:[%s9 + $0xfc] sm:$0xf]
        %v3247 = vld [vmem:[%s9 + $0x100] sm:$0xf]
        %v3248 = vld [vmem:[%s9 + $0x104] sm:$0xf]
        %v3249 = vld [vmem:[%s9 + $0x108] sm:$0xf]
        %v3250 = vld [vmem:[%s9 + $0x10c] sm:$0xf]
        %v3251 = vld [vmem:[%s9 + $0x110] sm:$0xf]
        %v3252 = vld [vmem:[%s9 + $0x114] sm:$0xf]
        %v3253 = vld [vmem:[%s9 + $0x118] sm:$0xf]
        %v3254 = vld [vmem:[%s9 + $0x11c] sm:$0xf]
        %v3255 = vld [vmem:[%s10] sm:$0x1]
        %v3257 = vlaneseq
        %v3258 = vshrl.u32 %v3257, 7
        %v3259 = vsub.s32 0, %v3258
        %v3260 = vrot.slane %v3255, %v3259
        %v3334 = vunpack.c.l.b16 %v3183
        %v3335 = vunpack.c.l.b16 %v3184
        %v3336 = vunpack.c.l.b16 %v3185
        %v3337 = vunpack.c.l.b16 %v3186
        %v3338 = vunpack.c.l.b16 %v3187
        %v3339 = vunpack.c.l.b16 %v3188
        %v3340 = vunpack.c.l.b16 %v3189
        %v3341 = vunpack.c.l.b16 %v3190
        %v3342 = vunpack.c.l.b16 %v3191
        %v3343 = vunpack.c.l.b16 %v3192
        %v3344 = vunpack.c.l.b16 %v3193
        %v3345 = vunpack.c.l.b16 %v3194
        %v3346 = vunpack.c.l.b16 %v3195
        %v3347 = vunpack.c.l.b16 %v3196
        %v3348 = vunpack.c.l.b16 %v3197
        %v3349 = vunpack.c.l.b16 %v3198
        %v3350 = vunpack.c.l.b16 %v3199
        %v3351 = vunpack.c.l.b16 %v3200
        %v3352 = vunpack.c.l.b16 %v3201
        %v3353 = vunpack.c.l.b16 %v3202
        %v3354 = vunpack.c.l.b16 %v3203
        %v3355 = vunpack.c.l.b16 %v3204
        %v3356 = vunpack.c.l.b16 %v3205
        %v3357 = vunpack.c.l.b16 %v3206
        %v3358 = vunpack.c.l.b16 %v3207
        %v3359 = vunpack.c.l.b16 %v3208
        %v3360 = vunpack.c.l.b16 %v3209
        %v3361 = vunpack.c.l.b16 %v3210
        %v3362 = vunpack.c.l.b16 %v3211
        %v3363 = vunpack.c.l.b16 %v3212
        %v3364 = vunpack.c.l.b16 %v3213
        %v3365 = vunpack.c.l.b16 %v3214
        %v3366 = vunpack.c.l.b16 %v3215
        %v3367 = vunpack.c.l.b16 %v3216
        %v3368 = vunpack.c.l.b16 %v3217
        %v3369 = vunpack.c.l.b16 %v3218
        %v3370 = vunpack.c.l.b16 %v3219
        %v3371 = vunpack.c.l.b16 %v3220
        %v3372 = vunpack.c.l.b16 %v3221
        %v3373 = vunpack.c.l.b16 %v3222
        %v3374 = vunpack.c.l.b16 %v3223
        %v3375 = vunpack.c.l.b16 %v3224
        %v3376 = vunpack.c.l.b16 %v3225
        %v3377 = vunpack.c.l.b16 %v3226
        %v3378 = vunpack.c.l.b16 %v3227
        %v3379 = vunpack.c.l.b16 %v3228
        %v3380 = vunpack.c.l.b16 %v3229
        %v3381 = vunpack.c.l.b16 %v3230
        %v3382 = vunpack.c.l.b16 %v3231
        %v3383 = vunpack.c.l.b16 %v3232
        %v3384 = vunpack.c.l.b16 %v3233
        %v3385 = vunpack.c.l.b16 %v3234
        %v3386 = vunpack.c.l.b16 %v3235
        %v3387 = vunpack.c.l.b16 %v3236
        %v3388 = vunpack.c.l.b16 %v3237
        %v3389 = vunpack.c.l.b16 %v3238
        %v3390 = vunpack.c.l.b16 %v3239
        %v3391 = vunpack.c.l.b16 %v3240
        %v3392 = vunpack.c.l.b16 %v3241
        %v3393 = vunpack.c.l.b16 %v3242
        %v3394 = vunpack.c.l.b16 %v3243
        %v3395 = vunpack.c.l.b16 %v3244
        %v3396 = vunpack.c.l.b16 %v3245
        %v3397 = vunpack.c.l.b16 %v3246
        %v3398 = vunpack.c.l.b16 %v3247
        %v3399 = vunpack.c.l.b16 %v3248
        %v3400 = vunpack.c.l.b16 %v3249
        %v3401 = vunpack.c.l.b16 %v3250
        %v3402 = vunpack.c.l.b16 %v3251
        %v3403 = vunpack.c.l.b16 %v3252
        %v3404 = vunpack.c.l.b16 %v3253
        %v3405 = vunpack.c.l.b16 %v3254
        %v3406 = vpack.c.b16 %v3335, %v3334
        %v3407 = vpack.c.b16 %v3337, %v3336
        %v3408 = vpack.c.b16 %v3339, %v3338
        %v3409 = vpack.c.b16 %v3341, %v3340
        %v3410 = vpack.c.b16 %v3343, %v3342
        %v3411 = vpack.c.b16 %v3345, %v3344
        %v3412 = vpack.c.b16 %v3347, %v3346
        %v3413 = vpack.c.b16 %v3349, %v3348
        %v3414 = vpack.c.b16 %v3351, %v3350
        %v3415 = vpack.c.b16 %v3353, %v3352
        %v3416 = vpack.c.b16 %v3355, %v3354
        %v3417 = vpack.c.b16 %v3357, %v3356
        %v3418 = vpack.c.b16 %v3359, %v3358
        %v3419 = vpack.c.b16 %v3361, %v3360
        %v3420 = vpack.c.b16 %v3363, %v3362
        %v3421 = vpack.c.b16 %v3365, %v3364
        %v3422 = vpack.c.b16 %v3367, %v3366
        %v3423 = vpack.c.b16 %v3369, %v3368
        %v3424 = vpack.c.b16 %v3371, %v3370
        %v3425 = vpack.c.b16 %v3373, %v3372
        %v3426 = vpack.c.b16 %v3375, %v3374
        %v3427 = vpack.c.b16 %v3377, %v3376
        %v3428 = vpack.c.b16 %v3379, %v3378
        %v3429 = vpack.c.b16 %v3381, %v3380
        %v3430 = vpack.c.b16 %v3383, %v3382
        %v3431 = vpack.c.b16 %v3385, %v3384
        %v3432 = vpack.c.b16 %v3387, %v3386
        %v3433 = vpack.c.b16 %v3389, %v3388
        %v3434 = vpack.c.b16 %v3391, %v3390
        %v3435 = vpack.c.b16 %v3393, %v3392
        %v3436 = vpack.c.b16 %v3395, %v3394
        %v3437 = vpack.c.b16 %v3397, %v3396
        %v3438 = vpack.c.b16 %v3399, %v3398
        %v3439 = vpack.c.b16 %v3401, %v3400
        %v3440 = vpack.c.b16 %v3403, %v3402
        %v3441 = vpack.c.b16 %v3405, %v3404
        %v3479 = vsel %vm1741, %v3167, 0
        %v3482 = vsel %vm1741, %v3172, 0
        %v3485 = vsel %vm1741, %v3177, 0
        %v3488 = vsel %vm1741, %v3182, 0
        %3490 = vmatprep.subr.bf16.mxu0 0
        %3491 = vmatpush1.bf16.msra.mxu0 %v3406
        %3492 = vmatprep.subr.bf16.mxu0 0
        %3493 = vmatpush1.bf16.msra.mxu0 %v3407
        %3494 = vmatprep.subr.bf16.mxu0 0
        %3495 = vmatpush1.bf16.msra.mxu0 %v3408
        %3496 = vmatprep.subr.bf16.mxu0 0
        %3497 = vmatpush1.bf16.msra.mxu0 %v3409
        %3498 = vmatprep.subr.bf16.mxu0 0
        %3499 = vmatpush1.bf16.msra.mxu0 %v3410
        %3500 = vmatprep.subr.bf16.mxu0 0
        %3501 = vmatpush1.bf16.msra.mxu0 %v3411
        %3502 = vmatprep.subr.bf16.mxu0 0
        %3503 = vmatpush1.bf16.msra.mxu0 %v3412
        %3504 = vmatprep.subr.bf16.mxu0 0
        %3505 = vmatpush1.bf16.msra.mxu0 %v3413
        %3506 = vmatprep.subr.bf16.mxu0 0
        %3507 = vmatpush1.bf16.msra.mxu0 %v3414
        %3508 = vmatprep.subr.bf16.mxu0 0
        %3509 = vmatpush1.bf16.msra.mxu0 %v3415
        %3510 = vmatprep.subr.bf16.mxu0 0
        %3511 = vmatpush1.bf16.msra.mxu0 %v3416
        %3512 = vmatprep.subr.bf16.mxu0 0
        %3513 = vmatpush1.bf16.msra.mxu0 %v3417
        %3514 = vmatprep.subr.bf16.mxu0 0
        %3515 = vmatpush1.bf16.msra.mxu0 %v3418
        %3516 = vmatprep.subr.bf16.mxu0 0
        %3517 = vmatpush1.bf16.msra.mxu0 %v3419
        %3518 = vmatprep.subr.bf16.mxu0 0
        %3519 = vmatpush1.bf16.msra.mxu0 %v3420
        %3520 = vmatprep.subr.bf16.mxu0 0
        %3521 = vmatpush1.bf16.msra.mxu0 %v3421
        %3522 = vmatprep.mubr.bf16.mxu0 %v3164
        %3523 = vmatmul.mubr.bf16.gmra.mrb[0].mxu0 %v3163
        %v3524 = vpop.f32.mrb[0].mxu0
        %v3525 = vadd.f32 %v3260, %v3524
        %v3526 = vpop.f32.mrb[0].mxu0
        %v3527 = vpop.f32.mrb[0].mxu0
        %v3528 = vadd.f32 %v3260, %v3527
        %v3529 = vpop.f32.mrb[0].mxu0
        %3530 = vmatprep.mubr.bf16.mxu0 %v3169
        %3531 = vmatmul.mubr.bf16.gmra.mrb[0].mxu0 %v3168
        %v3532 = vpop.f32.mrb[0].mxu0
        %v3533 = vadd.f32 %v3260, %v3532
        %v3534 = vpop.f32.mrb[0].mxu0
        %v3535 = vpop.f32.mrb[0].mxu0
        %v3536 = vadd.f32 %v3260, %v3535
        %v3537 = vpop.f32.mrb[0].mxu0
        %3538 = vmatprep.mubr.bf16.mxu0 %v3174
        %3539 = vmatmul.mubr.bf16.gmra.mrb[0].mxu0 %v3173
        %v3540 = vpop.f32.mrb[0].mxu0
        %v3541 = vadd.f32 %v3260, %v3540
        %v3542 = vpop.f32.mrb[0].mxu0
        %v3543 = vpop.f32.mrb[0].mxu0
        %v3544 = vpop.f32.mrb[0].mxu0
        %3545 = vmatprep.mubr.bf16.mxu0 %v3179
        %3546 = vmatmul.mubr.bf16.gmra.mrb[0].mxu0 %v3178
        %v3547 = vpop.f32.mrb[0].mxu0
        %v3548 = vpop.f32.mrb[0].mxu0
        %v3549 = vpop.f32.mrb[0].mxu0
        %v3550 = vpop.f32.mrb[0].mxu0
        %3551 = vdwg.mxu0
        %3552 = vmatprep.subr.bf16.mxu0 0
        %3553 = vmatpush1.bf16.msra.mxu0 %v3422
        %3554 = vmatprep.subr.bf16.mxu0 0
        %3555 = vmatpush1.bf16.msra.mxu0 %v3423
        %3556 = vmatprep.subr.bf16.mxu0 0
        %3557 = vmatpush1.bf16.msra.mxu0 %v3424
        %3558 = vmatprep.subr.bf16.mxu0 0
        %3559 = vmatpush1.bf16.msra.mxu0 %v3425
        %3560 = vmatprep.subr.bf16.mxu0 0
        %3561 = vmatpush1.bf16.msra.mxu0 %v3426
        %3562 = vmatprep.subr.bf16.mxu0 0
        %3563 = vmatpush1.bf16.msra.mxu0 %v3427
        %3564 = vmatprep.subr.bf16.mxu0 0
        %3565 = vmatpush1.bf16.msra.mxu0 %v3428
        %3566 = vmatprep.subr.bf16.mxu0 0
        %3567 = vmatpush1.bf16.msra.mxu0 %v3429
        %3568 = vmatprep.subr.bf16.mxu0 0
        %3569 = vmatpush1.bf16.msra.mxu0 %v3430
        %3570 = vmatprep.subr.bf16.mxu0 0
        %3571 = vmatpush1.bf16.msra.mxu0 %v3431
        %3572 = vmatprep.subr.bf16.mxu0 0
        %3573 = vmatpush1.bf16.msra.mxu0 %v3432
        %3574 = vmatprep.subr.bf16.mxu0 0
        %3575 = vmatpush1.bf16.msra.mxu0 %v3433
        %3576 = vmatprep.subr.bf16.mxu0 0
        %3577 = vmatpush1.bf16.msra.mxu0 %v3434
        %3578 = vmatprep.subr.bf16.mxu0 0
        %3579 = vmatpush1.bf16.msra.mxu0 %v3435
        %3580 = vmatprep.subr.bf16.mxu0 0
        %3581 = vmatpush1.bf16.msra.mxu0 %v3436
        %3582 = vmatprep.subr.bf16.mxu0 0
        %3583 = vmatpush1.bf16.msra.mxu0 %v3437
        %3584 = vmatprep.mubr.bf16.mxu0 %v3166
        %3585 = vmatmul.mubr.bf16.gmra.mrb[0].mxu0 %v3165
        %v3586 = vpop.f32.mrb[0].mxu0
        %v3587 = vadd.f32 %v3525, %v3586
        %v3588 = vpop.f32.mrb[0].mxu0
        %v3589 = vpop.f32.mrb[0].mxu0
        %v3590 = vadd.f32 %v3528, %v3589
        %v3591 = vpop.f32.mrb[0].mxu0
        %3592 = vmatprep.mubr.bf16.mxu0 %v3171
        %3593 = vmatmul.mubr.bf16.gmra.mrb[0].mxu0 %v3170
        %v3594 = vpop.f32.mrb[0].mxu0
        %v3595 = vadd.f32 %v3533, %v3594
        %v3596 = vpop.f32.mrb[0].mxu0
        %v3597 = vpop.f32.mrb[0].mxu0
        %v3598 = vadd.f32 %v3536, %v3597
        %v3599 = vpop.f32.mrb[0].mxu0
        %3600 = vmatprep.mubr.bf16.mxu0 %v3176
        %3601 = vmatmul.mubr.bf16.gmra.mrb[0].mxu0 %v3175
        %v3602 = vpop.f32.mrb[0].mxu0
        %v3603 = vadd.f32 %v3541, %v3602
        %v3604 = vpop.f32.mrb[0].mxu0
        %v3605 = vpop.f32.mrb[0].mxu0
        %v3606 = vpop.f32.mrb[0].mxu0
        %3607 = vmatprep.mubr.bf16.mxu0 %v3181
        %3608 = vmatmul.mubr.bf16.gmra.mrb[0].mxu0 %v3180
        %v3609 = vpop.f32.mrb[0].mxu0
        %v3610 = vpop.f32.mrb[0].mxu0
        %v3611 = vpop.f32.mrb[0].mxu0
        %v3612 = vpop.f32.mrb[0].mxu0
        %3613 = vdwg.mxu0
        %3614 = vmatprep.subr.bf16.mxu0 0
        %3615 = vmatpush1.bf16.msra.mxu0 %v3438
        %3616 = vmatprep.subr.bf16.mxu0 0
        %3617 = vmatpush1.bf16.msra.mxu0 %v3439
        %3618 = vmatprep.subr.bf16.mxu0 0
        %3619 = vmatpush1.bf16.msra.mxu0 %v3440
        %3620 = vmatprep.subr.bf16.mxu0 0
        %3621 = vmatpush1.bf16.msra.mxu0 %v3441
        %3622 = vmatprep.subr.bf16.mxu0 0
        %3623 = vmatpush1.bf16.msra.mxu0 0
        %3624 = vmatprep.subr.bf16.mxu0 0
        %3625 = vmatpush1.bf16.msra.mxu0 0
        %3626 = vmatprep.subr.bf16.mxu0 0
        %3627 = vmatpush1.bf16.msra.mxu0 0
        %3628 = vmatprep.subr.bf16.mxu0 0
        %3629 = vmatpush1.bf16.msra.mxu0 0
        %3630 = vmatprep.subr.bf16.mxu0 0
        %3631 = vmatpush1.bf16.msra.mxu0 0
        %3632 = vmatprep.subr.bf16.mxu0 0
        %3633 = vmatpush1.bf16.msra.mxu0 0
        %3634 = vmatprep.subr.bf16.mxu0 0
        %3635 = vmatpush1.bf16.msra.mxu0 0
        %3636 = vmatprep.subr.bf16.mxu0 0
        %3637 = vmatpush1.bf16.msra.mxu0 0
        %3638 = vmatprep.subr.bf16.mxu0 0
        %3639 = vmatpush1.bf16.msra.mxu0 0
        %3640 = vmatprep.subr.bf16.mxu0 0
        %3641 = vmatpush1.bf16.msra.mxu0 0
        %3642 = vmatprep.subr.bf16.mxu0 0
        %3643 = vmatpush1.bf16.msra.mxu0 0
        %3644 = vmatprep.subr.bf16.mxu0 0
        %3645 = vmatpush1.bf16.msra.mxu0 0
        %3646 = vmatprep.mubr.bf16.mxu0 0
        %3647 = vmatmul.mubr.bf16.gmra.mrb[0].mxu0 %v3479
        %v3648 = vpop.f32.mrb[0].mxu0
        %v3649 = vadd.f32 %v3587, %v3648
        %v3650 = vpop.f32.mrb[0].mxu0
        %v3651 = vpop.f32.mrb[0].mxu0
        %v3652 = vadd.f32 %v3590, %v3651
        %v3653 = vpop.f32.mrb[0].mxu0
        %3654 = vmatprep.mubr.bf16.mxu0 0
        %3655 = vmatmul.mubr.bf16.gmra.mrb[0].mxu0 %v3482
        %v3656 = vpop.f32.mrb[0].mxu0
        %v3657 = vadd.f32 %v3595, %v3656
        %v3658 = vpop.f32.mrb[0].mxu0
        %v3659 = vpop.f32.mrb[0].mxu0
        %v3660 = vadd.f32 %v3598, %v3659
        %v3661 = vpop.f32.mrb[0].mxu0
        %3662 = vmatprep.mubr.bf16.mxu0 0
        %3663 = vmatmul.mubr.bf16.gmra.mrb[0].mxu0 %v3485
        %v3664 = vpop.f32.mrb[0].mxu0
        %v3665 = vadd.f32 %v3603, %v3664
        %v3666 = vpop.f32.mrb[0].mxu0
        %v3667 = vpop.f32.mrb[0].mxu0
        %v3668 = vpop.f32.mrb[0].mxu0
        %3669 = vmatprep.mubr.bf16.mxu0 0
        %3670 = vmatmul.mubr.bf16.gmra.mrb[0].mxu0 %v3488
        %v3671 = vpop.f32.mrb[0].mxu0
        %v3672 = vpop.f32.mrb[0].mxu0
        %v3673 = vpop.f32.mrb[0].mxu0
        %v3674 = vpop.f32.mrb[0].mxu0
        %3675 = vdwg.mxu0
        %v3676 = vmax.f32 %v3649, 0.0
        %v3677 = vmax.f32 %v3652, 0.0
        %v3678 = vmax.f32 %v3657, 0.0
        %v3679 = vmax.f32 %v3660, 0.0
        %v3680 = vmax.f32 %v3665, 0.0
        %v3682 = vrot.slane %v3676, 1
        %3683 = vrot.lane.b32.xlu0 %v3682, 64
        %v3684 = vpop.permute.xlu0 %3683
        %v3686 = vrot.slane %v3676, 2
        %v3688 = vrot.slane %v3676, 3
        %3689 = vrot.lane.b32.xlu0 %v3688, 64
        %v3690 = vpop.permute.xlu0 %3689
        %v3692 = vrot.slane %v3676, 4
        %v3694 = vrot.slane %v3676, 7
        %3695 = vrot.lane.b32.xlu0 %v3694, 64
        %v3696 = vpop.permute.xlu0 %3695
        %v3699 = vrot.slane %v3677, 1
        %3700 = vrot.lane.b32.xlu0 %v3699, 64
        %v3701 = vpop.permute.xlu0 %3700
        %v3703 = vrot.slane %v3677, 2
        %v3705 = vrot.slane %v3677, 3
        %3706 = vrot.lane.b32.xlu0 %v3705, 64
        %v3707 = vpop.permute.xlu0 %3706
        %v3709 = vrot.slane %v3677, 6
        %v3711 = vrot.slane %v3677, 7
        %3712 = vrot.lane.b32.xlu0 %v3711, 64
        %v3713 = vpop.permute.xlu0 %3712
        %v3716 = vrot.slane %v3678, 1
        %3717 = vrot.lane.b32.xlu0 %v3716, 64
        %v3718 = vpop.permute.xlu0 %3717
        %v3720 = vrot.slane %v3678, 2
        %v3722 = vrot.slane %v3678, 5
        %3723 = vrot.lane.b32.xlu0 %v3722, 64
        %v3724 = vpop.permute.xlu0 %3723
        %v3726 = vsel %vm1741, %v3676, %v3684
        %v3727 = vsel %vm1741, %v3686, %v3690
        %v3728 = vsel %vm1741, %v3692, %v3696
        %v3729 = vsel %vm1741, %v3677, %v3701
        %v3730 = vsel %vm1741, %v3703, %v3707
        %v3731 = vsel %vm1741, %v3709, %v3713
        %v3732 = vsel %vm1741, %v3678, %v3718
        %v3733 = vsel %vm1741, %v3720, %v3724
        %v3735 = vrot.slane %v3679, 2
        %v3737 = vrot.slane %v3679, 3
        %3738 = vrot.lane.b32.xlu0 %v3737, 64
        %v3739 = vpop.permute.xlu0 %3738
        %v3741 = vrot.slane %v3679, 6
        %v3743 = vrot.slane %v3679, 7
        %3744 = vrot.lane.b32.xlu0 %v3743, 64
        %v3745 = vpop.permute.xlu0 %3744
        %v3747 = vrot.slane %v3679, 1
        %3748 = vrot.lane.b32.xlu0 %v3747, 64
        %v3749 = vpop.permute.xlu0 %3748
        %v3752 = vrot.slane %v3680, 2
        %v3753 = vsel %vm1741, %v3735, %v3739
        %v3754 = vsel %vm1741, %v3741, %v3745
        %v3755 = vsel %vm1741, %v3679, %v3749
        %v3760 = vrot.slane %v3732, 6
        %v3761 = vrot.slane %v3753, 6
        %v3762 = vrot.slane %v3754, 6
        %v3763 = vrot.slane %v3755, 6
        %v3764 = vrot.slane %v3752, 6
        %v3770 = vpack.c.bf16 %v3726, %v3726
        %v3771 = vpack.c.bf16 %v3727, %v3727
        %v3772 = vpack.c.bf16 %v3728, %v3728
        %v3773 = vpack.c.bf16 %v3729, %v3729
        %v3774 = vpack.c.bf16 %v3730, %v3730
        %v3775 = vpack.c.bf16 %v3731, %v3731
        %v3776 = vpack.c.bf16 %v3732, %v3732
        %v3777 = vpack.c.bf16 %v3733, %v3733
        %v3778 = vpack.c.bf16 %v3760, %v3760
        %v3779 = vpack.c.bf16 %v3761, %v3761
        %v3780 = vpack.c.bf16 %v3762, %v3762
        %v3781 = vpack.c.bf16 %v3763, %v3763
        %v3782 = vpack.c.bf16 %v3764, %v3764
        %v3783 = vld [vmem:[%s11] sm:$0xf]
        %v3784 = vld [vmem:[%s11 + $0x4] sm:$0xf]
        %v3785 = vld [vmem:[%s11 + $0x8] sm:$0xf]
        %v3786 = vld [vmem:[%s11 + $0xc] sm:$0xf]
        %v3787 = vld [vmem:[%s11 + $0x10] sm:$0xf]
        %v3788 = vld [vmem:[%s11 + $0x14] sm:$0xf]
        %v3789 = vld [vmem:[%s11 + $0x18] sm:$0xf]
        %v3790 = vld [vmem:[%s11 + $0x1c] sm:$0xf]
        %v3791 = vld [vmem:[%s11 + $0x20] sm:$0xf]
        %v3792 = vld [vmem:[%s11 + $0x24] sm:$0xf]
        %v3793 = vld [vmem:[%s11 + $0x28] sm:$0xf]
        %v3794 = vld [vmem:[%s11 + $0x2c] sm:$0xf]
        %v3795 = vld [vmem:[%s11 + $0x30] sm:$0xf]
        %v3796 = vld [vmem:[%s11 + $0x34] sm:$0xf]
        %v3797 = vld [vmem:[%s11 + $0x38] sm:$0xf]
        %v3798 = vld [vmem:[%s11 + $0x3c] sm:$0xf]
        %v3799 = vld [vmem:[%s11 + $0x40] sm:$0xf]
        %v3800 = vld [vmem:[%s11 + $0x44] sm:$0xf]
        %v3801 = vld [vmem:[%s11 + $0x48] sm:$0xf]
        %v3802 = vld [vmem:[%s11 + $0x4c] sm:$0xf]
        %v3803 = vld [vmem:[%s11 + $0x50] sm:$0xf]
        %v3804 = vld [vmem:[%s11 + $0x54] sm:$0xf]
        %v3805 = vld [vmem:[%s11 + $0x58] sm:$0xf]
        %v3806 = vld [vmem:[%s11 + $0x5c] sm:$0xf]
        %v3807 = vld [vmem:[%s11 + $0x60] sm:$0xf]
        %v3808 = vld [vmem:[%s11 + $0x64] sm:$0xf]
        %v3809 = vld [vmem:[%s11 + $0x68] sm:$0xf]
        %v3810 = vld [vmem:[%s11 + $0x6c] sm:$0xf]
        %v3811 = vld [vmem:[%s11 + $0x70] sm:$0xf]
        %v3812 = vld [vmem:[%s11 + $0x74] sm:$0xf]
        %v3813 = vld [vmem:[%s11 + $0x78] sm:$0xf]
        %v3814 = vld [vmem:[%s11 + $0x7c] sm:$0xf]
        %v3815 = vld [vmem:[%s11 + $0x80] sm:$0xf]
        %v3816 = vld [vmem:[%s11 + $0x84] sm:$0xf]
        %v3817 = vld [vmem:[%s11 + $0x88] sm:$0xf]
        %v3818 = vld [vmem:[%s11 + $0x8c] sm:$0xf]
        %v3819 = vld [vmem:[%s11 + $0x90] sm:$0xf]
        %v3820 = vld [vmem:[%s11 + $0x94] sm:$0xf]
        %v3821 = vld [vmem:[%s11 + $0x98] sm:$0xf]
        %v3822 = vld [vmem:[%s11 + $0x9c] sm:$0xf]
        %v3823 = vld [vmem:[%s11 + $0xa0] sm:$0xf]
        %v3824 = vld [vmem:[%s11 + $0xa4] sm:$0xf]
        %v3825 = vld [vmem:[%s11 + $0xa8] sm:$0xf]
        %v3826 = vld [vmem:[%s11 + $0xac] sm:$0xf]
        %v3827 = vld [vmem:[%s11 + $0xb0] sm:$0xf]
        %v3828 = vld [vmem:[%s11 + $0xb4] sm:$0xf]
        %v3829 = vld [vmem:[%s11 + $0xb8] sm:$0xf]
        %v3830 = vld [vmem:[%s11 + $0xbc] sm:$0xf]
        %v3831 = vld [vmem:[%s11 + $0xc0] sm:$0xf]
        %v3832 = vld [vmem:[%s11 + $0xc4] sm:$0xf]
        %v3833 = vld [vmem:[%s11 + $0xc8] sm:$0xf]
        %v3834 = vld [vmem:[%s11 + $0xcc] sm:$0xf]
        %v3835 = vld [vmem:[%s11 + $0xd0] sm:$0xf]
        %v3836 = vld [vmem:[%s11 + $0xd4] sm:$0xf]
        %v3837 = vld [vmem:[%s11 + $0xd8] sm:$0xf]
        %v3838 = vld [vmem:[%s11 + $0xdc] sm:$0xf]
        %v3839 = vld [vmem:[%s11 + $0xe0] sm:$0xf]
        %v3840 = vld [vmem:[%s11 + $0xe4] sm:$0xf]
        %v3841 = vld [vmem:[%s11 + $0xe8] sm:$0xf]
        %v3842 = vld [vmem:[%s11 + $0xec] sm:$0xf]
        %v3843 = vld [vmem:[%s11 + $0xf0] sm:$0xf]
        %v3844 = vld [vmem:[%s11 + $0xf4] sm:$0xf]
        %v3845 = vld [vmem:[%s11 + $0xf8] sm:$0xf]
        %v3846 = vld [vmem:[%s11 + $0xfc] sm:$0xf]
        %v3847 = vld [vmem:[%s11 + $0x100] sm:$0xf]
        %v3848 = vld [vmem:[%s11 + $0x104] sm:$0xf]
        %v3849 = vld [vmem:[%s11 + $0x108] sm:$0xf]
        %v3850 = vld [vmem:[%s11 + $0x10c] sm:$0xf]
        %v3851 = vld [vmem:[%s11 + $0x110] sm:$0xf]
        %v3852 = vld [vmem:[%s11 + $0x114] sm:$0xf]
        %v3853 = vld [vmem:[%s11 + $0x118] sm:$0xf]
        %v3854 = vld [vmem:[%s11 + $0x11c] sm:$0xf]
        %v3855 = vld [vmem:[%s11 + $0x120] sm:$0xf]
        %v3856 = vld [vmem:[%s11 + $0x124] sm:$0xf]
        %v3857 = vld [vmem:[%s11 + $0x128] sm:$0xf]
        %v3858 = vld [vmem:[%s11 + $0x12c] sm:$0xf]
        %v3859 = vld [vmem:[%s11 + $0x130] sm:$0xf]
        %v3860 = vld [vmem:[%s11 + $0x134] sm:$0xf]
        %v3861 = vld [vmem:[%s11 + $0x138] sm:$0xf]
        %v3862 = vld [vmem:[%s11 + $0x13c] sm:$0xf]
        %v3863 = vld [vmem:[%s11 + $0x140] sm:$0xf]
        %v3864 = vld [vmem:[%s11 + $0x144] sm:$0xf]
        %v3865 = vld [vmem:[%s11 + $0x148] sm:$0xf]
        %v3866 = vld [vmem:[%s11 + $0x14c] sm:$0xf]
        %v3867 = vld [vmem:[%s11 + $0x150] sm:$0xf]
        %v3868 = vld [vmem:[%s11 + $0x154] sm:$0xf]
        %v3869 = vld [vmem:[%s11 + $0x158] sm:$0xf]
        %v3870 = vld [vmem:[%s11 + $0x15c] sm:$0xf]
        %v3871 = vld [vmem:[%s11 + $0x160] sm:$0xf]
        %v3872 = vld [vmem:[%s11 + $0x164] sm:$0xf]
        %v3873 = vld [vmem:[%s11 + $0x168] sm:$0xf]
        %v3874 = vld [vmem:[%s11 + $0x16c] sm:$0xf]
        %v3875 = vld [vmem:[%s11 + $0x170] sm:$0xf]
        %v3876 = vld [vmem:[%s11 + $0x174] sm:$0xf]
        %v3877 = vld [vmem:[%s11 + $0x178] sm:$0xf]
        %v3878 = vld [vmem:[%s11 + $0x17c] sm:$0xf]
        %v3879 = vld [vmem:[%s11 + $0x180] sm:$0xf]
        %v3880 = vld [vmem:[%s11 + $0x184] sm:$0xf]
        %v3881 = vld [vmem:[%s11 + $0x188] sm:$0xf]
        %v3882 = vld [vmem:[%s11 + $0x18c] sm:$0xf]
        %v3883 = vld [vmem:[%s11 + $0x190] sm:$0xf]
        %v3884 = vld [vmem:[%s11 + $0x194] sm:$0xf]
        %v3885 = vld [vmem:[%s11 + $0x198] sm:$0xf]
        %v3886 = vld [vmem:[%s11 + $0x19c] sm:$0xf]
        %v3887 = vld [vmem:[%s11 + $0x1a0] sm:$0xf]
        %v3888 = vld [vmem:[%s11 + $0x1a4] sm:$0xf]
        %v3889 = vld [vmem:[%s11 + $0x1a8] sm:$0xf]
        %v3890 = vld [vmem:[%s11 + $0x1ac] sm:$0xf]
        %v3891 = vld [vmem:[%s11 + $0x1b0] sm:$0xf]
        %v3892 = vld [vmem:[%s11 + $0x1b4] sm:$0xf]
        %v3893 = vld [vmem:[%s11 + $0x1b8] sm:$0xf]
        %v3894 = vld [vmem:[%s11 + $0x1bc] sm:$0xf]
        %v3895 = vld [vmem:[%s11 + $0x1c0] sm:$0xf]
        %v3896 = vld [vmem:[%s11 + $0x1c4] sm:$0xf]
        %v3897 = vld [vmem:[%s11 + $0x1c8] sm:$0xf]
        %v3898 = vld [vmem:[%s11 + $0x1cc] sm:$0xf]
        %v3899 = vld [vmem:[%s11 + $0x1d0] sm:$0xf]
        %v3900 = vld [vmem:[%s11 + $0x1d4] sm:$0xf]
        %v3901 = vld [vmem:[%s11 + $0x1d8] sm:$0xf]
        %v3902 = vld [vmem:[%s11 + $0x1dc] sm:$0xf]
        %v3903 = vld [vmem:[%s11 + $0x1e0] sm:$0xf]
        %v3904 = vld [vmem:[%s11 + $0x1e4] sm:$0xf]
        %v3905 = vld [vmem:[%s11 + $0x1e8] sm:$0xf]
        %v3906 = vld [vmem:[%s11 + $0x1ec] sm:$0xf]
        %v3907 = vld [vmem:[%s11 + $0x1f0] sm:$0xf]
        %v3908 = vld [vmem:[%s11 + $0x1f4] sm:$0xf]
        %v3909 = vld [vmem:[%s11 + $0x1f8] sm:$0xf]
        %v3910 = vld [vmem:[%s11 + $0x1fc] sm:$0xf]
        %v3911 = vld [vmem:[%s11 + $0x200] sm:$0xf]
        %v3912 = vld [vmem:[%s11 + $0x204] sm:$0xf]
        %v3913 = vld [vmem:[%s11 + $0x208] sm:$0xf]
        %v3914 = vld [vmem:[%s11 + $0x20c] sm:$0xf]
        %v3915 = vld [vmem:[%s11 + $0x210] sm:$0xf]
        %v3916 = vld [vmem:[%s11 + $0x214] sm:$0xf]
        %v3917 = vld [vmem:[%s11 + $0x218] sm:$0xf]
        %v3918 = vld [vmem:[%s11 + $0x21c] sm:$0xf]
        %v3919 = vld [vmem:[%s11 + $0x220] sm:$0xf]
        %v3920 = vld [vmem:[%s11 + $0x224] sm:$0xf]
        %v3921 = vld [vmem:[%s11 + $0x228] sm:$0xf]
        %v3922 = vld [vmem:[%s11 + $0x22c] sm:$0xf]
        %v3923 = vld [vmem:[%s11 + $0x230] sm:$0xf]
        %v3924 = vld [vmem:[%s11 + $0x234] sm:$0xf]
        %v3925 = vld [vmem:[%s11 + $0x238] sm:$0xf]
        %v3926 = vld [vmem:[%s11 + $0x23c] sm:$0xf]
        %v3927 = vld [vmem:[%s11 + $0x240] sm:$0xf]
        %v3928 = vld [vmem:[%s11 + $0x244] sm:$0xf]
        %v3929 = vld [vmem:[%s11 + $0x248] sm:$0xf]
        %v3930 = vld [vmem:[%s11 + $0x24c] sm:$0xf]
        %v3931 = vld [vmem:[%s11 + $0x250] sm:$0xf]
        %v3932 = vld [vmem:[%s11 + $0x254] sm:$0xf]
        %v3933 = vld [vmem:[%s11 + $0x258] sm:$0xf]
        %v3934 = vld [vmem:[%s11 + $0x25c] sm:$0xf]
        %v3935 = vld [vmem:[%s11 + $0x260] sm:$0xf]
        %v3936 = vld [vmem:[%s11 + $0x264] sm:$0xf]
        %v3937 = vld [vmem:[%s11 + $0x268] sm:$0xf]
        %v3938 = vld [vmem:[%s11 + $0x26c] sm:$0xf]
        %v3939 = vld [vmem:[%s11 + $0x270] sm:$0xf]
        %v3940 = vld [vmem:[%s11 + $0x274] sm:$0xf]
        %v3941 = vld [vmem:[%s11 + $0x278] sm:$0xf]
        %v3942 = vld [vmem:[%s11 + $0x27c] sm:$0xf]
        %v3943 = vld [vmem:[%s11 + $0x280] sm:$0xf]
        %v3944 = vld [vmem:[%s11 + $0x284] sm:$0xf]
        %v3945 = vld [vmem:[%s11 + $0x288] sm:$0xf]
        %v3946 = vld [vmem:[%s11 + $0x28c] sm:$0xf]
        %v3947 = vld [vmem:[%s11 + $0x290] sm:$0xf]
        %v3948 = vld [vmem:[%s11 + $0x294] sm:$0xf]
        %v3949 = vld [vmem:[%s11 + $0x298] sm:$0xf]
        %v3950 = vld [vmem:[%s11 + $0x29c] sm:$0xf]
        %v3951 = vld [vmem:[%s11 + $0x2a0] sm:$0xf]
        %v3952 = vld [vmem:[%s11 + $0x2a4] sm:$0xf]
        %v3953 = vld [vmem:[%s11 + $0x2a8] sm:$0xf]
        %v3954 = vld [vmem:[%s11 + $0x2ac] sm:$0xf]
        %v3955 = vld [vmem:[%s11 + $0x2b0] sm:$0xf]
        %v3956 = vld [vmem:[%s11 + $0x2b4] sm:$0xf]
        %v3957 = vld [vmem:[%s11 + $0x2b8] sm:$0xf]
        %v3958 = vld [vmem:[%s11 + $0x2bc] sm:$0xf]
        %v3959 = vld [vmem:[%s11 + $0x2c0] sm:$0xf]
        %v3960 = vld [vmem:[%s11 + $0x2c4] sm:$0xf]
        %v3961 = vld [vmem:[%s11 + $0x2c8] sm:$0xf]
        %v3962 = vld [vmem:[%s11 + $0x2cc] sm:$0xf]
        %v3963 = vld [vmem:[%s11 + $0x2d0] sm:$0xf]
        %v3964 = vld [vmem:[%s11 + $0x2d4] sm:$0xf]
        %v3965 = vld [vmem:[%s11 + $0x2d8] sm:$0xf]
        %v3966 = vld [vmem:[%s11 + $0x2dc] sm:$0xf]
        %v3967 = vld [vmem:[%s11 + $0x2e0] sm:$0xf]
        %v3968 = vld [vmem:[%s11 + $0x2e4] sm:$0xf]
        %v3969 = vld [vmem:[%s11 + $0x2e8] sm:$0xf]
        %v3970 = vld [vmem:[%s11 + $0x2ec] sm:$0xf]
        %v3971 = vld [vmem:[%s11 + $0x2f0] sm:$0xf]
        %v3972 = vld [vmem:[%s11 + $0x2f4] sm:$0xf]
        %v3973 = vld [vmem:[%s11 + $0x2f8] sm:$0xf]
        %v3974 = vld [vmem:[%s11 + $0x2fc] sm:$0xf]
        %v3975 = vld [vmem:[%s11 + $0x300] sm:$0xf]
        %v3976 = vld [vmem:[%s11 + $0x304] sm:$0xf]
        %v3977 = vld [vmem:[%s11 + $0x308] sm:$0xf]
        %v3978 = vld [vmem:[%s11 + $0x30c] sm:$0xf]
        %v3979 = vld [vmem:[%s11 + $0x310] sm:$0xf]
        %v3980 = vld [vmem:[%s11 + $0x314] sm:$0xf]
        %v3981 = vld [vmem:[%s11 + $0x318] sm:$0xf]
        %v3982 = vld [vmem:[%s11 + $0x31c] sm:$0xf]
        %v3983 = vld [vmem:[%s12] sm:$0x1]
        %v4184 = vunpack.c.l.b16 %v3783
        %v4185 = vunpack.c.l.b16 %v3784
        %v4186 = vunpack.c.l.b16 %v3785
        %v4187 = vunpack.c.l.b16 %v3786
        %v4188 = vunpack.c.l.b16 %v3787
        %v4189 = vunpack.c.l.b16 %v3788
        %v4190 = vunpack.c.l.b16 %v3789
        %v4191 = vunpack.c.l.b16 %v3790
        %v4192 = vunpack.c.l.b16 %v3791
        %v4193 = vunpack.c.l.b16 %v3792
        %v4194 = vunpack.c.l.b16 %v3793
        %v4195 = vunpack.c.l.b16 %v3794
        %v4196 = vunpack.c.l.b16 %v3795
        %v4197 = vunpack.c.l.b16 %v3796
        %v4198 = vunpack.c.l.b16 %v3797
        %v4199 = vunpack.c.l.b16 %v3798
        %v4200 = vunpack.c.l.b16 %v3799
        %v4201 = vunpack.c.l.b16 %v3800
        %v4202 = vunpack.c.l.b16 %v3801
        %v4203 = vunpack.c.l.b16 %v3802
        %v4204 = vunpack.c.l.b16 %v3803
        %v4205 = vunpack.c.l.b16 %v3804
        %v4206 = vunpack.c.l.b16 %v3805
        %v4207 = vunpack.c.l.b16 %v3806
        %v4208 = vunpack.c.l.b16 %v3807
        %v4209 = vunpack.c.l.b16 %v3808
        %v4210 = vunpack.c.l.b16 %v3809
        %v4211 = vunpack.c.l.b16 %v3810
        %v4212 = vunpack.c.l.b16 %v3811
        %v4213 = vunpack.c.l.b16 %v3812
        %v4214 = vunpack.c.l.b16 %v3813
        %v4215 = vunpack.c.l.b16 %v3814
        %v4216 = vunpack.c.l.b16 %v3815
        %v4217 = vunpack.c.l.b16 %v3816
        %v4218 = vunpack.c.l.b16 %v3817
        %v4219 = vunpack.c.l.b16 %v3818
        %v4220 = vunpack.c.l.b16 %v3819
        %v4221 = vunpack.c.l.b16 %v3820
        %v4222 = vunpack.c.l.b16 %v3821
        %v4223 = vunpack.c.l.b16 %v3822
        %v4224 = vunpack.c.l.b16 %v3823
        %v4225 = vunpack.c.l.b16 %v3824
        %v4226 = vunpack.c.l.b16 %v3825
        %v4227 = vunpack.c.l.b16 %v3826
        %v4228 = vunpack.c.l.b16 %v3827
        %v4229 = vunpack.c.l.b16 %v3828
        %v4230 = vunpack.c.l.b16 %v3829
        %v4231 = vunpack.c.l.b16 %v3830
        %v4232 = vunpack.c.l.b16 %v3831
        %v4233 = vunpack.c.l.b16 %v3832
        %v4234 = vunpack.c.l.b16 %v3833
        %v4235 = vunpack.c.l.b16 %v3834
        %v4236 = vunpack.c.l.b16 %v3835
        %v4237 = vunpack.c.l.b16 %v3836
        %v4238 = vunpack.c.l.b16 %v3837
        %v4239 = vunpack.c.l.b16 %v3838
        %v4240 = vunpack.c.l.b16 %v3839
        %v4241 = vunpack.c.l.b16 %v3840
        %v4242 = vunpack.c.l.b16 %v3841
        %v4243 = vunpack.c.l.b16 %v3842
        %v4244 = vunpack.c.l.b16 %v3843
        %v4245 = vunpack.c.l.b16 %v3844
        %v4246 = vunpack.c.l.b16 %v3845
        %v4247 = vunpack.c.l.b16 %v3846
        %v4248 = vunpack.c.l.b16 %v3847
        %v4249 = vunpack.c.l.b16 %v3848
        %v4250 = vunpack.c.l.b16 %v3849
        %v4251 = vunpack.c.l.b16 %v3850
        %v4252 = vunpack.c.l.b16 %v3851
        %v4253 = vunpack.c.l.b16 %v3852
        %v4254 = vunpack.c.l.b16 %v3853
        %v4255 = vunpack.c.l.b16 %v3854
        %v4256 = vunpack.c.l.b16 %v3855
        %v4257 = vunpack.c.l.b16 %v3856
        %v4258 = vunpack.c.l.b16 %v3857
        %v4259 = vunpack.c.l.b16 %v3858
        %v4260 = vunpack.c.l.b16 %v3859
        %v4261 = vunpack.c.l.b16 %v3860
        %v4262 = vunpack.c.l.b16 %v3861
        %v4263 = vunpack.c.l.b16 %v3862
        %v4264 = vunpack.c.l.b16 %v3863
        %v4265 = vunpack.c.l.b16 %v3864
        %v4266 = vunpack.c.l.b16 %v3865
        %v4267 = vunpack.c.l.b16 %v3866
        %v4268 = vunpack.c.l.b16 %v3867
        %v4269 = vunpack.c.l.b16 %v3868
        %v4270 = vunpack.c.l.b16 %v3869
        %v4271 = vunpack.c.l.b16 %v3870
        %v4272 = vunpack.c.l.b16 %v3871
        %v4273 = vunpack.c.l.b16 %v3872
        %v4274 = vunpack.c.l.b16 %v3873
        %v4275 = vunpack.c.l.b16 %v3874
        %v4276 = vunpack.c.l.b16 %v3875
        %v4277 = vunpack.c.l.b16 %v3876
        %v4278 = vunpack.c.l.b16 %v3877
        %v4279 = vunpack.c.l.b16 %v3878
        %v4280 = vunpack.c.l.b16 %v3879
        %v4281 = vunpack.c.l.b16 %v3880
        %v4282 = vunpack.c.l.b16 %v3881
        %v4283 = vunpack.c.l.b16 %v3882
        %v4284 = vunpack.c.l.b16 %v3883
        %v4285 = vunpack.c.l.b16 %v3884
        %v4286 = vunpack.c.l.b16 %v3885
        %v4287 = vunpack.c.l.b16 %v3886
        %v4288 = vunpack.c.l.b16 %v3887
        %v4289 = vunpack.c.l.b16 %v3888
        %v4290 = vunpack.c.l.b16 %v3889
        %v4291 = vunpack.c.l.b16 %v3890
        %v4292 = vunpack.c.l.b16 %v3891
        %v4293 = vunpack.c.l.b16 %v3892
        %v4294 = vunpack.c.l.b16 %v3893
        %v4295 = vunpack.c.l.b16 %v3894
        %v4296 = vunpack.c.l.b16 %v3895
        %v4297 = vunpack.c.l.b16 %v3896
        %v4298 = vunpack.c.l.b16 %v3897
        %v4299 = vunpack.c.l.b16 %v3898
        %v4300 = vunpack.c.l.b16 %v3899
        %v4301 = vunpack.c.l.b16 %v3900
        %v4302 = vunpack.c.l.b16 %v3901
        %v4303 = vunpack.c.l.b16 %v3902
        %v4304 = vunpack.c.l.b16 %v3903
        %v4305 = vunpack.c.l.b16 %v3904
        %v4306 = vunpack.c.l.b16 %v3905
        %v4307 = vunpack.c.l.b16 %v3906
        %v4308 = vunpack.c.l.b16 %v3907
        %v4309 = vunpack.c.l.b16 %v3908
        %v4310 = vunpack.c.l.b16 %v3909
        %v4311 = vunpack.c.l.b16 %v3910
        %v4312 = vunpack.c.l.b16 %v3911
        %v4313 = vunpack.c.l.b16 %v3912
        %v4314 = vunpack.c.l.b16 %v3913
        %v4315 = vunpack.c.l.b16 %v3914
        %v4316 = vunpack.c.l.b16 %v3915
        %v4317 = vunpack.c.l.b16 %v3916
        %v4318 = vunpack.c.l.b16 %v3917
        %v4319 = vunpack.c.l.b16 %v3918
        %v4320 = vunpack.c.l.b16 %v3919
        %v4321 = vunpack.c.l.b16 %v3920
        %v4322 = vunpack.c.l.b16 %v3921
        %v4323 = vunpack.c.l.b16 %v3922
        %v4324 = vunpack.c.l.b16 %v3923
        %v4325 = vunpack.c.l.b16 %v3924
        %v4326 = vunpack.c.l.b16 %v3925
        %v4327 = vunpack.c.l.b16 %v3926
        %v4328 = vunpack.c.l.b16 %v3927
        %v4329 = vunpack.c.l.b16 %v3928
        %v4330 = vunpack.c.l.b16 %v3929
        %v4331 = vunpack.c.l.b16 %v3930
        %v4332 = vunpack.c.l.b16 %v3931
        %v4333 = vunpack.c.l.b16 %v3932
        %v4334 = vunpack.c.l.b16 %v3933
        %v4335 = vunpack.c.l.b16 %v3934
        %v4336 = vunpack.c.l.b16 %v3935
        %v4337 = vunpack.c.l.b16 %v3936
        %v4338 = vunpack.c.l.b16 %v3937
        %v4339 = vunpack.c.l.b16 %v3938
        %v4340 = vunpack.c.l.b16 %v3939
        %v4341 = vunpack.c.l.b16 %v3940
        %v4342 = vunpack.c.l.b16 %v3941
        %v4343 = vunpack.c.l.b16 %v3942
        %v4344 = vunpack.c.l.b16 %v3943
        %v4345 = vunpack.c.l.b16 %v3944
        %v4346 = vunpack.c.l.b16 %v3945
        %v4347 = vunpack.c.l.b16 %v3946
        %v4348 = vunpack.c.l.b16 %v3947
        %v4349 = vunpack.c.l.b16 %v3948
        %v4350 = vunpack.c.l.b16 %v3949
        %v4351 = vunpack.c.l.b16 %v3950
        %v4352 = vunpack.c.l.b16 %v3951
        %v4353 = vunpack.c.l.b16 %v3952
        %v4354 = vunpack.c.l.b16 %v3953
        %v4355 = vunpack.c.l.b16 %v3954
        %v4356 = vunpack.c.l.b16 %v3955
        %v4357 = vunpack.c.l.b16 %v3956
        %v4358 = vunpack.c.l.b16 %v3957
        %v4359 = vunpack.c.l.b16 %v3958
        %v4360 = vunpack.c.l.b16 %v3959
        %v4361 = vunpack.c.l.b16 %v3960
        %v4362 = vunpack.c.l.b16 %v3961
        %v4363 = vunpack.c.l.b16 %v3962
        %v4364 = vunpack.c.l.b16 %v3963
        %v4365 = vunpack.c.l.b16 %v3964
        %v4366 = vunpack.c.l.b16 %v3965
        %v4367 = vunpack.c.l.b16 %v3966
        %v4368 = vunpack.c.l.b16 %v3967
        %v4369 = vunpack.c.l.b16 %v3968
        %v4370 = vunpack.c.l.b16 %v3969
        %v4371 = vunpack.c.l.b16 %v3970
        %v4372 = vunpack.c.l.b16 %v3971
        %v4373 = vunpack.c.l.b16 %v3972
        %v4374 = vunpack.c.l.b16 %v3973
        %v4375 = vunpack.c.l.b16 %v3974
        %v4376 = vunpack.c.l.b16 %v3975
        %v4377 = vunpack.c.l.b16 %v3976
        %v4378 = vunpack.c.l.b16 %v3977
        %v4379 = vunpack.c.l.b16 %v3978
        %v4380 = vunpack.c.l.b16 %v3979
        %v4381 = vunpack.c.l.b16 %v3980
        %v4382 = vunpack.c.l.b16 %v3981
        %v4383 = vunpack.c.l.b16 %v3982
        %v4384 = vpack.c.b16 %v4185, %v4184
        %v4385 = vpack.c.b16 %v4187, %v4186
        %v4386 = vpack.c.b16 %v4189, %v4188
        %v4387 = vpack.c.b16 %v4191, %v4190
        %v4388 = vpack.c.b16 %v4193, %v4192
        %v4389 = vpack.c.b16 %v4195, %v4194
        %v4390 = vpack.c.b16 %v4197, %v4196
        %v4391 = vpack.c.b16 %v4199, %v4198
        %v4392 = vpack.c.b16 %v4201, %v4200
        %v4393 = vpack.c.b16 %v4203, %v4202
        %v4394 = vpack.c.b16 %v4205, %v4204
        %v4395 = vpack.c.b16 %v4207, %v4206
        %v4396 = vpack.c.b16 %v4209, %v4208
        %v4397 = vpack.c.b16 %v4211, %v4210
        %v4398 = vpack.c.b16 %v4213, %v4212
        %v4399 = vpack.c.b16 %v4215, %v4214
        %v4400 = vpack.c.b16 %v4217, %v4216
        %v4401 = vpack.c.b16 %v4219, %v4218
        %v4402 = vpack.c.b16 %v4221, %v4220
        %v4403 = vpack.c.b16 %v4223, %v4222
        %v4404 = vpack.c.b16 %v4225, %v4224
        %v4405 = vpack.c.b16 %v4227, %v4226
        %v4406 = vpack.c.b16 %v4229, %v4228
        %v4407 = vpack.c.b16 %v4231, %v4230
        %v4408 = vpack.c.b16 %v4233, %v4232
        %v4409 = vpack.c.b16 %v4235, %v4234
        %v4410 = vpack.c.b16 %v4237, %v4236
        %v4411 = vpack.c.b16 %v4239, %v4238
        %v4412 = vpack.c.b16 %v4241, %v4240
        %v4413 = vpack.c.b16 %v4243, %v4242
        %v4414 = vpack.c.b16 %v4245, %v4244
        %v4415 = vpack.c.b16 %v4247, %v4246
        %v4416 = vpack.c.b16 %v4249, %v4248
        %v4417 = vpack.c.b16 %v4251, %v4250
        %v4418 = vpack.c.b16 %v4253, %v4252
        %v4419 = vpack.c.b16 %v4255, %v4254
        %v4420 = vpack.c.b16 %v4257, %v4256
        %v4421 = vpack.c.b16 %v4259, %v4258
        %v4422 = vpack.c.b16 %v4261, %v4260
        %v4423 = vpack.c.b16 %v4263, %v4262
        %v4424 = vpack.c.b16 %v4265, %v4264
        %v4425 = vpack.c.b16 %v4267, %v4266
        %v4426 = vpack.c.b16 %v4269, %v4268
        %v4427 = vpack.c.b16 %v4271, %v4270
        %v4428 = vpack.c.b16 %v4273, %v4272
        %v4429 = vpack.c.b16 %v4275, %v4274
        %v4430 = vpack.c.b16 %v4277, %v4276
        %v4431 = vpack.c.b16 %v4279, %v4278
        %v4432 = vpack.c.b16 %v4281, %v4280
        %v4433 = vpack.c.b16 %v4283, %v4282
        %v4434 = vpack.c.b16 %v4285, %v4284
        %v4435 = vpack.c.b16 %v4287, %v4286
        %v4436 = vpack.c.b16 %v4289, %v4288
        %v4437 = vpack.c.b16 %v4291, %v4290
        %v4438 = vpack.c.b16 %v4293, %v4292
        %v4439 = vpack.c.b16 %v4295, %v4294
        %v4440 = vpack.c.b16 %v4297, %v4296
        %v4441 = vpack.c.b16 %v4299, %v4298
        %v4442 = vpack.c.b16 %v4301, %v4300
        %v4443 = vpack.c.b16 %v4303, %v4302
        %v4444 = vpack.c.b16 %v4305, %v4304
        %v4445 = vpack.c.b16 %v4307, %v4306
        %v4446 = vpack.c.b16 %v4309, %v4308
        %v4447 = vpack.c.b16 %v4311, %v4310
        %v4448 = vpack.c.b16 %v4313, %v4312
        %v4449 = vpack.c.b16 %v4315, %v4314
        %v4450 = vpack.c.b16 %v4317, %v4316
        %v4451 = vpack.c.b16 %v4319, %v4318
        %v4452 = vpack.c.b16 %v4321, %v4320
        %v4453 = vpack.c.b16 %v4323, %v4322
        %v4454 = vpack.c.b16 %v4325, %v4324
        %v4455 = vpack.c.b16 %v4327, %v4326
        %v4456 = vpack.c.b16 %v4329, %v4328
        %v4457 = vpack.c.b16 %v4331, %v4330
        %v4458 = vpack.c.b16 %v4333, %v4332
        %v4459 = vpack.c.b16 %v4335, %v4334
        %v4460 = vpack.c.b16 %v4337, %v4336
        %v4461 = vpack.c.b16 %v4339, %v4338
        %v4462 = vpack.c.b16 %v4341, %v4340
        %v4463 = vpack.c.b16 %v4343, %v4342
        %v4464 = vpack.c.b16 %v4345, %v4344
        %v4465 = vpack.c.b16 %v4347, %v4346
        %v4466 = vpack.c.b16 %v4349, %v4348
        %v4467 = vpack.c.b16 %v4351, %v4350
        %v4468 = vpack.c.b16 %v4353, %v4352
        %v4469 = vpack.c.b16 %v4355, %v4354
        %v4470 = vpack.c.b16 %v4357, %v4356
        %v4471 = vpack.c.b16 %v4359, %v4358
        %v4472 = vpack.c.b16 %v4361, %v4360
        %v4473 = vpack.c.b16 %v4363, %v4362
        %v4474 = vpack.c.b16 %v4365, %v4364
        %v4475 = vpack.c.b16 %v4367, %v4366
        %v4476 = vpack.c.b16 %v4369, %v4368
        %v4477 = vpack.c.b16 %v4371, %v4370
        %v4478 = vpack.c.b16 %v4373, %v4372
        %v4479 = vpack.c.b16 %v4375, %v4374
        %v4480 = vpack.c.b16 %v4377, %v4376
        %v4481 = vpack.c.b16 %v4379, %v4378
        %v4482 = vpack.c.b16 %v4381, %v4380
        %v4483 = vpack.c.b16 %v4383, %v4382
        %v4585 = vsel %vm1741, %v3782, 0
        %4587 = vmatprep.subr.bf16.mxu0 0
        %4588 = vmatpush1.bf16.msra.mxu0 %v4384
        %4589 = vmatprep.subr.bf16.mxu0 0
        %4590 = vmatpush1.bf16.msra.mxu0 %v4385
        %4591 = vmatprep.subr.bf16.mxu0 0
        %4592 = vmatpush1.bf16.msra.mxu0 %v4386
        %4593 = vmatprep.subr.bf16.mxu0 0
        %4594 = vmatpush1.bf16.msra.mxu0 %v4387
        %4595 = vmatprep.subr.bf16.mxu0 0
        %4596 = vmatpush1.bf16.msra.mxu0 %v4388
        %4597 = vmatprep.subr.bf16.mxu0 0
        %4598 = vmatpush1.bf16.msra.mxu0 %v4389
        %4599 = vmatprep.subr.bf16.mxu0 0
        %4600 = vmatpush1.bf16.msra.mxu0 %v4390
        %4601 = vmatprep.subr.bf16.mxu0 0
        %4602 = vmatpush1.bf16.msra.mxu0 %v4391
        %4603 = vmatprep.subr.bf16.mxu0 0
        %4604 = vmatpush1.bf16.msra.mxu0 %v4392
        %4605 = vmatprep.subr.bf16.mxu0 0
        %4606 = vmatpush1.bf16.msra.mxu0 %v4393
        %4607 = vmatprep.subr.bf16.mxu0 0
        %4608 = vmatpush1.bf16.msra.mxu0 %v4394
        %4609 = vmatprep.subr.bf16.mxu0 0
        %4610 = vmatpush1.bf16.msra.mxu0 %v4395
        %4611 = vmatprep.subr.bf16.mxu0 0
        %4612 = vmatpush1.bf16.msra.mxu0 %v4396
        %4613 = vmatprep.subr.bf16.mxu0 0
        %4614 = vmatpush1.bf16.msra.mxu0 %v4397
        %4615 = vmatprep.subr.bf16.mxu0 0
        %4616 = vmatpush1.bf16.msra.mxu0 %v4398
        %4617 = vmatprep.subr.bf16.mxu0 0
        %4618 = vmatpush1.bf16.msra.mxu0 %v4399
        %4619 = vmatprep.mubr.bf16.mxu0 %v3771
        %4620 = vmatmul.mubr.bf16.gmra.mrb[0].mxu0 %v3770
        %v4621 = vpop.f32.mrb[0].mxu0
        %v4622 = vadd.f32 %v3983, %v4621
        %v4623 = vpop.f32.mrb[0].mxu0
        %v4624 = vpop.f32.mrb[0].mxu0
        %v4625 = vpop.f32.mrb[0].mxu0
        %4626 = vdwg.mxu0
        %4627 = vmatprep.subr.bf16.mxu0 0
        %4628 = vmatpush1.bf16.msra.mxu0 %v4400
        %4629 = vmatprep.subr.bf16.mxu0 0
        %4630 = vmatpush1.bf16.msra.mxu0 %v4401
        %4631 = vmatprep.subr.bf16.mxu0 0
        %4632 = vmatpush1.bf16.msra.mxu0 %v4402
        %4633 = vmatprep.subr.bf16.mxu0 0
        %4634 = vmatpush1.bf16.msra.mxu0 %v4403
        %4635 = vmatprep.subr.bf16.mxu0 0
        %4636 = vmatpush1.bf16.msra.mxu0 %v4404
        %4637 = vmatprep.subr.bf16.mxu0 0
        %4638 = vmatpush1.bf16.msra.mxu0 %v4405
        %4639 = vmatprep.subr.bf16.mxu0 0
        %4640 = vmatpush1.bf16.msra.mxu0 %v4406
        %4641 = vmatprep.subr.bf16.mxu0 0
        %4642 = vmatpush1.bf16.msra.mxu0 %v4407
        %4643 = vmatprep.subr.bf16.mxu0 0
        %4644 = vmatpush1.bf16.msra.mxu0 %v4408
        %4645 = vmatprep.subr.bf16.mxu0 0
        %4646 = vmatpush1.bf16.msra.mxu0 %v4409
        %4647 = vmatprep.subr.bf16.mxu0 0
        %4648 = vmatpush1.bf16.msra.mxu0 %v4410
        %4649 = vmatprep.subr.bf16.mxu0 0
        %4650 = vmatpush1.bf16.msra.mxu0 %v4411
        %4651 = vmatprep.subr.bf16.mxu0 0
        %4652 = vmatpush1.bf16.msra.mxu0 %v4412
        %4653 = vmatprep.subr.bf16.mxu0 0
        %4654 = vmatpush1.bf16.msra.mxu0 %v4413
        %4655 = vmatprep.subr.bf16.mxu0 0
        %4656 = vmatpush1.bf16.msra.mxu0 %v4414
        %4657 = vmatprep.subr.bf16.mxu0 0
        %4658 = vmatpush1.bf16.msra.mxu0 %v4415
        %4659 = vmatprep.mubr.bf16.mxu0 %v3773
        %4660 = vmatmul.mubr.bf16.gmra.mrb[0].mxu0 %v3772
        %v4661 = vpop.f32.mrb[0].mxu0
        %v4662 = vadd.f32 %v4622, %v4661
        %v4663 = vpop.f32.mrb[0].mxu0
        %v4664 = vpop.f32.mrb[0].mxu0
        %v4665 = vpop.f32.mrb[0].mxu0
        %4666 = vdwg.mxu0
        %4667 = vmatprep.subr.bf16.mxu0 0
        %4668 = vmatpush1.bf16.msra.mxu0 %v4416
        %4669 = vmatprep.subr.bf16.mxu0 0
        %4670 = vmatpush1.bf16.msra.mxu0 %v4417
        %4671 = vmatprep.subr.bf16.mxu0 0
        %4672 = vmatpush1.bf16.msra.mxu0 %v4418
        %4673 = vmatprep.subr.bf16.mxu0 0
        %4674 = vmatpush1.bf16.msra.mxu0 %v4419
        %4675 = vmatprep.subr.bf16.mxu0 0
        %4676 = vmatpush1.bf16.msra.mxu0 %v4420
        %4677 = vmatprep.subr.bf16.mxu0 0
        %4678 = vmatpush1.bf16.msra.mxu0 %v4421
        %4679 = vmatprep.subr.bf16.mxu0 0
        %4680 = vmatpush1.bf16.msra.mxu0 %v4422
        %4681 = vmatprep.subr.bf16.mxu0 0
        %4682 = vmatpush1.bf16.msra.mxu0 %v4423
        %4683 = vmatprep.subr.bf16.mxu0 0
        %4684 = vmatpush1.bf16.msra.mxu0 %v4424
        %4685 = vmatprep.subr.bf16.mxu0 0
        %4686 = vmatpush1.bf16.msra.mxu0 %v4425
        %4687 = vmatprep.subr.bf16.mxu0 0
        %4688 = vmatpush1.bf16.msra.mxu0 %v4426
        %4689 = vmatprep.subr.bf16.mxu0 0
        %4690 = vmatpush1.bf16.msra.mxu0 %v4427
        %4691 = vmatprep.subr.bf16.mxu0 0
        %4692 = vmatpush1.bf16.msra.mxu0 %v4428
        %4693 = vmatprep.subr.bf16.mxu0 0
        %4694 = vmatpush1.bf16.msra.mxu0 %v4429
        %4695 = vmatprep.subr.bf16.mxu0 0
        %4696 = vmatpush1.bf16.msra.mxu0 %v4430
        %4697 = vmatprep.subr.bf16.mxu0 0
        %4698 = vmatpush1.bf16.msra.mxu0 %v4431
        %4699 = vmatprep.mubr.bf16.mxu0 %v3775
        %4700 = vmatmul.mubr.bf16.gmra.mrb[0].mxu0 %v3774
        %v4701 = vpop.f32.mrb[0].mxu0
        %v4702 = vadd.f32 %v4662, %v4701
        %v4703 = vpop.f32.mrb[0].mxu0
        %v4704 = vpop.f32.mrb[0].mxu0
        %v4705 = vpop.f32.mrb[0].mxu0
        %4706 = vdwg.mxu0
        %4707 = vmatprep.subr.bf16.mxu0 0
        %4708 = vmatpush1.bf16.msra.mxu0 %v4432
        %4709 = vmatprep.subr.bf16.mxu0 0
        %4710 = vmatpush1.bf16.msra.mxu0 %v4433
        %4711 = vmatprep.subr.bf16.mxu0 0
        %4712 = vmatpush1.bf16.msra.mxu0 %v4434
        %4713 = vmatprep.subr.bf16.mxu0 0
        %4714 = vmatpush1.bf16.msra.mxu0 %v4435
        %4715 = vmatprep.subr.bf16.mxu0 0
        %4716 = vmatpush1.bf16.msra.mxu0 %v4436
        %4717 = vmatprep.subr.bf16.mxu0 0
        %4718 = vmatpush1.bf16.msra.mxu0 %v4437
        %4719 = vmatprep.subr.bf16.mxu0 0
        %4720 = vmatpush1.bf16.msra.mxu0 %v4438
        %4721 = vmatprep.subr.bf16.mxu0 0
        %4722 = vmatpush1.bf16.msra.mxu0 %v4439
        %4723 = vmatprep.subr.bf16.mxu0 0
        %4724 = vmatpush1.bf16.msra.mxu0 %v4440
        %4725 = vmatprep.subr.bf16.mxu0 0
        %4726 = vmatpush1.bf16.msra.mxu0 %v4441
        %4727 = vmatprep.subr.bf16.mxu0 0
        %4728 = vmatpush1.bf16.msra.mxu0 %v4442
        %4729 = vmatprep.subr.bf16.mxu0 0
        %4730 = vmatpush1.bf16.msra.mxu0 %v4443
        %4731 = vmatprep.subr.bf16.mxu0 0
        %4732 = vmatpush1.bf16.msra.mxu0 %v4444
        %4733 = vmatprep.subr.bf16.mxu0 0
        %4734 = vmatpush1.bf16.msra.mxu0 %v4445
        %4735 = vmatprep.subr.bf16.mxu0 0
        %4736 = vmatpush1.bf16.msra.mxu0 %v4446
        %4737 = vmatprep.subr.bf16.mxu0 0
        %4738 = vmatpush1.bf16.msra.mxu0 %v4447
        %4739 = vmatprep.mubr.bf16.mxu0 %v3777
        %4740 = vmatmul.mubr.bf16.gmra.mrb[0].mxu0 %v3776
        %v4741 = vpop.f32.mrb[0].mxu0
        %v4742 = vadd.f32 %v4702, %v4741
        %v4743 = vpop.f32.mrb[0].mxu0
        %v4744 = vpop.f32.mrb[0].mxu0
        %v4745 = vpop.f32.mrb[0].mxu0
        %4746 = vdwg.mxu0
        %4747 = vmatprep.subr.bf16.mxu0 0
        %4748 = vmatpush1.bf16.msra.mxu0 %v4448
        %4749 = vmatprep.subr.bf16.mxu0 0
        %4750 = vmatpush1.bf16.msra.mxu0 %v4449
        %4751 = vmatprep.subr.bf16.mxu0 0
        %4752 = vmatpush1.bf16.msra.mxu0 %v4450
        %4753 = vmatprep.subr.bf16.mxu0 0
        %4754 = vmatpush1.bf16.msra.mxu0 %v4451
        %4755 = vmatprep.subr.bf16.mxu0 0
        %4756 = vmatpush1.bf16.msra.mxu0 %v4452
        %4757 = vmatprep.subr.bf16.mxu0 0
        %4758 = vmatpush1.bf16.msra.mxu0 %v4453
        %4759 = vmatprep.subr.bf16.mxu0 0
        %4760 = vmatpush1.bf16.msra.mxu0 %v4454
        %4761 = vmatprep.subr.bf16.mxu0 0
        %4762 = vmatpush1.bf16.msra.mxu0 %v4455
        %4763 = vmatprep.subr.bf16.mxu0 0
        %4764 = vmatpush1.bf16.msra.mxu0 %v4456
        %4765 = vmatprep.subr.bf16.mxu0 0
        %4766 = vmatpush1.bf16.msra.mxu0 %v4457
        %4767 = vmatprep.subr.bf16.mxu0 0
        %4768 = vmatpush1.bf16.msra.mxu0 %v4458
        %4769 = vmatprep.subr.bf16.mxu0 0
        %4770 = vmatpush1.bf16.msra.mxu0 %v4459
        %4771 = vmatprep.subr.bf16.mxu0 0
        %4772 = vmatpush1.bf16.msra.mxu0 %v4460
        %4773 = vmatprep.subr.bf16.mxu0 0
        %4774 = vmatpush1.bf16.msra.mxu0 %v4461
        %4775 = vmatprep.subr.bf16.mxu0 0
        %4776 = vmatpush1.bf16.msra.mxu0 %v4462
        %4777 = vmatprep.subr.bf16.mxu0 0
        %4778 = vmatpush1.bf16.msra.mxu0 %v4463
        %4779 = vmatprep.mubr.bf16.mxu0 %v3779
        %4780 = vmatmul.mubr.bf16.gmra.mrb[0].mxu0 %v3778
        %v4781 = vpop.f32.mrb[0].mxu0
        %v4782 = vadd.f32 %v4742, %v4781
        %v4783 = vpop.f32.mrb[0].mxu0
        %v4784 = vpop.f32.mrb[0].mxu0
        %v4785 = vpop.f32.mrb[0].mxu0
        %4786 = vdwg.mxu0
        %4787 = vmatprep.subr.bf16.mxu0 0
        %4788 = vmatpush1.bf16.msra.mxu0 %v4464
        %4789 = vmatprep.subr.bf16.mxu0 0
        %4790 = vmatpush1.bf16.msra.mxu0 %v4465
        %4791 = vmatprep.subr.bf16.mxu0 0
        %4792 = vmatpush1.bf16.msra.mxu0 %v4466
        %4793 = vmatprep.subr.bf16.mxu0 0
        %4794 = vmatpush1.bf16.msra.mxu0 %v4467
        %4795 = vmatprep.subr.bf16.mxu0 0
        %4796 = vmatpush1.bf16.msra.mxu0 %v4468
        %4797 = vmatprep.subr.bf16.mxu0 0
        %4798 = vmatpush1.bf16.msra.mxu0 %v4469
        %4799 = vmatprep.subr.bf16.mxu0 0
        %4800 = vmatpush1.bf16.msra.mxu0 %v4470
        %4801 = vmatprep.subr.bf16.mxu0 0
        %4802 = vmatpush1.bf16.msra.mxu0 %v4471
        %4803 = vmatprep.subr.bf16.mxu0 0
        %4804 = vmatpush1.bf16.msra.mxu0 %v4472
        %4805 = vmatprep.subr.bf16.mxu0 0
        %4806 = vmatpush1.bf16.msra.mxu0 %v4473
        %4807 = vmatprep.subr.bf16.mxu0 0
        %4808 = vmatpush1.bf16.msra.mxu0 %v4474
        %4809 = vmatprep.subr.bf16.mxu0 0
        %4810 = vmatpush1.bf16.msra.mxu0 %v4475
        %4811 = vmatprep.subr.bf16.mxu0 0
        %4812 = vmatpush1.bf16.msra.mxu0 %v4476
        %4813 = vmatprep.subr.bf16.mxu0 0
        %4814 = vmatpush1.bf16.msra.mxu0 %v4477
        %4815 = vmatprep.subr.bf16.mxu0 0
        %4816 = vmatpush1.bf16.msra.mxu0 %v4478
        %4817 = vmatprep.subr.bf16.mxu0 0
        %4818 = vmatpush1.bf16.msra.mxu0 %v4479
        %4819 = vmatprep.mubr.bf16.mxu0 %v3781
        %4820 = vmatmul.mubr.bf16.gmra.mrb[0].mxu0 %v3780
        %v4821 = vpop.f32.mrb[0].mxu0
        %v4822 = vadd.f32 %v4782, %v4821
        %v4823 = vpop.f32.mrb[0].mxu0
        %v4824 = vpop.f32.mrb[0].mxu0
        %v4825 = vpop.f32.mrb[0].mxu0
        %4826 = vdwg.mxu0
        %4827 = vmatprep.subr.bf16.mxu0 0
        %4828 = vmatpush1.bf16.msra.mxu0 %v4480
        %4829 = vmatprep.subr.bf16.mxu0 0
        %4830 = vmatpush1.bf16.msra.mxu0 %v4481
        %4831 = vmatprep.subr.bf16.mxu0 0
        %4832 = vmatpush1.bf16.msra.mxu0 %v4482
        %4833 = vmatprep.subr.bf16.mxu0 0
        %4834 = vmatpush1.bf16.msra.mxu0 %v4483
        %4835 = vmatprep.subr.bf16.mxu0 0
        %4836 = vmatpush1.bf16.msra.mxu0 0
        %4837 = vmatprep.subr.bf16.mxu0 0
        %4838 = vmatpush1.bf16.msra.mxu0 0
        %4839 = vmatprep.subr.bf16.mxu0 0
        %4840 = vmatpush1.bf16.msra.mxu0 0
        %4841 = vmatprep.subr.bf16.mxu0 0
        %4842 = vmatpush1.bf16.msra.mxu0 0
        %4843 = vmatprep.subr.bf16.mxu0 0
        %4844 = vmatpush1.bf16.msra.mxu0 0
        %4845 = vmatprep.subr.bf16.mxu0 0
        %4846 = vmatpush1.bf16.msra.mxu0 0
        %4847 = vmatprep.subr.bf16.mxu0 0
        %4848 = vmatpush1.bf16.msra.mxu0 0
        %4849 = vmatprep.subr.bf16.mxu0 0
        %4850 = vmatpush1.bf16.msra.mxu0 0
        %4851 = vmatprep.subr.bf16.mxu0 0
        %4852 = vmatpush1.bf16.msra.mxu0 0
        %4853 = vmatprep.subr.bf16.mxu0 0
        %4854 = vmatpush1.bf16.msra.mxu0 0
        %4855 = vmatprep.subr.bf16.mxu0 0
        %4856 = vmatpush1.bf16.msra.mxu0 0
        %4857 = vmatprep.subr.bf16.mxu0 0
        %4858 = vmatpush1.bf16.msra.mxu0 0
        %4859 = vmatprep.mubr.bf16.mxu0 0
        %4860 = vmatmul.mubr.bf16.gmra.mrb[0].mxu0 %v4585
        %v4861 = vpop.f32.mrb[0].mxu0
        %v4862 = vadd.f32 %v4822, %v4861
        %v4863 = vpop.f32.mrb[0].mxu0
        %v4864 = vpop.f32.mrb[0].mxu0
        %v4865 = vpop.f32.mrb[0].mxu0
        %4866 = vdwg.mxu0
        %v4867 = vmax.f32 %v4862, 0.0
        %v4868 = vpack.c.bf16 %v4867, %v4867
        %v4869 = vld [vmem:[%s13] sm:$0xf]
        %v4870 = vld [vmem:[%s13 + $0x4] sm:$0xf]
        %v4871 = vld [vmem:[%s13 + $0x8] sm:$0xf]
        %v4872 = vld [vmem:[%s13 + $0xc] sm:$0xf]
        %v4873 = vld [vmem:[%s13 + $0x10] sm:$0xf]
        %v4874 = vld [vmem:[%s13 + $0x14] sm:$0xf]
        %v4875 = vld [vmem:[%s13 + $0x18] sm:$0xf]
        %v4876 = vld [vmem:[%s13 + $0x1c] sm:$0xf]
        %v4877 = vld [vmem:[%s13 + $0x20] sm:$0xf]
        %v4878 = vld [vmem:[%s13 + $0x24] sm:$0xf]
        %v4879 = vld [vmem:[%s13 + $0x28] sm:$0xf]
        %v4880 = vld [vmem:[%s13 + $0x2c] sm:$0xf]
        %v4881 = vld [vmem:[%s13 + $0x30] sm:$0xf]
        %v4882 = vld [vmem:[%s13 + $0x34] sm:$0xf]
        %v4883 = vld [vmem:[%s13 + $0x38] sm:$0xf]
        %v4884 = vld [vmem:[%s13 + $0x3c] sm:$0xf]
        %v4885 = vld [vmem:[%s14] sm:$0x1]
        %v4902 = vunpack.c.l.b16 %v4869
        %v4903 = vunpack.c.l.b16 %v4870
        %v4904 = vunpack.c.l.b16 %v4871
        %v4905 = vunpack.c.l.b16 %v4872
        %v4906 = vunpack.c.l.b16 %v4873
        %v4907 = vunpack.c.l.b16 %v4874
        %v4908 = vunpack.c.l.b16 %v4875
        %v4909 = vunpack.c.l.b16 %v4876
        %v4910 = vunpack.c.l.b16 %v4877
        %v4911 = vunpack.c.l.b16 %v4878
        %v4912 = vunpack.c.l.b16 %v4879
        %v4913 = vunpack.c.l.b16 %v4880
        %v4914 = vunpack.c.l.b16 %v4881
        %v4915 = vunpack.c.l.b16 %v4882
        %v4916 = vunpack.c.l.b16 %v4883
        %v4917 = vunpack.c.l.b16 %v4884
        %v4918 = vpack.c.b16 %v4903, %v4902
        %v4919 = vpack.c.b16 %v4905, %v4904
        %v4920 = vpack.c.b16 %v4907, %v4906
        %v4921 = vpack.c.b16 %v4909, %v4908
        %v4922 = vpack.c.b16 %v4911, %v4910
        %v4923 = vpack.c.b16 %v4913, %v4912
        %v4924 = vpack.c.b16 %v4915, %v4914
        %v4925 = vpack.c.b16 %v4917, %v4916
        %4934 = vmatprep.subr.bf16.mxu0 0
        %4935 = vmatpush1.bf16.msra.mxu0 %v4918
        %4936 = vmatprep.subr.bf16.mxu0 0
        %4937 = vmatpush1.bf16.msra.mxu0 %v4919
        %4938 = vmatprep.subr.bf16.mxu0 0
        %4939 = vmatpush1.bf16.msra.mxu0 %v4920
        %4940 = vmatprep.subr.bf16.mxu0 0
        %4941 = vmatpush1.bf16.msra.mxu0 %v4921
        %4942 = vmatprep.subr.bf16.mxu0 0
        %4943 = vmatpush1.bf16.msra.mxu0 %v4922
        %4944 = vmatprep.subr.bf16.mxu0 0
        %4945 = vmatpush1.bf16.msra.mxu0 %v4923
        %4946 = vmatprep.subr.bf16.mxu0 0
        %4947 = vmatpush1.bf16.msra.mxu0 %v4924
        %4948 = vmatprep.subr.bf16.mxu0 0
        %4949 = vmatpush1.bf16.msra.mxu0 %v4925
        %4950 = vmatprep.subr.bf16.mxu0 0
        %4951 = vmatpush1.bf16.msra.mxu0 0
        %4952 = vmatprep.subr.bf16.mxu0 0
        %4953 = vmatpush1.bf16.msra.mxu0 0
        %4954 = vmatprep.subr.bf16.mxu0 0
        %4955 = vmatpush1.bf16.msra.mxu0 0
        %4956 = vmatprep.subr.bf16.mxu0 0
        %4957 = vmatpush1.bf16.msra.mxu0 0
        %4958 = vmatprep.subr.bf16.mxu0 0
        %4959 = vmatpush1.bf16.msra.mxu0 0
        %4960 = vmatprep.subr.bf16.mxu0 0
        %4961 = vmatpush1.bf16.msra.mxu0 0
        %4962 = vmatprep.subr.bf16.mxu0 0
        %4963 = vmatpush1.bf16.msra.mxu0 0
        %4964 = vmatprep.subr.bf16.mxu0 0
        %4965 = vmatpush1.bf16.msra.mxu0 0
        %4966 = vmatprep.mubr.bf16.mxu0 0
        %4967 = vmatmul.mubr.bf16.gmra.mrb[0].mxu0 %v4868
        %v4968 = vpop.f32.mrb[0].mxu0
        %v4969 = vadd.f32 %v4885, %v4968
        %v4970 = vpop.f32.mrb[0].mxu0
        %v4971 = vpop.f32.mrb[0].mxu0
        %v4972 = vpop.f32.mrb[0].mxu0
        %4973 = vdwg.mxu0
        %vm4974 = vcmask 73728
        %4975 = vst.msk [vmem:[%s486] sm:$0x1] %vm4974, %v4969
        %s4976 = sand.u32 %s357, 1
        %s4977 = scalar_lea.sflag [#allocation3], %s4976
        %s4978 = sand.u32 %s357, 1
        %s4979 = scalar_lea.vmem [#allocation2], %s4978
        // Predicated region
        $region81: #{fused_forward.1} parent=79 // pred_check
          %p4980 = pneg %p367
        $region82: #{fused_forward.1} parent=79 // pred_check_branch
          %4982 = sbr.rel (%p4980) target = $region84
        $region83: #{fused_forward.1} parent=79 // pred_region
          %s4984 = ssub.s32 16, 16
          %4985 = vsyncadd %s4977, %s4984
          %s4986 = smul.addr %s29, 16
          %s4987 = scalar_lea.hbm %s15, %s4986
          %s4989 = sshll.u32 %s4979, 4
          %s4990 = int_to_ptr.vmem [resolvable:$true] %s4989
          %4992 = dma.vmem_to_hbm [thread:$0]  %s4990, 16, %s4987, %s4977
        $region84: #{fused_forward.1} parent=79 // pred_fallthru
          _
      $region80: #{fused_forward.1} parent=5 // pred_fallthru
        _
      %p4993 = scmp.le.s32.totalorder 2, %s24
      // Predicated region
      $region85: #{fused_forward.1} parent=5 // pred_check
        %p4994 = pneg %p4993
      $region86: #{fused_forward.1} parent=5 // pred_check_branch
        %4996 = sbr.rel (%p4994) target = $region88
      $region87: #{fused_forward.1} parent=5 // pred_region
        %s4997 = ssub.s32 %s24, 2
        // Predicated region
        $region89: #{fused_forward.1} parent=87 // pred_check
          %p4998 = pneg %p373
        $region90: #{fused_forward.1} parent=87 // pred_check_branch
          %5000 = sbr.rel (%p4998) target = $region92
        $region91: #{fused_forward.1} parent=87 // pred_region
          %s5001 = sand.u32 %s358, 1
          %s5002 = scalar_lea.sflag [#allocation3], %s5001
          %s5003 = sand.u32 %s358, 1
          %s5004 = scalar_lea.vmem [#allocation2], %s5003
          %5005 = dma.done %s5002, 16
        $region92: #{fused_forward.1} parent=87 // pred_fallthru
          _
      $region88: #{fused_forward.1} parent=5 // pred_fallthru
        _
    $region6: #{fused_forward.1} parent=1 // loop_footer
      %s28 = sadd.s32 1, %s24
    $region7: #{fused_forward.1} parent=1 // loop_footer_branch
      %23 = sbr.rel target = $region3
    $region8: #{fused_forward.1} parent=1 // loop_exit
      _
    %5006 = vsyncpa [#allocation3], 1
    %s5007 = scalar_lea.sflag [#allocation3], 1
    %5008 = vsyncpa %s5007, 1

</llo_original>
